<compile_context>
chip_gen: v5e
topology: v5e:2x2
jax: 0.10.0
libtpu: 0.0.40
codegen_flags: <defaults>
</compile_context>

<pallas_src>
import functools
import numpy as np

import jax
import jax.numpy as jnp
from jax.experimental import pallas as pl
from jax.experimental.pallas import tpu as pltpu


# ----------------------------------------------------------------------------
# cfg (synthetic, mirrors the usual Faster R-CNN defaults)
# ----------------------------------------------------------------------------
ANCHOR_SCALES = np.array([8.0, 16.0, 32.0])
ANCHOR_RATIOS = np.array([0.5, 1.0, 2.0])
FEAT_STRIDE = 16
POST_NMS_TOP_N = 32
RPN_MID_CHANNELS = 512  # nn.Conv2d(din, 512, 3, 1, 1)
HEAD_LANES = 128        # padded lane width of the fused head matmul / packed output


# ----------------------------------------------------------------------------
# Anchor generation (numpy, identical to generate_anchors.py)
# ----------------------------------------------------------------------------
def _whctrs(anchor):
    w = anchor[2] - anchor[0] + 1
    h = anchor[3] - anchor[1] + 1
    x_ctr = anchor[0] + 0.5 * (w - 1)
    y_ctr = anchor[1] + 0.5 * (h - 1)
    return w, h, x_ctr, y_ctr


def _mkanchors(ws, hs, x_ctr, y_ctr):
    ws = ws[:, None]
    hs = hs[:, None]
    return np.hstack((x_ctr - 0.5 * (ws - 1), y_ctr - 0.5 * (hs - 1),
                      x_ctr + 0.5 * (ws - 1), y_ctr + 0.5 * (hs - 1)))


def _ratio_enum(anchor, ratios):
    w, h, x_ctr, y_ctr = _whctrs(anchor)
    size = w * h
    size_ratios = size / ratios
    ws = np.round(np.sqrt(size_ratios))
    hs = np.round(ws * ratios)
    return _mkanchors(ws, hs, x_ctr, y_ctr)


def _scale_enum(anchor, scales):
    w, h, x_ctr, y_ctr = _whctrs(anchor)
    ws = w * scales
    hs = h * scales
    return _mkanchors(ws, hs, x_ctr, y_ctr)


def generate_anchors(base_size=16, ratios=ANCHOR_RATIOS, scales=ANCHOR_SCALES):
    base_anchor = np.array([1, 1, base_size, base_size], dtype=np.float64) - 1
    ratio_anchors = _ratio_enum(base_anchor, ratios)
    anchors = np.vstack([_scale_enum(ratio_anchors[i, :], scales)
                         for i in range(ratio_anchors.shape[0])])
    return anchors.astype(np.float32)


# ----------------------------------------------------------------------------
# Fused Pallas kernel: 3x3 conv + ReLU + 1x1 heads + paired softmax
# ----------------------------------------------------------------------------
def _rpn_fused_kernel(a_ref, b_ref, wconv_ref, bconv_ref, whead_ref, bhead_ref,
                      out_ref, halo_ref, xcol_ref, *, tile_h, width, cin, num_anchors):
    T, W, A = tile_h, width, num_anchors

    # Assemble the (T+2)-row halo window from the main block + 2-row bottom halo block.
    halo_ref[0:T] = a_ref[0]          # padded rows [h*T, h*T+T)
    halo_ref[T:T + 2] = b_ref[0]      # padded rows [h*T+T, h*T+T+2)

    # In-VMEM im2col: lane block t = kh*3 + kw holds the Cin channels of tap (kh, kw).
    for kh in range(3):
        for kw in range(3):
            t = kh * 3 + kw
            xcol_ref[:, :, t * cin:(t + 1) * cin] = halo_ref[kh:kh + T, kw:kw + W, :]

    # 3x3 conv + bias + ReLU as ONE bf16 MXU matmul with K = 9*Cin, f32 accumulation.
    xcol = xcol_ref[...].reshape(T * W, 9 * cin)
    h = jnp.dot(xcol, wconv_ref[...], preferred_element_type=jnp.float32)
    h = jnp.maximum(h + bconv_ref[...], 0.0)                       # (T*W, Cmid) f32

    # Fused 1x1 heads: cols [0:A)=cls bg, [A:2A)=cls fg, [2A:6A)=bbox, rest zero-pad.
    z = jnp.dot(h.astype(jnp.bfloat16), whead_ref[...],
                preferred_element_type=jnp.float32) + bhead_ref[...]  # (T*W, 128) f32

    # Paired (bg, fg) softmax == PyTorch reshape(score, 2) + softmax(dim=1) + reshape.
    s0 = z[:, 0:A]
    s1 = z[:, A:2 * A]
    m = jnp.maximum(s0, s1)
    e0 = jnp.exp(s0 - m)
    e1 = jnp.exp(s1 - m)
    d = e0 + e1
    inv = pl.reciprocal(d, approx=True)      # EUP slot (nearly free)
    inv = inv * (2.0 - d * inv)              # one Newton step -> ~f32 accuracy

    out_ref[0] = z                                   # lane-dense full 128-wide store
    out_ref[0, :, 6 * A:7 * A] = e0 * inv            # prob bg
    out_ref[0, :, 7 * A:8 * A] = e1 * inv            # prob fg


def _pick_tile_h(H, W):
    """Smallest even divisor T of H with T*W >= 128; else the largest even divisor."""
    best = None
    for t in range(2, H + 1, 2):
        if H % t == 0:
            best = t
            if t * W >= 128:
                return t
    if best is None:
        raise ValueError(f"H={H} has no even divisor")  # TODO(synk): support odd H
    return best


def rpn_conv_heads(x_nhwc, w_conv, b_conv, w_head, b_head, num_anchors, tile_h=None):
    """Fused RPN trunk.

    x_nhwc : (B, H, W, Cin) f32   (cast to bf16 internally)
    w_conv : (9*Cin, Cmid) bf16   rows ordered tap-major (t = kh*3+kw), channel-minor
    b_conv : (1, Cmid) f32
    w_head : (Cmid, 128) bf16     cols [0:2A)=cls weights, [2A:6A)=bbox weights, rest 0
    b_head : (1, 128) f32
    Returns packed (B, H*W, 128) f32:
      lanes [0:2A)=cls scores, [2A:6A)=bbox deltas, [6A:8A)=cls probs, rest 0.
    """
    B, H, W, Cin = x_nhwc.shape
    Cmid = w_conv.shape[1]
    A = num_anchors
    assert 8 * A <= HEAD_LANES
    assert W % 8 == 0, "in-kernel im2col reshape assumes W % 8 == 0"  # TODO(synk): pad W
    assert H % 2 == 0, "even H required for the 2-row halo block"     # TODO(synk): odd H
    T = tile_h if tile_h is not None else _pick_tile_h(H, W)
    assert H % T == 0 and T % 2 == 0
    n_h = H // T
    thw = T * W
    half_t = T // 2

    # Single bf16 padded copy of the feature map; it is the ONLY HBM-resident activation
    # the kernel reads (passed twice below with two different BlockSpecs: main + halo).
    xp = jnp.pad(x_nhwc.astype(jnp.bfloat16), ((0, 0), (1, 1), (1, 1), (0, 0)))

    kernel = functools.partial(_rpn_fused_kernel, tile_h=T, width=W, cin=Cin,
                               num_anchors=A)
    packed = pl.pallas_call(
        kernel,
        out_shape=jax.ShapeDtypeStruct((B, H * W, HEAD_LANES), jnp.float32),
        grid=(B, n_h),
        in_specs=[
            # main T-row window of the padded input: padded rows [h*T, h*T+T)
            pl.BlockSpec((1, T, W + 2, Cin), lambda b, h: (b, h, 0, 0)),
            # 2-row bottom halo: padded rows [h*T+T, h*T+T+2) (same HBM buffer as above)
            pl.BlockSpec((1, 2, W + 2, Cin), lambda b, h: (b, (h + 1) * half_t, 0, 0)),
            pl.BlockSpec((9 * Cin, Cmid), lambda b, h: (0, 0)),
            pl.BlockSpec((1, Cmid), lambda b, h: (0, 0)),
            pl.BlockSpec((Cmid, HEAD_LANES), lambda b, h: (0, 0)),
            pl.BlockSpec((1, HEAD_LANES), lambda b, h: (0, 0)),
        ],
        out_specs=pl.BlockSpec((1, thw, HEAD_LANES), lambda b, h: (b, h, 0)),
        scratch_shapes=[
            pltpu.VMEM((T + 2, W + 2, Cin), jnp.bfloat16),   # halo window
            pltpu.VMEM((T, W, 9 * Cin), jnp.bfloat16),       # im2col slab
        ],
        compiler_params=pltpu.CompilerParams(
            dimension_semantics=("parallel", "parallel"),
            vmem_limit_bytes=32 * 1024 * 1024),
    )(xp, xp, w_conv, b_conv, w_head, b_head)
    return packed


# ----------------------------------------------------------------------------
# Proposal layer glue (anchor decode + clip + top-k). NMS is not translated.
# ----------------------------------------------------------------------------
def proposal_layer(scores_fg, bbox_deltas, im_info, anchors_np, feat_stride, H, W,
                   post_nms_top_n):
    """scores_fg: (B, H*W*A); bbox_deltas: (B, H*W*A, 4), (h, w, a)-ordered."""
    B = scores_fg.shape[0]
    A = anchors_np.shape[0]

    shift_x = jnp.arange(W, dtype=jnp.float32) * feat_stride
    shift_y = jnp.arange(H, dtype=jnp.float32) * feat_stride
    sx, sy = jnp.meshgrid(shift_x, shift_y)                                   # (H, W)
    shifts = jnp.stack([sx.ravel(), sy.ravel(), sx.ravel(), sy.ravel()], 1)   # (HW, 4)
    anchors = (jnp.asarray(anchors_np)[None, :, :] + shifts[:, None, :]
               ).reshape(H * W * A, 4)

    widths = anchors[:, 2] - anchors[:, 0] + 1.0
    heights = anchors[:, 3] - anchors[:, 1] + 1.0
    ctr_x = anchors[:, 0] + 0.5 * widths
    ctr_y = anchors[:, 1] + 0.5 * heights

    dx, dy = bbox_deltas[..., 0], bbox_deltas[..., 1]
    dw, dh = bbox_deltas[..., 2], bbox_deltas[..., 3]
    pred_ctr_x = dx * widths[None] + ctr_x[None]
    pred_ctr_y = dy * heights[None] + ctr_y[None]
    pred_w = jnp.exp(dw) * widths[None]
    pred_h = jnp.exp(dh) * heights[None]

    x1 = pred_ctr_x - 0.5 * pred_w
    y1 = pred_ctr_y - 0.5 * pred_h
    x2 = pred_ctr_x + 0.5 * pred_w
    y2 = pred_ctr_y + 0.5 * pred_h

    im_h = im_info[:, 0:1]
    im_w = im_info[:, 1:2]
    proposals = jnp.stack([
        jnp.clip(x1, 0.0, im_w - 1.0),
        jnp.clip(y1, 0.0, im_h - 1.0),
        jnp.clip(x2, 0.0, im_w - 1.0),
        jnp.clip(y2, 0.0, im_h - 1.0),
    ], axis=-1)  # (B, N, 4)

    # TODO(synk): per-image NMS + min-size filtering from _ProposalLayer has no clean
    # Pallas equivalent; return the top-K proposals by fg score (lax.top_k, not full sort).
    _, order = jax.lax.top_k(scores_fg, post_nms_top_n)                       # (B, K)
    top_boxes = jnp.take_along_axis(proposals, order[..., None], axis=1)      # (B, K, 4)
    batch_idx = jnp.broadcast_to(
        jnp.arange(B, dtype=jnp.float32)[:, None, None], (B, post_nms_top_n, 1))
    return jnp.concatenate([batch_idx, top_boxes], axis=-1)                   # (B, K, 5)


# ----------------------------------------------------------------------------
# Full _RPN forward (eval path)
# ----------------------------------------------------------------------------
def rpn_forward(base_feat_nchw, im_info, params, anchors_np, feat_stride):
    B, Cin, H, W = base_feat_nchw.shape
    A = anchors_np.shape[0]

    x_nhwc = jnp.transpose(base_feat_nchw, (0, 2, 3, 1))  # NCHW -> NHWC glue

    packed = rpn_conv_heads(x_nhwc, params["w_conv"], params["b_conv"],
                            params["w_head"], params["b_head"], A)   # (B, HW, 128)

    cls_score_f = packed[..., 0:2 * A]          # (B, HW, 2A)  bg first A, fg next A
    bbox_f = packed[..., 2 * A:6 * A]           # (B, HW, 4A)
    cls_prob_f = packed[..., 6 * A:8 * A]       # (B, HW, 2A)

    # PyTorch-facing NCHW tensors.
    rpn_cls_score = jnp.transpose(cls_score_f.reshape(B, H, W, 2 * A), (0, 3, 1, 2))
    rpn_cls_prob = jnp.transpose(cls_prob_f.reshape(B, H, W, 2 * A), (0, 3, 1, 2))
    rpn_bbox_pred = jnp.transpose(bbox_f.reshape(B, H, W, 4 * A), (0, 3, 1, 2))

    # Proposal layer consumes the channels-last flats directly (no NCHW round trip).
    scores_fg = cls_prob_f[..., A:2 * A].reshape(B, H * W * A)
    deltas = bbox_f.reshape(B, H * W * A, 4)
    rois = proposal_layer(scores_fg, deltas, im_info, anchors_np, feat_stride,
                          H, W, POST_NMS_TOP_N)

    # TODO(synk): training branch (_AnchorTargetLayer, cross-entropy, smooth-L1 loss)
    # is data-dependent gather/NMS-style logic; eval path only -> losses are 0.
    rpn_loss_cls = jnp.float32(0.0)
    rpn_loss_box = jnp.float32(0.0)
    return rois, rpn_loss_cls, rpn_loss_box, rpn_cls_score, rpn_cls_prob, rpn_bbox_pred


# ----------------------------------------------------------------------------
# Parameter init (shapes follow the module's __init__; bf16 matmul operands)
# ----------------------------------------------------------------------------
def init_params(key, din, A, cmid=RPN_MID_CHANNELS):
    ks = jax.random.split(key, 5)
    # PyTorch RPN_Conv weight is (512, din, 3, 3); stored here flattened tap-major:
    # row t*din + ci, with t = kh*3 + kw (matches the in-kernel im2col lane layout).
    w_conv = (0.01 * jax.random.normal(ks[0], (9, din, cmid), jnp.float32)
              ).reshape(9 * din, cmid).astype(jnp.bfloat16)
    b_conv = 0.01 * jax.random.normal(ks[1], (1, cmid), jnp.float32)
    # RPN_cls_score (2A,512,1,1) -> (512, 2A), RPN_bbox_pred (4A,512,1,1) -> (512, 4A);
    # packed side by side into one 128-lane head weight (zero padded beyond 6A).
    w_cls = 0.01 * jax.random.normal(ks[2], (cmid, 2 * A), jnp.float32)
    w_bbox = 0.01 * jax.random.normal(ks[3], (cmid, 4 * A), jnp.float32)
    b_raw = 0.01 * jax.random.normal(ks[4], (1, 6 * A), jnp.float32)
    w_head = jnp.zeros((cmid, HEAD_LANES), jnp.float32)
    w_head = w_head.at[:, :2 * A].set(w_cls).at[:, 2 * A:6 * A].set(w_bbox)
    b_head = jnp.zeros((1, HEAD_LANES), jnp.float32).at[:, :6 * A].set(b_raw)
    return dict(w_conv=w_conv, b_conv=b_conv,
                w_head=w_head.astype(jnp.bfloat16), b_head=b_head)


# ----------------------------------------------------------------------------
# Pure-JAX reference (same bf16 rounding points as the kernel) for correctness check
# ----------------------------------------------------------------------------
def _reference_flat_outputs(x_nhwc, params, A):
    B, H, W, Cin = x_nhwc.shape
    hp = jax.lax.Precision.HIGHEST
    xb = x_nhwc.astype(jnp.bfloat16).astype(jnp.float32)
    xp = jnp.pad(xb, ((0, 0), (1, 1), (1, 1), (0, 0)))
    taps = [xp[:, kh:kh + H, kw:kw + W, :] for kh in range(3) for kw in range(3)]
    xcol = jnp.concatenate(taps, axis=-1).reshape(B, H * W, 9 * Cin)
    h = jnp.dot(xcol, params["w_conv"].astype(jnp.float32), precision=hp)
    h = jnp.maximum(h + params["b_conv"], 0.0)
    hb = h.astype(jnp.bfloat16).astype(jnp.float32)
    z = jnp.dot(hb, params["w_head"].astype(jnp.float32), precision=hp) + params["b_head"]
    s0, s1, bbox = z[..., :A], z[..., A:2 * A], z[..., 2 * A:6 * A]
    m = jnp.maximum(s0, s1)
    e0, e1 = jnp.exp(s0 - m), jnp.exp(s1 - m)
    denom = e0 + e1
    cls_score = jnp.concatenate([s0, s1], axis=-1)
    cls_prob = jnp.concatenate([e0 / denom, e1 / denom], axis=-1)
    return cls_score, cls_prob, bbox


if __name__ == "__main__":
    B, Cin, H, W = 2, 4, 16, 16  # small NCHW base_feat, consistent with the module
    key = jax.random.PRNGKey(0)
    k_feat, k_params = jax.random.split(key)

    base_feat = jax.random.normal(k_feat, (B, Cin, H, W), jnp.float32)  # NCHW input
    im_info = jnp.array([[H * FEAT_STRIDE, W * FEAT_STRIDE, 1.0]] * B, jnp.float32)

    anchors_np = generate_anchors()              # (9, 4)
    A = anchors_np.shape[0]
    params = init_params(k_params, Cin, A)

    fwd = jax.jit(functools.partial(rpn_forward, anchors_np=anchors_np,
                                    feat_stride=FEAT_STRIDE))
    outs = fwd(base_feat, im_info, params)
    rois, loss_cls, loss_box, cls_score, cls_prob, bbox_pred = outs
    jax.block_until_ready(outs)

    # shape checks
    assert rois.shape == (B, POST_NMS_TOP_N, 5)
    assert cls_score.shape == (B, 2 * A, H, W)
    assert cls_prob.shape == (B, 2 * A, H, W)
    assert bbox_pred.shape == (B, 4 * A, H, W)

    # paired softmax sums to 1
    pair_sum = cls_prob[:, :A] + cls_prob[:, A:]
    assert bool(jnp.allclose(pair_sum, 1.0, atol=1e-4))

    # numerical check against a pure-JAX reference with identical bf16 rounding points
    x_nhwc = jnp.transpose(base_feat, (0, 2, 3, 1))
    ref_score, ref_prob, ref_bbox = _reference_flat_outputs(x_nhwc, params, A)
    got_score = jnp.transpose(cls_score, (0, 2, 3, 1)).reshape(B, H * W, 2 * A)
    got_prob = jnp.transpose(cls_prob, (0, 2, 3, 1)).reshape(B, H * W, 2 * A)
    got_bbox = jnp.transpose(bbox_pred, (0, 2, 3, 1)).reshape(B, H * W, 4 * A)
    assert bool(jnp.allclose(got_score, ref_score, atol=2e-3, rtol=1e-2))
    assert bool(jnp.allclose(got_prob, ref_prob, atol=2e-3, rtol=1e-2))
    assert bool(jnp.allclose(got_bbox, ref_bbox, atol=2e-3, rtol=1e-2))

    print("KERNEL_OK")
</pallas_src>

<mosaic_0001>
module attributes {stable_mosaic.version = 11 : i64} {
  func.func @_rpn_fused_kernel(%arg0: i32, %arg1: i32, %arg2: memref<1x8x18x4xbf16, #tpu.memory_space<vmem>>, %arg3: memref<1x2x18x4xbf16, #tpu.memory_space<vmem>>, %arg4: memref<36x512xbf16, #tpu.memory_space<vmem>>, %arg5: memref<1x512xf32, #tpu.memory_space<vmem>>, %arg6: memref<512x128xbf16, #tpu.memory_space<vmem>>, %arg7: memref<1x128xf32, #tpu.memory_space<vmem>>, %arg8: memref<1x128x128xf32, #tpu.memory_space<vmem>>, %arg9: memref<10x18x4xbf16, #tpu.memory_space<vmem>>, %arg10: memref<8x16x36xbf16, #tpu.memory_space<vmem>>) attributes {dimension_semantics = [#tpu.dimension_semantics<parallel>, #tpu.dimension_semantics<parallel>], iteration_bounds = array<i64: 2, 2>, scalar_prefetch = 0 : i64, scratch_operands = 2 : i64, tpu.core_type = #tpu.core_type<tc>, window_params = [{transform_indices = @transform_0, window_bounds = array<i64: 1, 8, 18, 4>}, {transform_indices = @transform_1, window_bounds = array<i64: 1, 2, 18, 4>}, {pipeline_mode = #tpu.pipeline_mode<synchronous>, transform_indices = @transform_2, window_bounds = array<i64: 36, 512>}, {pipeline_mode = #tpu.pipeline_mode<synchronous>, transform_indices = @transform_3, window_bounds = array<i64: 1, 512>}, {pipeline_mode = #tpu.pipeline_mode<synchronous>, transform_indices = @transform_4, window_bounds = array<i64: 512, 128>}, {pipeline_mode = #tpu.pipeline_mode<synchronous>, transform_indices = @transform_5, window_bounds = array<i64: 1, 128>}, {transform_indices = @transform_6, window_bounds = array<i64: 1, 128, 128>}]} {
    %c0 = arith.constant 0 : index
    %c0_0 = arith.constant 0 : index
    %c0_1 = arith.constant 0 : index
    %c0_2 = arith.constant 0 : index
    %0 = vector.load %arg2[%c0, %c0_0, %c0_1, %c0_2] : memref<1x8x18x4xbf16, #tpu.memory_space<vmem>>, vector<1x8x18x4xbf16>
    %1 = vector.shape_cast %0 : vector<1x8x18x4xbf16> to vector<8x18x4xbf16>
    %c0_3 = arith.constant 0 : index
    %c0_4 = arith.constant 0 : index
    %c0_5 = arith.constant 0 : index
    %2 = vector.load %arg9[%c0_3, %c0_4, %c0_5] : memref<10x18x4xbf16, #tpu.memory_space<vmem>>, vector<8x18x4xbf16>
    tpu.vector_store %arg9[%c0_3, %c0_4, %c0_5], %1 {strides = array<i32>} : memref<10x18x4xbf16, #tpu.memory_space<vmem>>, vector<8x18x4xbf16>,
    %c0_6 = arith.constant 0 : index
    %c0_7 = arith.constant 0 : index
    %c0_8 = arith.constant 0 : index
    %c0_9 = arith.constant 0 : index
    %3 = vector.load %arg3[%c0_6, %c0_7, %c0_8, %c0_9] : memref<1x2x18x4xbf16, #tpu.memory_space<vmem>>, vector<1x2x18x4xbf16>
    %4 = vector.shape_cast %3 : vector<1x2x18x4xbf16> to vector<2x18x4xbf16>
    %c8 = arith.constant 8 : index
    %c0_10 = arith.constant 0 : index
    %c0_11 = arith.constant 0 : index
    %5 = vector.load %arg9[%c8, %c0_10, %c0_11] : memref<10x18x4xbf16, #tpu.memory_space<vmem>>, vector<2x18x4xbf16>
    tpu.vector_store %arg9[%c8, %c0_10, %c0_11], %4 {strides = array<i32>} : memref<10x18x4xbf16, #tpu.memory_space<vmem>>, vector<2x18x4xbf16>,
    %c0_12 = arith.constant 0 : index
    %c0_13 = arith.constant 0 : index
    %c0_14 = arith.constant 0 : index
    %6 = vector.load %arg9[%c0_12, %c0_13, %c0_14] : memref<10x18x4xbf16, #tpu.memory_space<vmem>>, vector<8x16x4xbf16>
    %c0_15 = arith.constant 0 : index
    %c0_16 = arith.constant 0 : index
    %c0_17 = arith.constant 0 : index
    %7 = vector.load %arg10[%c0_15, %c0_16, %c0_17] : memref<8x16x36xbf16, #tpu.memory_space<vmem>>, vector<8x16x4xbf16>
    tpu.vector_store %arg10[%c0_15, %c0_16, %c0_17], %6 {strides = array<i32>} : memref<8x16x36xbf16, #tpu.memory_space<vmem>>, vector<8x16x4xbf16>,
    %c0_18 = arith.constant 0 : index
    %c1 = arith.constant 1 : index
    %c0_19 = arith.constant 0 : index
    %8 = vector.load %arg9[%c0_18, %c1, %c0_19] : memref<10x18x4xbf16, #tpu.memory_space<vmem>>, vector<8x16x4xbf16>
    %c0_20 = arith.constant 0 : index
    %c0_21 = arith.constant 0 : index
    %c4 = arith.constant 4 : index
    %9 = vector.load %arg10[%c0_20, %c0_21, %c4] : memref<8x16x36xbf16, #tpu.memory_space<vmem>>, vector<8x16x4xbf16>
    tpu.vector_store %arg10[%c0_20, %c0_21, %c4], %8 {strides = array<i32>} : memref<8x16x36xbf16, #tpu.memory_space<vmem>>, vector<8x16x4xbf16>,
    %c0_22 = arith.constant 0 : index
    %c2 = arith.constant 2 : index
    %c0_23 = arith.constant 0 : index
    %10 = vector.load %arg9[%c0_22, %c2, %c0_23] : memref<10x18x4xbf16, #tpu.memory_space<vmem>>, vector<8x16x4xbf16>
    %c0_24 = arith.constant 0 : index
    %c0_25 = arith.constant 0 : index
    %c8_26 = arith.constant 8 : index
    %11 = vector.load %arg10[%c0_24, %c0_25, %c8_26] : memref<8x16x36xbf16, #tpu.memory_space<vmem>>, vector<8x16x4xbf16>
    tpu.vector_store %arg10[%c0_24, %c0_25, %c8_26], %10 {strides = array<i32>} : memref<8x16x36xbf16, #tpu.memory_space<vmem>>, vector<8x16x4xbf16>,
    %c1_27 = arith.constant 1 : index
    %c0_28 = arith.constant 0 : index
    %c0_29 = arith.constant 0 : index
    %12 = vector.load %arg9[%c1_27, %c0_28, %c0_29] : memref<10x18x4xbf16, #tpu.memory_space<vmem>>, vector<8x16x4xbf16>
    %c0_30 = arith.constant 0 : index
    %c0_31 = arith.constant 0 : index
    %c12 = arith.constant 12 : index
    %13 = vector.load %arg10[%c0_30, %c0_31, %c12] : memref<8x16x36xbf16, #tpu.memory_space<vmem>>, vector<8x16x4xbf16>
    tpu.vector_store %arg10[%c0_30, %c0_31, %c12], %12 {strides = array<i32>} : memref<8x16x36xbf16, #tpu.memory_space<vmem>>, vector<8x16x4xbf16>,
    %c1_32 = arith.constant 1 : index
    %c1_33 = arith.constant 1 : index
    %c0_34 = arith.constant 0 : index
    %14 = vector.load %arg9[%c1_32, %c1_33, %c0_34] : memref<10x18x4xbf16, #tpu.memory_space<vmem>>, vector<8x16x4xbf16>
    %c0_35 = arith.constant 0 : index
    %c0_36 = arith.constant 0 : index
    %c16 = arith.constant 16 : index
    %15 = vector.load %arg10[%c0_35, %c0_36, %c16] : memref<8x16x36xbf16, #tpu.memory_space<vmem>>, vector<8x16x4xbf16>
    tpu.vector_store %arg10[%c0_35, %c0_36, %c16], %14 {strides = array<i32>} : memref<8x16x36xbf16, #tpu.memory_space<vmem>>, vector<8x16x4xbf16>,
    %c1_37 = arith.constant 1 : index
    %c2_38 = arith.constant 2 : index
    %c0_39 = arith.constant 0 : index
    %16 = vector.load %arg9[%c1_37, %c2_38, %c0_39] : memref<10x18x4xbf16, #tpu.memory_space<vmem>>, vector<8x16x4xbf16>
    %c0_40 = arith.constant 0 : index
    %c0_41 = arith.constant 0 : index
    %c20 = arith.constant 20 : index
    %17 = vector.load %arg10[%c0_40, %c0_41, %c20] : memref<8x16x36xbf16, #tpu.memory_space<vmem>>, vector<8x16x4xbf16>
    tpu.vector_store %arg10[%c0_40, %c0_41, %c20], %16 {strides = array<i32>} : memref<8x16x36xbf16, #tpu.memory_space<vmem>>, vector<8x16x4xbf16>,
    %c2_42 = arith.constant 2 : index
    %c0_43 = arith.constant 0 : index
    %c0_44 = arith.constant 0 : index
    %18 = vector.load %arg9[%c2_42, %c0_43, %c0_44] : memref<10x18x4xbf16, #tpu.memory_space<vmem>>, vector<8x16x4xbf16>
    %c0_45 = arith.constant 0 : index
    %c0_46 = arith.constant 0 : index
    %c24 = arith.constant 24 : index
    %19 = vector.load %arg10[%c0_45, %c0_46, %c24] : memref<8x16x36xbf16, #tpu.memory_space<vmem>>, vector<8x16x4xbf16>
    tpu.vector_store %arg10[%c0_45, %c0_46, %c24], %18 {strides = array<i32>} : memref<8x16x36xbf16, #tpu.memory_space<vmem>>, vector<8x16x4xbf16>,
    %c2_47 = arith.constant 2 : index
    %c1_48 = arith.constant 1 : index
    %c0_49 = arith.constant 0 : index
    %20 = vector.load %arg9[%c2_47, %c1_48, %c0_49] : memref<10x18x4xbf16, #tpu.memory_space<vmem>>, vector<8x16x4xbf16>
    %c0_50 = arith.constant 0 : index
    %c0_51 = arith.constant 0 : index
    %c28 = arith.constant 28 : index
    %21 = vector.load %arg10[%c0_50, %c0_51, %c28] : memref<8x16x36xbf16, #tpu.memory_space<vmem>>, vector<8x16x4xbf16>
    tpu.vector_store %arg10[%c0_50, %c0_51, %c28], %20 {strides = array<i32>} : memref<8x16x36xbf16, #tpu.memory_space<vmem>>, vector<8x16x4xbf16>,
    %c2_52 = arith.constant 2 : index
    %c2_53 = arith.constant 2 : index
    %c0_54 = arith.constant 0 : index
    %22 = vector.load %arg9[%c2_52, %c2_53, %c0_54] : memref<10x18x4xbf16, #tpu.memory_space<vmem>>, vector<8x16x4xbf16>
    %c0_55 = arith.constant 0 : index
    %c0_56 = arith.constant 0 : index
    %c32 = arith.constant 32 : index
    %23 = vector.load %arg10[%c0_55, %c0_56, %c32] : memref<8x16x36xbf16, #tpu.memory_space<vmem>>, vector<8x16x4xbf16>
    tpu.vector_store %arg10[%c0_55, %c0_56, %c32], %22 {strides = array<i32>} : memref<8x16x36xbf16, #tpu.memory_space<vmem>>, vector<8x16x4xbf16>,
    %c0_57 = arith.constant 0 : index
    %c0_58 = arith.constant 0 : index
    %c0_59 = arith.constant 0 : index
    %24 = vector.load %arg10[%c0_57, %c0_58, %c0_59] : memref<8x16x36xbf16, #tpu.memory_space<vmem>>, vector<8x16x36xbf16>
    %25 = vector.shape_cast %24 : vector<8x16x36xbf16> to vector<128x36xbf16>
    %c0_60 = arith.constant 0 : index
    %c0_61 = arith.constant 0 : index
    %26 = vector.load %arg4[%c0_60, %c0_61] : memref<36x512xbf16, #tpu.memory_space<vmem>>, vector<36x512xbf16>
    %cst = arith.constant dense<0.000000e+00> : vector<128x512xf32>
    %27 = tpu.matmul %25, %26, %cst {dimension_numbers = #tpu.dot_dimension_numbers<[1], [0], [0], [1], [0, 0, 1, 1], [], []>} : vector<128x36xbf16>, vector<36x512xbf16>, vector<128x512xf32> -> vector<128x512xf32>
    %c0_62 = arith.constant 0 : index
    %c0_63 = arith.constant 0 : index
    %28 = vector.load %arg5[%c0_62, %c0_63] : memref<1x512xf32, #tpu.memory_space<vmem>>, vector<1x512xf32>
    %29 = vector.broadcast %28 : vector<1x512xf32> to vector<128x512xf32>
    %30 = arith.addf %27, %29 : vector<128x512xf32>
    %cst_64 = arith.constant 0.000000e+00 : f32
    %31 = vector.broadcast %cst_64 : f32 to vector<128x512xf32>
    %32 = arith.maximumf %30, %31 : vector<128x512xf32>
    %33 = arith.truncf %32 : vector<128x512xf32> to vector<128x512xbf16>
    %c0_65 = arith.constant 0 : index
    %c0_66 = arith.constant 0 : index
    %34 = vector.load %arg6[%c0_65, %c0_66] : memref<512x128xbf16, #tpu.memory_space<vmem>>, vector<512x128xbf16>
    %cst_67 = arith.constant dense<0.000000e+00> : vector<128x128xf32>
    %35 = tpu.matmul %33, %34, %cst_67 {dimension_numbers = #tpu.dot_dimension_numbers<[1], [0], [0], [1], [0, 0, 1, 1], [], []>} : vector<128x512xbf16>, vector<512x128xbf16>, vector<128x128xf32> -> vector<128x128xf32>
    %c0_68 = arith.constant 0 : index
    %c0_69 = arith.constant 0 : index
    %36 = vector.load %arg7[%c0_68, %c0_69] : memref<1x128xf32, #tpu.memory_space<vmem>>, vector<1x128xf32>
    %37 = vector.broadcast %36 : vector<1x128xf32> to vector<128x128xf32>
    %38 = arith.addf %35, %37 : vector<128x128xf32>
    %39 = vector.extract_strided_slice %38 {offsets = [0, 0], sizes = [128, 9], strides = [1, 1]} : vector<128x128xf32> to vector<128x9xf32>
    %40 = vector.extract_strided_slice %38 {offsets = [0, 9], sizes = [128, 9], strides = [1, 1]} : vector<128x128xf32> to vector<128x9xf32>
    %41 = arith.maximumf %39, %40 : vector<128x9xf32>
    %42 = arith.subf %39, %41 : vector<128x9xf32>
    %43 = math.exp %42 : vector<128x9xf32>
    %44 = arith.subf %40, %41 : vector<128x9xf32>
    %45 = math.exp %44 : vector<128x9xf32>
    %46 = arith.addf %43, %45 : vector<128x9xf32>
    %47 = tpu.reciprocal %46 {approx = true} : vector<128x9xf32> -> vector<128x9xf32>
    %48 = arith.mulf %46, %47 : vector<128x9xf32>
    %cst_70 = arith.constant 2.000000e+00 : f32
    %49 = vector.broadcast %cst_70 : f32 to vector<128x9xf32>
    %50 = arith.subf %49, %48 : vector<128x9xf32>
    %51 = arith.mulf %47, %50 : vector<128x9xf32>
    %c0_71 = arith.constant 0 : index
    %c0_72 = arith.constant 0 : index
    %c0_73 = arith.constant 0 : index
    %52 = vector.load %arg8[%c0_71, %c0_72, %c0_73] : memref<1x128x128xf32, #tpu.memory_space<vmem>>, vector<1x128x128xf32>
    %53 = vector.shape_cast %52 : vector<1x128x128xf32> to vector<128x128xf32>
    %54 = vector.shape_cast %38 : vector<128x128xf32> to vector<1x128x128xf32>
    tpu.vector_store %arg8[%c0_71, %c0_72, %c0_73], %54 {strides = array<i32>} : memref<1x128x128xf32, #tpu.memory_space<vmem>>, vector<1x128x128xf32>,
    %55 = arith.mulf %43, %51 : vector<128x9xf32>
    %c0_74 = arith.constant 0 : index
    %c0_75 = arith.constant 0 : index
    %c54 = arith.constant 54 : index
    %56 = vector.load %arg8[%c0_74, %c0_75, %c54] : memref<1x128x128xf32, #tpu.memory_space<vmem>>, vector<1x128x9xf32>
    %57 = vector.shape_cast %56 : vector<1x128x9xf32> to vector<128x9xf32>
    %58 = vector.shape_cast %55 : vector<128x9xf32> to vector<1x128x9xf32>
    tpu.vector_store %arg8[%c0_74, %c0_75, %c54], %58 {strides = array<i32>} : memref<1x128x128xf32, #tpu.memory_space<vmem>>, vector<1x128x9xf32>,
    %59 = arith.mulf %45, %51 : vector<128x9xf32>
    %c0_76 = arith.constant 0 : index
    %c0_77 = arith.constant 0 : index
    %c63 = arith.constant 63 : index
    %60 = vector.load %arg8[%c0_76, %c0_77, %c63] : memref<1x128x128xf32, #tpu.memory_space<vmem>>, vector<1x128x9xf32>
    %61 = vector.shape_cast %60 : vector<1x128x9xf32> to vector<128x9xf32>
    %62 = vector.shape_cast %59 : vector<128x9xf32> to vector<1x128x9xf32>
    tpu.vector_store %arg8[%c0_76, %c0_77, %c63], %62 {strides = array<i32>} : memref<1x128x128xf32, #tpu.memory_space<vmem>>, vector<1x128x9xf32>,
    return
  }
  func.func @transform_0(%arg0: i32, %arg1: i32) -> (i32, i32, i32, i32) {
    %c0_i32 = arith.constant 0 : i32
    %c0_i32_0 = arith.constant 0 : i32
    %c0_i32_1 = arith.constant 0 : i32
    return %arg0, %arg1, %c0_i32, %c0_i32_0 : i32, i32, i32, i32
  }
  func.func @transform_1(%arg0: i32, %arg1: i32) -> (i32, i32, i32, i32) {
    %c1_i32 = arith.constant 1 : i32
    %0 = arith.addi %arg1, %c1_i32 : i32
    %c4_i32 = arith.constant 4 : i32
    %1 = arith.muli %0, %c4_i32 : i32
    %c0_i32 = arith.constant 0 : i32
    %c0_i32_0 = arith.constant 0 : i32
    %c0_i32_1 = arith.constant 0 : i32
    return %arg0, %1, %c0_i32, %c0_i32_0 : i32, i32, i32, i32
  }
  func.func @transform_2(%arg0: i32, %arg1: i32) -> (i32, i32) {
    %c0_i32 = arith.constant 0 : i32
    %c0_i32_0 = arith.constant 0 : i32
    %c0_i32_1 = arith.constant 0 : i32
    return %c0_i32, %c0_i32_0 : i32, i32
  }
  func.func @transform_3(%arg0: i32, %arg1: i32) -> (i32, i32) {
    %c0_i32 = arith.constant 0 : i32
    %c0_i32_0 = arith.constant 0 : i32
    %c0_i32_1 = arith.constant 0 : i32
    return %c0_i32, %c0_i32_0 : i32, i32
  }
  func.func @transform_4(%arg0: i32, %arg1: i32) -> (i32, i32) {
    %c0_i32 = arith.constant 0 : i32
    %c0_i32_0 = arith.constant 0 : i32
    %c0_i32_1 = arith.constant 0 : i32
    return %c0_i32, %c0_i32_0 : i32, i32
  }
  func.func @transform_5(%arg0: i32, %arg1: i32) -> (i32, i32) {
    %c0_i32 = arith.constant 0 : i32
    %c0_i32_0 = arith.constant 0 : i32
    %c0_i32_1 = arith.constant 0 : i32
    return %c0_i32, %c0_i32_0 : i32, i32
  }
  func.func @transform_6(%arg0: i32, %arg1: i32) -> (i32, i32, i32) {
    %c0_i32 = arith.constant 0 : i32
    %c0_i32_0 = arith.constant 0 : i32
    return %arg0, %arg1, %c0_i32 : i32, i32, i32
  }
}

</mosaic_0001>

<llo_original>
// kernel: rpn_forward.1
$region0: #{rpn_forward.1}
  #allocation0 [shape = 'u32[]', space=smem, size = 0x4, offset = 0x4, fixed_abs, tag = 'smem constant byte address 0x4 - core index']
  #allocation1 [shape = 'u32[72,128]{1,0:T(1,128)}', space=vmem, size = 0x9000, scoped, tag = 'internal scratch']
  #allocation2 [shape = 'bf16[10,18,4]{2,1,0:T(8,128)(2,1)}', space=vmem, size = 0xf000, scoped, tag = 'scratch operand']
  #allocation3 [shape = 'bf16[8,16,36]{2,1,0:T(8,128)(2,1)}', space=vmem, size = 0x8000, scoped, tag = 'scratch operand']
  %s0 = inlined_call_operand.vmem [shape: bf16[2,18,18,4], index: 0, kind: input, shape index: {}, may-alias: {0,1}]
  %s1 = inlined_call_operand.vmem [shape: bf16[2,18,18,4], index: 1, kind: input, shape index: {}, may-alias: {0,1}]
  %s2 = inlined_call_operand.hbm [shape: bf16[36,512], index: 2, kind: input, shape index: {}]
  %s3 = inlined_call_operand.hbm [shape: f32[1,512], index: 3, kind: input, shape index: {}]
  %s4 = inlined_call_operand.hbm [shape: bf16[512,128], index: 4, kind: input, shape index: {}]
  %s5 = inlined_call_operand.hbm [shape: f32[1,128], index: 5, kind: input, shape index: {}]
  %s6 = inlined_call_operand.vmem [shape: f32[2,256,128], index: 6, kind: output, shape index: {}]
  %s7 = sld [smem:[#allocation0]]
  $region73: #{rpn_forward.1} parent=0
    _
  %s9 = ssub.s32 1, %s7
  %s10 = scalar_select 0, %s9, %s7
  $region1: #{rpn_forward.1} parent=0
    #allocation4 [shape = 'u8[40960]{0}', space=vmem, size = 0xa000, scoped, tag = 'input window, operand 2, single buffered']
    #allocation5 [shape = 's32[2]{0}', space=sflag, size = 0x8, scoped, tag = 'scoped memory for rpn_forward.1']
    #allocation6 [shape = 'u8[2048]{0}', space=vmem, size = 0x800, scoped, tag = 'input window, operand 3, single buffered']
    #allocation7 [shape = 's32[1]{0}', space=sflag, size = 0x4, scoped, tag = 'scoped memory for rpn_forward.1']
    #allocation8 [shape = 'u8[131072]{0}', space=vmem, size = 0x20000, scoped, tag = 'input window, operand 4, single buffered']
    #allocation9 [shape = 'u8[512]{0}', space=vmem, size = 0x400, scoped, tag = 'input window, operand 5, single buffered']
    #allocation10 [shape = 's32[1]{0}', space=sflag, size = 0x4, scoped, tag = 'scoped memory for rpn_forward.1']
    %11 = vsyncpa [#allocation5], 0
    %12 = vsyncpa [#allocation7], 0
    %13 = vsyncpa [#allocation10], 0
    loop: start=0, step=1, limit=6
    $region2: #{rpn_forward.1} parent=1 // loop_pre_header
      _
    $region3: #{rpn_forward.1} parent=1 // loop_header
      %s15 = sphi 0, %s19
      %p16 = scmp.ge.s32.totalorder %s15, 6
      %s22 = sphi 0, %s34
      %s23 = sphi 0, %s30
      %s24 = sphi 0, %s22
      %s25 = sphi 0, %s23
      %s26 = sphi 0, %s24
      %s27 = sphi 0, %s25
      %s39 = sphi 0, %s41
      %s42 = sphi 0, %s39
      %s43 = sphi 0, %s42
      %s59 = sphi 0, %s43
      %s71 = sphi 0, %s73
      %s74 = sphi 0, %s71
      %s75 = sphi 0, %s74
      %s91 = sphi 0, %s75
      %s95 = sphi 0, %s95
      %s97 = sphi 0, %s95
      %s98 = sphi 0, %s97
      %s112 = sphi 0, %s98
      %s116 = sphi 0, %s116
      %s118 = sphi 0, %s116
      %s119 = sphi 0, %s118
      %s133 = sphi 0, %s119
      %s137 = sphi 0, %s137
      %s139 = sphi 0, %s137
      %s140 = sphi 0, %s139
      %s154 = sphi 0, %s140
      %s158 = sphi 0, %s158
      %s160 = sphi 0, %s158
      %s161 = sphi 0, %s160
      %s175 = sphi 0, %s161
      %s183 = sphi 0, %s185
      %s186 = sphi 0, %s183
      %s187 = sphi 0, %s186
      %s203 = sphi 0, %s187
    $region4: #{rpn_forward.1} parent=1 // loop_header_branch
      %18 = sbr.rel (%p16) target = $region8
    $region5: #{rpn_forward.1} parent=1 // loop_body
      %s20 = ssub.s32 %s15, 1
      %s21 = ssub.s32 %s15, 2
      %s28 = sadd.s32 1, %s23
      %p29 = scmp.ge.s32.totalorder %s28, 2
      %s30 = scalar_select %p29, 0, %s28
      %s31 = sadd.s32 1, %s22
      %s32 = scalar_select %p29, %s31, %s22
      %p33 = scmp.ge.s32.totalorder %s32, 2
      %s34 = scalar_select %p33, 0, %s32
      %s35 = ssub.s32 %s22, %s34
      %s36 = ssub.s32 %s23, %s30
      %s37 = sor.u32 %s35, %s36
      %p38 = scmp.eq.s32.totalorder %s37, 0
      %s40 = sadd.s32 %s39, 1
      %s41 = scalar_select %p38, %s39, %s40
      %p44 = pneg %p38
      %p45 = scmp.eq.s32.totalorder %s15, 3
      %p46 = por %p44, %p45
      %p47 = scmp.ne.s32.totalorder %s39, %s42
      %p48 = scmp.eq.s32.totalorder %s15, 0
      %p49 = por %p47, %p48
      %p50 = scmp.ne.s32.totalorder %s39, %s42
      %p51 = scmp.eq.s32.totalorder %s20, 3
      %p52 = por %p50, %p51
      %p53 = scmp.ne.s32.totalorder %s42, %s43
      %p54 = scmp.eq.s32.totalorder %s20, 0
      %p55 = por %p53, %p54
      %p56 = scmp.ne.s32.totalorder %s42, %s43
      %p57 = scmp.eq.s32.totalorder %s21, 3
      %p58 = por %p56, %p57
      %p60 = scmp.ne.s32.totalorder %s43, %s59
      %p61 = scmp.eq.s32.totalorder %s21, 0
      %p62 = por %p60, %p61
      %s63 = sadd.s32 %s23, 1
      %s64 = smul.u32 %s63, 4
      %s65 = sadd.s32 %s30, 1
      %s66 = smul.u32 %s65, 4
      %s67 = ssub.s32 %s22, %s34
      %s68 = ssub.s32 %s64, %s66
      %s69 = sor.u32 %s67, %s68
      %p70 = scmp.eq.s32.totalorder %s69, 0
      %s72 = sadd.s32 %s71, 1
      %s73 = scalar_select %p70, %s71, %s72
      %p76 = pneg %p70
      %p77 = scmp.eq.s32.totalorder %s15, 3
      %p78 = por %p76, %p77
      %p79 = scmp.ne.s32.totalorder %s71, %s74
      %p80 = scmp.eq.s32.totalorder %s15, 0
      %p81 = por %p79, %p80
      %p82 = scmp.ne.s32.totalorder %s71, %s74
      %p83 = scmp.eq.s32.totalorder %s20, 3
      %p84 = por %p82, %p83
      %p85 = scmp.ne.s32.totalorder %s74, %s75
      %p86 = scmp.eq.s32.totalorder %s20, 0
      %p87 = por %p85, %p86
      %p88 = scmp.ne.s32.totalorder %s74, %s75
      %p89 = scmp.eq.s32.totalorder %s21, 3
      %p90 = por %p88, %p89
      %p92 = scmp.ne.s32.totalorder %s75, %s91
      %p93 = scmp.eq.s32.totalorder %s21, 0
      %p94 = por %p92, %p93
      %s96 = sadd.s32 %s95, 1
      %p99 = scmp.eq.s32.totalorder %s15, 3
      %p100 = scmp.ne.s32.totalorder %s95, %s97
      %p101 = scmp.eq.s32.totalorder %s15, 0
      %p102 = por %p100, %p101
      %p103 = scmp.ne.s32.totalorder %s95, %s97
      %p104 = scmp.eq.s32.totalorder %s20, 3
      %p105 = por %p103, %p104
      %p106 = scmp.ne.s32.totalorder %s97, %s98
      %p107 = scmp.eq.s32.totalorder %s20, 0
      %p108 = por %p106, %p107
      %p109 = scmp.ne.s32.totalorder %s97, %s98
      %p110 = scmp.eq.s32.totalorder %s21, 3
      %p111 = por %p109, %p110
      %p113 = scmp.ne.s32.totalorder %s98, %s112
      %p114 = scmp.eq.s32.totalorder %s21, 0
      %p115 = por %p113, %p114
      %s117 = sadd.s32 %s116, 1
      %p120 = scmp.eq.s32.totalorder %s15, 3
      %p121 = scmp.ne.s32.totalorder %s116, %s118
      %p122 = scmp.eq.s32.totalorder %s15, 0
      %p123 = por %p121, %p122
      %p124 = scmp.ne.s32.totalorder %s116, %s118
      %p125 = scmp.eq.s32.totalorder %s20, 3
      %p126 = por %p124, %p125
      %p127 = scmp.ne.s32.totalorder %s118, %s119
      %p128 = scmp.eq.s32.totalorder %s20, 0
      %p129 = por %p127, %p128
      %p130 = scmp.ne.s32.totalorder %s118, %s119
      %p131 = scmp.eq.s32.totalorder %s21, 3
      %p132 = por %p130, %p131
      %p134 = scmp.ne.s32.totalorder %s119, %s133
      %p135 = scmp.eq.s32.totalorder %s21, 0
      %p136 = por %p134, %p135
      %s138 = sadd.s32 %s137, 1
      %p141 = scmp.eq.s32.totalorder %s15, 3
      %p142 = scmp.ne.s32.totalorder %s137, %s139
      %p143 = scmp.eq.s32.totalorder %s15, 0
      %p144 = por %p142, %p143
      %p145 = scmp.ne.s32.totalorder %s137, %s139
      %p146 = scmp.eq.s32.totalorder %s20, 3
      %p147 = por %p145, %p146
      %p148 = scmp.ne.s32.totalorder %s139, %s140
      %p149 = scmp.eq.s32.totalorder %s20, 0
      %p150 = por %p148, %p149
      %p151 = scmp.ne.s32.totalorder %s139, %s140
      %p152 = scmp.eq.s32.totalorder %s21, 3
      %p153 = por %p151, %p152
      %p155 = scmp.ne.s32.totalorder %s140, %s154
      %p156 = scmp.eq.s32.totalorder %s21, 0
      %p157 = por %p155, %p156
      %s159 = sadd.s32 %s158, 1
      %p162 = scmp.eq.s32.totalorder %s15, 3
      %p163 = scmp.ne.s32.totalorder %s158, %s160
      %p164 = scmp.eq.s32.totalorder %s15, 0
      %p165 = por %p163, %p164
      %p166 = scmp.ne.s32.totalorder %s158, %s160
      %p167 = scmp.eq.s32.totalorder %s20, 3
      %p168 = por %p166, %p167
      %p169 = scmp.ne.s32.totalorder %s160, %s161
      %p170 = scmp.eq.s32.totalorder %s20, 0
      %p171 = por %p169, %p170
      %p172 = scmp.ne.s32.totalorder %s160, %s161
      %p173 = scmp.eq.s32.totalorder %s21, 3
      %p174 = por %p172, %p173
      %p176 = scmp.ne.s32.totalorder %s161, %s175
      %p177 = scmp.eq.s32.totalorder %s21, 0
      %p178 = por %p176, %p177
      %s179 = ssub.s32 %s22, %s34
      %s180 = ssub.s32 %s23, %s30
      %s181 = sor.u32 %s179, %s180
      %p182 = scmp.eq.s32.totalorder %s181, 0
      %s184 = sadd.s32 %s183, 1
      %s185 = scalar_select %p182, %s183, %s184
      %p188 = pneg %p182
      %p189 = scmp.eq.s32.totalorder %s15, 3
      %p190 = por %p188, %p189
      %p191 = scmp.ne.s32.totalorder %s183, %s186
      %p192 = scmp.eq.s32.totalorder %s15, 0
      %p193 = por %p191, %p192
      %p194 = scmp.ne.s32.totalorder %s183, %s186
      %p195 = scmp.eq.s32.totalorder %s20, 3
      %p196 = por %p194, %p195
      %p197 = scmp.ne.s32.totalorder %s186, %s187
      %p198 = scmp.eq.s32.totalorder %s20, 0
      %p199 = por %p197, %p198
      %p200 = scmp.ne.s32.totalorder %s186, %s187
      %p201 = scmp.eq.s32.totalorder %s21, 3
      %p202 = por %p200, %p201
      %p204 = scmp.ne.s32.totalorder %s187, %s203
      %p205 = scmp.eq.s32.totalorder %s21, 0
      %p206 = por %p204, %p205
      %p207 = scmp.le.s32.totalorder 1, %s15
      %p208 = scmp.lt.s32.totalorder %s15, 5
      %p209 = pnand %p207, %p208
      %p210 = pneg %p209
      // Predicated region
      $region9: #{rpn_forward.1} parent=5 // pred_check
        _
      $region10: #{rpn_forward.1} parent=5 // pred_check_branch
        %212 = sbr.rel (%p209) target = $region12
      $region11: #{rpn_forward.1} parent=5 // pred_region
        %s213 = ssub.s32 %s15, 1
        // Predicated region
        $region13: #{rpn_forward.1} parent=11 // pred_check
          %p214 = pneg %p108
        $region14: #{rpn_forward.1} parent=11 // pred_check_branch
          %216 = sbr.rel (%p214) target = $region16
        $region15: #{rpn_forward.1} parent=11 // pred_region
          %218 = vsyncadd [#allocation5], 0
          %s219 = sshll.u32 %s2, 4
          %s220 = int_to_ptr.hbm [resolvable:$true] %s219
          %s221 = sshll.u32 [#allocation4], 4
          %s222 = int_to_ptr.vmem [resolvable:$true] %s221
          %227 = dma.hbm_to_vmem [thread:$0]  %s220, 1280, %s222, [#allocation5], 256, 256, 16
        $region16: #{rpn_forward.1} parent=11 // pred_fallthru
          _
        // Predicated region
        $region17: #{rpn_forward.1} parent=11 // pred_check
          %p228 = pneg %p129
        $region18: #{rpn_forward.1} parent=11 // pred_check_branch
          %230 = sbr.rel (%p228) target = $region20
        $region19: #{rpn_forward.1} parent=11 // pred_region
          %232 = vsyncadd [#allocation7], 0
          %s234 = sshll.u32 %s3, 4
          %s235 = int_to_ptr.hbm [resolvable:$true] %s234
          %s236 = sshll.u32 [#allocation6], 4
          %s237 = int_to_ptr.vmem [resolvable:$true] %s236
          %239 = dma.hbm_to_vmem [thread:$0]  %s235, 64, %s237, [#allocation7]
        $region20: #{rpn_forward.1} parent=11 // pred_fallthru
          _
        // Predicated region
        $region21: #{rpn_forward.1} parent=11 // pred_check
          %p240 = pneg %p150
        $region22: #{rpn_forward.1} parent=11 // pred_check_branch
          %242 = sbr.rel (%p240) target = $region24
        $region23: #{rpn_forward.1} parent=11 // pred_region
          %244 = vsyncadd [#allocation7], 0
          %s245 = sshll.u32 %s4, 4
          %s246 = int_to_ptr.hbm [resolvable:$true] %s245
          %s247 = sshll.u32 [#allocation8], 4
          %s248 = int_to_ptr.vmem [resolvable:$true] %s247
          %253 = dma.hbm_to_vmem [thread:$0]  %s246, 4096, %s248, [#allocation7], 64, 64, 4
        $region24: #{rpn_forward.1} parent=11 // pred_fallthru
          _
        // Predicated region
        $region25: #{rpn_forward.1} parent=11 // pred_check
          %p254 = pneg %p171
        $region26: #{rpn_forward.1} parent=11 // pred_check_branch
          %256 = sbr.rel (%p254) target = $region28
        $region27: #{rpn_forward.1} parent=11 // pred_region
          %258 = vsyncadd [#allocation10], 0
          %s260 = sshll.u32 %s5, 4
          %s261 = int_to_ptr.hbm [resolvable:$true] %s260
          %s262 = sshll.u32 [#allocation9], 4
          %s263 = int_to_ptr.vmem [resolvable:$true] %s262
          %265 = dma.hbm_to_vmem [thread:$0]  %s261, 16, %s263, [#allocation10]
        $region28: #{rpn_forward.1} parent=11 // pred_fallthru
          _
      $region12: #{rpn_forward.1} parent=5 // pred_fallthru
        _
      %p266 = scmp.lt.s32.totalorder %s15, 4
      // Predicated region
      $region29: #{rpn_forward.1} parent=5 // pred_check
        %p267 = pneg %p266
      $region30: #{rpn_forward.1} parent=5 // pred_check_branch
        %269 = sbr.rel (%p267) target = $region32
      $region31: #{rpn_forward.1} parent=5 // pred_region
        // Predicated region
        $region33: #{rpn_forward.1} parent=31 // pred_check
          %p270 = pneg %p49
        $region34: #{rpn_forward.1} parent=31 // pred_check_branch
          %272 = sbr.rel (%p270) target = $region36
        $region35: #{rpn_forward.1} parent=31 // pred_region
          %s273 = smul.u32 8, %s23
          %s274 = ssub.s32 18, %s273
          %p275 = scmp.lt.s32.totalorder %s274, 8
          %s276 = scalar_select %p275, %s274, 8
          %s277 = smul.u32 4, %s276
          %s278 = smul.u32 %s277, 3
          %p279 = scmp.lt.s32.totalorder %s22, 1
          %s280 = scalar_select %p279, %s22, 1
          %p281 = scmp.lt.s32.totalorder %s273, 17
          %s282 = scalar_select %p281, %s273, 17
          %s283 = smul.addr %s282, 3
          %s284 = smul.addr %s280, 54
          %s285 = sadd.s32 %s283, %s284
          %s286 = smul.addr %s285, 4
          %s287 = scalar_lea.vmem %s0, %s286
          %s288 = smul.u32 8, %s23
          %s289 = ssub.s32 18, %s288
          %p290 = scmp.lt.s32.totalorder %s289, 8
          %s291 = scalar_select %p290, %s289, 8
          %s292 = smul.u32 4, %s291
          %s293 = smul.u32 %s292, 3
        $region36: #{rpn_forward.1} parent=31 // pred_fallthru
          _
        // Predicated region
        $region37: #{rpn_forward.1} parent=31 // pred_check
          %p294 = pneg %p81
        $region38: #{rpn_forward.1} parent=31 // pred_check_branch
          %296 = sbr.rel (%p294) target = $region40
        $region39: #{rpn_forward.1} parent=31 // pred_region
          %s297 = sadd.s32 %s23, 1
          %s298 = smul.u32 %s297, 4
          %s299 = smul.u32 2, %s298
          %p300 = scmp.lt.s32.totalorder %s22, 1
          %s301 = scalar_select %p300, %s22, 1
          %p302 = scmp.lt.s32.totalorder %s299, 17
          %s303 = scalar_select %p302, %s299, 17
          %s304 = smul.addr %s303, 3
          %s305 = smul.addr %s301, 54
          %s306 = sadd.s32 %s304, %s305
          %s307 = smul.addr %s306, 4
          %s308 = scalar_lea.vmem %s1, %s307
          %s309 = sadd.s32 %s23, 1
          %s310 = smul.u32 %s309, 4
          %s311 = smul.u32 2, %s310
        $region40: #{rpn_forward.1} parent=31 // pred_fallthru
          _
      $region32: #{rpn_forward.1} parent=5 // pred_fallthru
        _
      %p312 = scmp.le.s32.totalorder 1, %s15
      %p313 = scmp.lt.s32.totalorder %s15, 5
      %p314 = pnand %p312, %p313
      %p315 = pneg %p314
      // Predicated region
      $region41: #{rpn_forward.1} parent=5 // pred_check
        _
      $region42: #{rpn_forward.1} parent=5 // pred_check_branch
        %317 = sbr.rel (%p314) target = $region44
      $region43: #{rpn_forward.1} parent=5 // pred_region
        %s318 = ssub.s32 %s15, 1
        // Predicated region
        $region45: #{rpn_forward.1} parent=43 // pred_check
          %p319 = pneg %p108
        $region46: #{rpn_forward.1} parent=43 // pred_check_branch
          %321 = sbr.rel (%p319) target = $region48
        $region47: #{rpn_forward.1} parent=43 // pred_region
          %323 = dma.done [#allocation5], 1280
        $region48: #{rpn_forward.1} parent=43 // pred_fallthru
          _
        // Predicated region
        $region49: #{rpn_forward.1} parent=43 // pred_check
          %p324 = pneg %p129
        $region50: #{rpn_forward.1} parent=43 // pred_check_branch
          %326 = sbr.rel (%p324) target = $region52
        $region51: #{rpn_forward.1} parent=43 // pred_region
          %328 = dma.done [#allocation7], 64
        $region52: #{rpn_forward.1} parent=43 // pred_fallthru
          _
        // Predicated region
        $region53: #{rpn_forward.1} parent=43 // pred_check
          %p329 = pneg %p150
        $region54: #{rpn_forward.1} parent=43 // pred_check_branch
          %331 = sbr.rel (%p329) target = $region56
        $region55: #{rpn_forward.1} parent=43 // pred_region
          %333 = dma.done [#allocation7], 4096
        $region56: #{rpn_forward.1} parent=43 // pred_fallthru
          _
        // Predicated region
        $region57: #{rpn_forward.1} parent=43 // pred_check
          %p334 = pneg %p171
        $region58: #{rpn_forward.1} parent=43 // pred_check_branch
          %336 = sbr.rel (%p334) target = $region60
        $region59: #{rpn_forward.1} parent=43 // pred_region
          %338 = dma.done [#allocation10], 16
        $region60: #{rpn_forward.1} parent=43 // pred_fallthru
          _
        %s339 = smul.u32 8, %s25
        %s340 = ssub.s32 18, %s339
        %p341 = scmp.lt.s32.totalorder %s340, 8
        %s342 = scalar_select %p341, %s340, 8
        %s343 = smul.u32 4, %s342
        %s344 = smul.u32 %s343, 3
        %p345 = scmp.lt.s32.totalorder %s24, 1
        %s346 = scalar_select %p345, %s24, 1
        %p347 = scmp.lt.s32.totalorder %s339, 17
        %s348 = scalar_select %p347, %s339, 17
        %s349 = smul.addr %s348, 3
        %s350 = smul.addr %s346, 54
        %s351 = sadd.s32 %s349, %s350
        %s352 = smul.addr %s351, 4
        %s353 = scalar_lea.vmem %s0, %s352
        %p354 = pneg %p55
        %p355 = pneg %p52
        %s356 = sadd.s32 %s25, 1
        %s357 = smul.u32 %s356, 4
        %s358 = smul.u32 2, %s357
        %p359 = scmp.lt.s32.totalorder %s24, 1
        %s360 = scalar_select %p359, %s24, 1
        %p361 = scmp.lt.s32.totalorder %s358, 17
        %s362 = scalar_select %p361, %s358, 17
        %s363 = smul.addr %s362, 3
        %s364 = smul.addr %s360, 54
        %s365 = sadd.s32 %s363, %s364
        %s366 = smul.addr %s365, 4
        %s367 = scalar_lea.vmem %s1, %s366
        %p368 = pneg %p87
        %p369 = pneg %p84
        %p370 = pneg %p108
        %p371 = pneg %p105
        %p372 = pneg %p129
        %p373 = pneg %p126
        %p374 = pneg %p150
        %p375 = pneg %p147
        %p376 = pneg %p171
        %p377 = pneg %p168
        %p378 = pneg %p199
        %p379 = pneg %p196
        %s380 = smul.u32 16, %s25
        %p381 = scmp.lt.s32.totalorder %s24, 1
        %s382 = scalar_select %p381, %s24, 1
        %p383 = scmp.lt.s32.totalorder %s380, 31
        %s384 = scalar_select %p383, %s380, 31
        %s385 = smul.addr %s382, 32
        %s386 = sadd.s32 %s384, %s385
        %s387 = smul.addr %s386, 8
        %s388 = scalar_lea.vmem %s6, %s387
        %s389 = smul.u32 8, %s25
        %s390 = ssub.s32 18, %s389
        %p391 = scmp.lt.s32.totalorder %s390, 8
        %s392 = scalar_select %p391, %s390, 8
        %s393 = smul.u32 4, %s392
        %s394 = smul.u32 %s393, 3
        %p395 = scmp.lt.s32.totalorder %s24, 1
        %s396 = scalar_select %p395, %s24, 1
        %p397 = scmp.lt.s32.totalorder %s389, 17
        %s398 = scalar_select %p397, %s389, 17
        %s399 = smul.addr %s398, 3
        %s400 = smul.addr %s396, 54
        %s401 = sadd.s32 %s399, %s400
        %s402 = smul.addr %s401, 4
        %s403 = scalar_lea.vmem %s0, %s402
        %s404 = smul.u32 8, %s25
        %s405 = ssub.s32 18, %s404
        %p406 = scmp.lt.s32.totalorder %s405, 8
        %s407 = scalar_select %p406, %s405, 8
        %s408 = smul.u32 4, %s407
        %s409 = smul.u32 %s408, 3
        %s410 = sadd.s32 %s25, 1
        %s411 = smul.u32 %s410, 4
        %s412 = smul.u32 2, %s411
        %p413 = scmp.lt.s32.totalorder %s24, 1
        %s414 = scalar_select %p413, %s24, 1
        %p415 = scmp.lt.s32.totalorder %s412, 17
        %s416 = scalar_select %p415, %s412, 17
        %s417 = smul.addr %s416, 3
        %s418 = smul.addr %s414, 54
        %s419 = sadd.s32 %s417, %s418
        %s420 = smul.addr %s419, 4
        %s421 = scalar_lea.vmem %s1, %s420
        %s422 = sadd.s32 %s25, 1
        %s423 = smul.u32 %s422, 4
        %s424 = smul.u32 2, %s423
        %s425 = smul.u32 16, %s25
        %p426 = scmp.lt.s32.totalorder %s24, 1
        %s427 = scalar_select %p426, %s24, 1
        %p428 = scmp.lt.s32.totalorder %s425, 31
        %s429 = scalar_select %p428, %s425, 31
        %s430 = smul.addr %s427, 32
        %s431 = sadd.s32 %s429, %s430
        %s432 = smul.addr %s431, 8
        %s433 = scalar_lea.vmem %s6, %s432
        %s434 = smul.u32 16, %s25
        %v436 = vld [vmem:[%s403] sm:$0xf]
        %v437 = vld [vmem:[%s403 + $0x4] sm:$0xf]
        %v438 = vld [vmem:[%s403 + $0x8] sm:$0x1]
        %v439 = vld [vmem:[%s403 + $0xc] sm:$0xf]
        %v440 = vld [vmem:[%s403 + $0x10] sm:$0xf]
        %v441 = vld [vmem:[%s403 + $0x14] sm:$0x1]
        %v442 = vld [vmem:[%s403 + $0x18] sm:$0xf]
        %v443 = vld [vmem:[%s403 + $0x1c] sm:$0xf]
        %v444 = vld [vmem:[%s403 + $0x20] sm:$0x1]
        %v445 = vld [vmem:[%s403 + $0x24] sm:$0xf]
        %v446 = vld [vmem:[%s403 + $0x28] sm:$0xf]
        %v447 = vld [vmem:[%s403 + $0x2c] sm:$0x1]
        %v448 = vld [vmem:[%s403 + $0x30] sm:$0xf]
        %v449 = vld [vmem:[%s403 + $0x34] sm:$0xf]
        %v450 = vld [vmem:[%s403 + $0x38] sm:$0x1]
        %v451 = vld [vmem:[%s403 + $0x3c] sm:$0xf]
        %v452 = vld [vmem:[%s403 + $0x40] sm:$0xf]
        %v453 = vld [vmem:[%s403 + $0x44] sm:$0x1]
        %v454 = vld [vmem:[%s403 + $0x48] sm:$0xf]
        %v455 = vld [vmem:[%s403 + $0x4c] sm:$0xf]
        %v456 = vld [vmem:[%s403 + $0x50] sm:$0x1]
        %v457 = vld [vmem:[%s403 + $0x54] sm:$0xf]
        %v458 = vld [vmem:[%s403 + $0x58] sm:$0xf]
        %v459 = vld [vmem:[%s403 + $0x5c] sm:$0x1]
        %vm460 = vcmask 27648
        %461 = vst.msk [vmem:[#allocation2] sm:$0xf] %vm460, %v436
        %462 = vst.msk [vmem:[#allocation2 + $0x4] sm:$0xf] %vm460, %v437
        %vm463 = vcmask 24576
        %464 = vst.msk [vmem:[#allocation2 + $0x8] sm:$0x1] %vm463, %v438
        %465 = vst.msk [vmem:[#allocation2 + $0xc] sm:$0xf] %vm460, %v439
        %466 = vst.msk [vmem:[#allocation2 + $0x10] sm:$0xf] %vm460, %v440
        %467 = vst.msk [vmem:[#allocation2 + $0x14] sm:$0x1] %vm463, %v441
        %468 = vst.msk [vmem:[#allocation2 + $0x18] sm:$0xf] %vm460, %v442
        %469 = vst.msk [vmem:[#allocation2 + $0x1c] sm:$0xf] %vm460, %v443
        %470 = vst.msk [vmem:[#allocation2 + $0x20] sm:$0x1] %vm463, %v444
        %471 = vst.msk [vmem:[#allocation2 + $0x24] sm:$0xf] %vm460, %v445
        %472 = vst.msk [vmem:[#allocation2 + $0x28] sm:$0xf] %vm460, %v446
        %473 = vst.msk [vmem:[#allocation2 + $0x2c] sm:$0x1] %vm463, %v447
        %474 = vst.msk [vmem:[#allocation2 + $0x30] sm:$0xf] %vm460, %v448
        %475 = vst.msk [vmem:[#allocation2 + $0x34] sm:$0xf] %vm460, %v449
        %476 = vst.msk [vmem:[#allocation2 + $0x38] sm:$0x1] %vm463, %v450
        %477 = vst.msk [vmem:[#allocation2 + $0x3c] sm:$0xf] %vm460, %v451
        %478 = vst.msk [vmem:[#allocation2 + $0x40] sm:$0xf] %vm460, %v452
        %479 = vst.msk [vmem:[#allocation2 + $0x44] sm:$0x1] %vm463, %v453
        %480 = vst.msk [vmem:[#allocation2 + $0x48] sm:$0xf] %vm460, %v454
        %481 = vst.msk [vmem:[#allocation2 + $0x4c] sm:$0xf] %vm460, %v455
        %482 = vst.msk [vmem:[#allocation2 + $0x50] sm:$0x1] %vm463, %v456
        %483 = vst.msk [vmem:[#allocation2 + $0x54] sm:$0xf] %vm460, %v457
        %484 = vst.msk [vmem:[#allocation2 + $0x58] sm:$0xf] %vm460, %v458
        %485 = vst.msk [vmem:[#allocation2 + $0x5c] sm:$0x1] %vm463, %v459
        %v486 = vld [vmem:[%s421] sm:$0xf]
        %v487 = vld [vmem:[%s421 + $0x4] sm:$0xf]
        %v488 = vld [vmem:[%s421 + $0x8] sm:$0x1]
        %v489 = vld [vmem:[%s421 + $0xc] sm:$0xf]
        %v490 = vld [vmem:[%s421 + $0x10] sm:$0xf]
        %v491 = vld [vmem:[%s421 + $0x14] sm:$0x1]
        %s492 = scalar_lea.vmem [#allocation2], 96
        %493 = vst.msk [vmem:[%s492] sm:$0xf] %vm460, %v486
        %494 = vst.msk [vmem:[%s492 + $0x4] sm:$0xf] %vm460, %v487
        %495 = vst.msk [vmem:[%s492 + $0x8] sm:$0x1] %vm463, %v488
        %496 = vst.msk [vmem:[%s492 + $0xc] sm:$0xf] %vm460, %v489
        %497 = vst.msk [vmem:[%s492 + $0x10] sm:$0xf] %vm460, %v490
        %498 = vst.msk [vmem:[%s492 + $0x14] sm:$0x1] %vm463, %v491
        %v499 = vld [vmem:[#allocation2] sm:$0xf]
        %v500 = vld [vmem:[#allocation2 + $0x4] sm:$0xf]
        %v501 = vld [vmem:[#allocation2 + $0xc] sm:$0xf]
        %v502 = vld [vmem:[#allocation2 + $0x10] sm:$0xf]
        %v503 = vld [vmem:[#allocation2 + $0x18] sm:$0xf]
        %v504 = vld [vmem:[#allocation2 + $0x1c] sm:$0xf]
        %v505 = vld [vmem:[#allocation2 + $0x24] sm:$0xf]
        %v506 = vld [vmem:[#allocation2 + $0x28] sm:$0xf]
        %v507 = vld [vmem:[#allocation2 + $0x30] sm:$0xf]
        %v508 = vld [vmem:[#allocation2 + $0x34] sm:$0xf]
        %v509 = vld [vmem:[#allocation2 + $0x3c] sm:$0xf]
        %v510 = vld [vmem:[#allocation2 + $0x40] sm:$0xf]
        %v511 = vld [vmem:[#allocation2 + $0x48] sm:$0xf]
        %v512 = vld [vmem:[#allocation2 + $0x4c] sm:$0xf]
        %v513 = vld [vmem:[#allocation2 + $0x54] sm:$0xf]
        %v514 = vld [vmem:[#allocation2 + $0x58] sm:$0xf]
        %515 = vst.msk [vmem:[#allocation3] sm:$0xf] %vm460, %v499
        %516 = vst.msk [vmem:[#allocation3 + $0x4] sm:$0xf] %vm460, %v500
        %517 = vst.msk [vmem:[#allocation3 + $0x8] sm:$0xf] %vm460, %v501
        %518 = vst.msk [vmem:[#allocation3 + $0xc] sm:$0xf] %vm460, %v502
        %519 = vst.msk [vmem:[#allocation3 + $0x10] sm:$0xf] %vm460, %v503
        %520 = vst.msk [vmem:[#allocation3 + $0x14] sm:$0xf] %vm460, %v504
        %521 = vst.msk [vmem:[#allocation3 + $0x18] sm:$0xf] %vm460, %v505
        %522 = vst.msk [vmem:[#allocation3 + $0x1c] sm:$0xf] %vm460, %v506
        %523 = vst.msk [vmem:[#allocation3 + $0x20] sm:$0xf] %vm460, %v507
        %524 = vst.msk [vmem:[#allocation3 + $0x24] sm:$0xf] %vm460, %v508
        %525 = vst.msk [vmem:[#allocation3 + $0x28] sm:$0xf] %vm460, %v509
        %526 = vst.msk [vmem:[#allocation3 + $0x2c] sm:$0xf] %vm460, %v510
        %527 = vst.msk [vmem:[#allocation3 + $0x30] sm:$0xf] %vm460, %v511
        %528 = vst.msk [vmem:[#allocation3 + $0x34] sm:$0xf] %vm460, %v512
        %529 = vst.msk [vmem:[#allocation3 + $0x38] sm:$0xf] %vm460, %v513
        %530 = vst.msk [vmem:[#allocation3 + $0x3c] sm:$0xf] %vm460, %v514
        %v531 = vld [vmem:[#allocation2] sm:$0xf]
        %v532 = vld [vmem:[#allocation2 + $0x4] sm:$0xf]
        %v533 = vld [vmem:[#allocation2 + $0x8] sm:$0x1]
        %v534 = vld [vmem:[#allocation2 + $0xc] sm:$0xf]
        %v535 = vld [vmem:[#allocation2 + $0x10] sm:$0xf]
        %v536 = vld [vmem:[#allocation2 + $0x14] sm:$0x1]
        %v537 = vld [vmem:[#allocation2 + $0x18] sm:$0xf]
        %v538 = vld [vmem:[#allocation2 + $0x1c] sm:$0xf]
        %v539 = vld [vmem:[#allocation2 + $0x20] sm:$0x1]
        %v540 = vld [vmem:[#allocation2 + $0x24] sm:$0xf]
        %v541 = vld [vmem:[#allocation2 + $0x28] sm:$0xf]
        %v542 = vld [vmem:[#allocation2 + $0x2c] sm:$0x1]
        %v543 = vld [vmem:[#allocation2 + $0x30] sm:$0xf]
        %v544 = vld [vmem:[#allocation2 + $0x34] sm:$0xf]
        %v545 = vld [vmem:[#allocation2 + $0x38] sm:$0x1]
        %v546 = vld [vmem:[#allocation2 + $0x3c] sm:$0xf]
        %v547 = vld [vmem:[#allocation2 + $0x40] sm:$0xf]
        %v548 = vld [vmem:[#allocation2 + $0x44] sm:$0x1]
        %v549 = vld [vmem:[#allocation2 + $0x48] sm:$0xf]
        %v550 = vld [vmem:[#allocation2 + $0x4c] sm:$0xf]
        %v551 = vld [vmem:[#allocation2 + $0x50] sm:$0x1]
        %v552 = vld [vmem:[#allocation2 + $0x54] sm:$0xf]
        %v553 = vld [vmem:[#allocation2 + $0x58] sm:$0xf]
        %v554 = vld [vmem:[#allocation2 + $0x5c] sm:$0x1]
        %vm555 = vsmask.f32 3328
        %vm556 = vsmask.f32 7440
        %vm557 = vmor %vm555, %vm556
        %v559 = vshrl.u32 %v531, 16
        %v561 = vrot.slane %v559, 4
        %v562 = vshll.u32 %v531, 16
        %v564 = vrot.slane %v562, 5
        %v565 = vor.u32 %v561, %v564
        %v566 = vrot.slane %v565, 4
        %v568 = vshll.u32 %v532, 16
        %v570 = vrot.slane %v568, 5
        %v571 = vsel %vm557, %v566, %v570
        %v572 = vshrl.u32 %v532, 16
        %v574 = vrot.slane %v572, 4
        %v575 = vor.u32 %v574, %v570
        %v576 = vrot.slane %v575, 4
        %v578 = vshll.u32 %v533, 16
        %v580 = vrot.slane %v578, 5
        %v581 = vsel %vm557, %v576, %v580
        %v583 = vshrl.u32 %v534, 16
        %v585 = vrot.slane %v583, 4
        %v586 = vshll.u32 %v534, 16
        %v588 = vrot.slane %v586, 5
        %v589 = vor.u32 %v585, %v588
        %v590 = vrot.slane %v589, 4
        %v592 = vshll.u32 %v535, 16
        %v594 = vrot.slane %v592, 5
        %v595 = vsel %vm557, %v590, %v594
        %v596 = vshrl.u32 %v535, 16
        %v598 = vrot.slane %v596, 4
        %v599 = vor.u32 %v598, %v594
        %v600 = vrot.slane %v599, 4
        %v602 = vshll.u32 %v536, 16
        %v604 = vrot.slane %v602, 5
        %v605 = vsel %vm557, %v600, %v604
        %v607 = vshrl.u32 %v537, 16
        %v609 = vrot.slane %v607, 4
        %v610 = vshll.u32 %v537, 16
        %v612 = vrot.slane %v610, 5
        %v613 = vor.u32 %v609, %v612
        %v614 = vrot.slane %v613, 4
        %v616 = vshll.u32 %v538, 16
        %v618 = vrot.slane %v616, 5
        %v619 = vsel %vm557, %v614, %v618
        %v620 = vshrl.u32 %v538, 16
        %v622 = vrot.slane %v620, 4
        %v623 = vor.u32 %v622, %v618
        %v624 = vrot.slane %v623, 4
        %v626 = vshll.u32 %v539, 16
        %v628 = vrot.slane %v626, 5
        %v629 = vsel %vm557, %v624, %v628
        %v631 = vshrl.u32 %v540, 16
        %v633 = vrot.slane %v631, 4
        %v634 = vshll.u32 %v540, 16
        %v636 = vrot.slane %v634, 5
        %v637 = vor.u32 %v633, %v636
        %v638 = vrot.slane %v637, 4
        %v640 = vshll.u32 %v541, 16
        %v642 = vrot.slane %v640, 5
        %v643 = vsel %vm557, %v638, %v642
        %v644 = vshrl.u32 %v541, 16
        %v646 = vrot.slane %v644, 4
        %v647 = vor.u32 %v646, %v642
        %v648 = vrot.slane %v647, 4
        %v650 = vshll.u32 %v542, 16
        %v652 = vrot.slane %v650, 5
        %v653 = vsel %vm557, %v648, %v652
        %v655 = vshrl.u32 %v543, 16
        %v657 = vrot.slane %v655, 4
        %v658 = vshll.u32 %v543, 16
        %v660 = vrot.slane %v658, 5
        %v661 = vor.u32 %v657, %v660
        %v662 = vrot.slane %v661, 4
        %v664 = vshll.u32 %v544, 16
        %v666 = vrot.slane %v664, 5
        %v667 = vsel %vm557, %v662, %v666
        %v668 = vshrl.u32 %v544, 16
        %v670 = vrot.slane %v668, 4
        %v671 = vor.u32 %v670, %v666
        %v672 = vrot.slane %v671, 4
        %v674 = vshll.u32 %v545, 16
        %v676 = vrot.slane %v674, 5
        %v677 = vsel %vm557, %v672, %v676
        %v679 = vshrl.u32 %v546, 16
        %v681 = vrot.slane %v679, 4
        %v682 = vshll.u32 %v546, 16
        %v684 = vrot.slane %v682, 5
        %v685 = vor.u32 %v681, %v684
        %v686 = vrot.slane %v685, 4
        %v688 = vshll.u32 %v547, 16
        %v690 = vrot.slane %v688, 5
        %v691 = vsel %vm557, %v686, %v690
        %v692 = vshrl.u32 %v547, 16
        %v694 = vrot.slane %v692, 4
        %v695 = vor.u32 %v694, %v690
        %v696 = vrot.slane %v695, 4
        %v698 = vshll.u32 %v548, 16
        %v700 = vrot.slane %v698, 5
        %v701 = vsel %vm557, %v696, %v700
        %v703 = vshrl.u32 %v549, 16
        %v705 = vrot.slane %v703, 4
        %v706 = vshll.u32 %v549, 16
        %v708 = vrot.slane %v706, 5
        %v709 = vor.u32 %v705, %v708
        %v710 = vrot.slane %v709, 4
        %v712 = vshll.u32 %v550, 16
        %v714 = vrot.slane %v712, 5
        %v715 = vsel %vm557, %v710, %v714
        %v716 = vshrl.u32 %v550, 16
        %v718 = vrot.slane %v716, 4
        %v719 = vor.u32 %v718, %v714
        %v720 = vrot.slane %v719, 4
        %v722 = vshll.u32 %v551, 16
        %v724 = vrot.slane %v722, 5
        %v725 = vsel %vm557, %v720, %v724
        %v727 = vshrl.u32 %v552, 16
        %v729 = vrot.slane %v727, 4
        %v730 = vshll.u32 %v552, 16
        %v732 = vrot.slane %v730, 5
        %v733 = vor.u32 %v729, %v732
        %v734 = vrot.slane %v733, 4
        %v736 = vshll.u32 %v553, 16
        %v738 = vrot.slane %v736, 5
        %v739 = vsel %vm557, %v734, %v738
        %v740 = vshrl.u32 %v553, 16
        %v742 = vrot.slane %v740, 4
        %v743 = vor.u32 %v742, %v738
        %v744 = vrot.slane %v743, 4
        %v746 = vshll.u32 %v554, 16
        %v748 = vrot.slane %v746, 5
        %v749 = vsel %vm557, %v744, %v748
        %750 = vrot.lane.b32.xlu0 %v571, 4
        %v751 = vpop.permute.xlu0 %750
        %752 = vrot.lane.b32.xlu0 %v581, 4
        %v753 = vpop.permute.xlu0 %752
        %754 = vrot.lane.b32.xlu0 %v595, 4
        %v755 = vpop.permute.xlu0 %754
        %756 = vrot.lane.b32.xlu0 %v605, 4
        %v757 = vpop.permute.xlu0 %756
        %758 = vrot.lane.b32.xlu0 %v619, 4
        %v759 = vpop.permute.xlu0 %758
        %760 = vrot.lane.b32.xlu0 %v629, 4
        %v761 = vpop.permute.xlu0 %760
        %762 = vrot.lane.b32.xlu0 %v643, 4
        %v763 = vpop.permute.xlu0 %762
        %764 = vrot.lane.b32.xlu0 %v653, 4
        %v765 = vpop.permute.xlu0 %764
        %766 = vrot.lane.b32.xlu0 %v667, 4
        %v767 = vpop.permute.xlu0 %766
        %768 = vrot.lane.b32.xlu0 %v677, 4
        %v769 = vpop.permute.xlu0 %768
        %770 = vrot.lane.b32.xlu0 %v691, 4
        %v771 = vpop.permute.xlu0 %770
        %772 = vrot.lane.b32.xlu0 %v701, 4
        %v773 = vpop.permute.xlu0 %772
        %774 = vrot.lane.b32.xlu0 %v715, 4
        %v775 = vpop.permute.xlu0 %774
        %776 = vrot.lane.b32.xlu0 %v725, 4
        %v777 = vpop.permute.xlu0 %776
        %778 = vrot.lane.b32.xlu0 %v739, 4
        %v779 = vpop.permute.xlu0 %778
        %780 = vrot.lane.b32.xlu0 %v749, 4
        %v781 = vpop.permute.xlu0 %780
        %vm798 = vcmask 60448
        %799 = vst.msk [vmem:[#allocation3] sm:$0xf] %vm798, %v751
        %800 = vst.msk [vmem:[#allocation3 + $0x4] sm:$0xf] %vm798, %v753
        %801 = vst.msk [vmem:[#allocation3 + $0x8] sm:$0xf] %vm798, %v755
        %802 = vst.msk [vmem:[#allocation3 + $0xc] sm:$0xf] %vm798, %v757
        %803 = vst.msk [vmem:[#allocation3 + $0x10] sm:$0xf] %vm798, %v759
        %804 = vst.msk [vmem:[#allocation3 + $0x14] sm:$0xf] %vm798, %v761
        %805 = vst.msk [vmem:[#allocation3 + $0x18] sm:$0xf] %vm798, %v763
        %806 = vst.msk [vmem:[#allocation3 + $0x1c] sm:$0xf] %vm798, %v765
        %807 = vst.msk [vmem:[#allocation3 + $0x20] sm:$0xf] %vm798, %v767
        %808 = vst.msk [vmem:[#allocation3 + $0x24] sm:$0xf] %vm798, %v769
        %809 = vst.msk [vmem:[#allocation3 + $0x28] sm:$0xf] %vm798, %v771
        %810 = vst.msk [vmem:[#allocation3 + $0x2c] sm:$0xf] %vm798, %v773
        %811 = vst.msk [vmem:[#allocation3 + $0x30] sm:$0xf] %vm798, %v775
        %812 = vst.msk [vmem:[#allocation3 + $0x34] sm:$0xf] %vm798, %v777
        %813 = vst.msk [vmem:[#allocation3 + $0x38] sm:$0xf] %vm798, %v779
        %814 = vst.msk [vmem:[#allocation3 + $0x3c] sm:$0xf] %vm798, %v781
        %v815 = vld [vmem:[#allocation2] sm:$0xe]
        %v816 = vld [vmem:[#allocation2 + $0x4] sm:$0xf]
        %v817 = vld [vmem:[#allocation2 + $0x8] sm:$0x1]
        %v818 = vld [vmem:[#allocation2 + $0xc] sm:$0xe]
        %v819 = vld [vmem:[#allocation2 + $0x10] sm:$0xf]
        %v820 = vld [vmem:[#allocation2 + $0x14] sm:$0x1]
        %v821 = vld [vmem:[#allocation2 + $0x18] sm:$0xe]
        %v822 = vld [vmem:[#allocation2 + $0x1c] sm:$0xf]
        %v823 = vld [vmem:[#allocation2 + $0x20] sm:$0x1]
        %v824 = vld [vmem:[#allocation2 + $0x24] sm:$0xe]
        %v825 = vld [vmem:[#allocation2 + $0x28] sm:$0xf]
        %v826 = vld [vmem:[#allocation2 + $0x2c] sm:$0x1]
        %v827 = vld [vmem:[#allocation2 + $0x30] sm:$0xe]
        %v828 = vld [vmem:[#allocation2 + $0x34] sm:$0xf]
        %v829 = vld [vmem:[#allocation2 + $0x38] sm:$0x1]
        %v830 = vld [vmem:[#allocation2 + $0x3c] sm:$0xe]
        %v831 = vld [vmem:[#allocation2 + $0x40] sm:$0xf]
        %v832 = vld [vmem:[#allocation2 + $0x44] sm:$0x1]
        %v833 = vld [vmem:[#allocation2 + $0x48] sm:$0xe]
        %v834 = vld [vmem:[#allocation2 + $0x4c] sm:$0xf]
        %v835 = vld [vmem:[#allocation2 + $0x50] sm:$0x1]
        %v836 = vld [vmem:[#allocation2 + $0x54] sm:$0xe]
        %v837 = vld [vmem:[#allocation2 + $0x58] sm:$0xf]
        %v838 = vld [vmem:[#allocation2 + $0x5c] sm:$0x1]
        %vm863 = vcmask 1042432
        %vm864 = vcmask 1046532
        %vm865 = vmor %vm863, %vm864
        %v866 = vrot.slane %v815, 5
        %v867 = vrot.slane %v866, 4
        %v868 = vrot.slane %v816, 5
        %v869 = vsel %vm865, %v867, %v868
        %v870 = vrot.slane %v868, 4
        %v871 = vrot.slane %v817, 5
        %v872 = vsel %vm865, %v870, %v871
        %v873 = vrot.slane %v818, 5
        %v874 = vrot.slane %v873, 4
        %v875 = vrot.slane %v819, 5
        %v876 = vsel %vm865, %v874, %v875
        %v877 = vrot.slane %v875, 4
        %v878 = vrot.slane %v820, 5
        %v879 = vsel %vm865, %v877, %v878
        %v880 = vrot.slane %v821, 5
        %v881 = vrot.slane %v880, 4
        %v882 = vrot.slane %v822, 5
        %v883 = vsel %vm865, %v881, %v882
        %v884 = vrot.slane %v882, 4
        %v885 = vrot.slane %v823, 5
        %v886 = vsel %vm865, %v884, %v885
        %v887 = vrot.slane %v824, 5
        %v888 = vrot.slane %v887, 4
        %v889 = vrot.slane %v825, 5
        %v890 = vsel %vm865, %v888, %v889
        %v891 = vrot.slane %v889, 4
        %v892 = vrot.slane %v826, 5
        %v893 = vsel %vm865, %v891, %v892
        %v894 = vrot.slane %v827, 5
        %v895 = vrot.slane %v894, 4
        %v896 = vrot.slane %v828, 5
        %v897 = vsel %vm865, %v895, %v896
        %v898 = vrot.slane %v896, 4
        %v899 = vrot.slane %v829, 5
        %v900 = vsel %vm865, %v898, %v899
        %v901 = vrot.slane %v830, 5
        %v902 = vrot.slane %v901, 4
        %v903 = vrot.slane %v831, 5
        %v904 = vsel %vm865, %v902, %v903
        %v905 = vrot.slane %v903, 4
        %v906 = vrot.slane %v832, 5
        %v907 = vsel %vm865, %v905, %v906
        %v908 = vrot.slane %v833, 5
        %v909 = vrot.slane %v908, 4
        %v910 = vrot.slane %v834, 5
        %v911 = vsel %vm865, %v909, %v910
        %v912 = vrot.slane %v910, 4
        %v913 = vrot.slane %v835, 5
        %v914 = vsel %vm865, %v912, %v913
        %v915 = vrot.slane %v836, 5
        %v916 = vrot.slane %v915, 4
        %v917 = vrot.slane %v837, 5
        %v918 = vsel %vm865, %v916, %v917
        %v919 = vrot.slane %v917, 4
        %v920 = vrot.slane %v838, 5
        %v921 = vsel %vm865, %v919, %v920
        %922 = vrot.lane.b32.xlu0 %v869, 8
        %v923 = vpop.permute.xlu0 %922
        %924 = vrot.lane.b32.xlu0 %v872, 8
        %v925 = vpop.permute.xlu0 %924
        %926 = vrot.lane.b32.xlu0 %v876, 8
        %v927 = vpop.permute.xlu0 %926
        %928 = vrot.lane.b32.xlu0 %v879, 8
        %v929 = vpop.permute.xlu0 %928
        %930 = vrot.lane.b32.xlu0 %v883, 8
        %v931 = vpop.permute.xlu0 %930
        %932 = vrot.lane.b32.xlu0 %v886, 8
        %v933 = vpop.permute.xlu0 %932
        %934 = vrot.lane.b32.xlu0 %v890, 8
        %v935 = vpop.permute.xlu0 %934
        %936 = vrot.lane.b32.xlu0 %v893, 8
        %v937 = vpop.permute.xlu0 %936
        %938 = vrot.lane.b32.xlu0 %v897, 8
        %v939 = vpop.permute.xlu0 %938
        %940 = vrot.lane.b32.xlu0 %v900, 8
        %v941 = vpop.permute.xlu0 %940
        %942 = vrot.lane.b32.xlu0 %v904, 8
        %v943 = vpop.permute.xlu0 %942
        %944 = vrot.lane.b32.xlu0 %v907, 8
        %v945 = vpop.permute.xlu0 %944
        %946 = vrot.lane.b32.xlu0 %v911, 8
        %v947 = vpop.permute.xlu0 %946
        %948 = vrot.lane.b32.xlu0 %v914, 8
        %v949 = vpop.permute.xlu0 %948
        %950 = vrot.lane.b32.xlu0 %v918, 8
        %v951 = vpop.permute.xlu0 %950
        %952 = vrot.lane.b32.xlu0 %v921, 8
        %v953 = vpop.permute.xlu0 %952
        %vm970 = vcmask 93248
        %971 = vst.msk [vmem:[#allocation3] sm:$0xf] %vm970, %v923
        %972 = vst.msk [vmem:[#allocation3 + $0x4] sm:$0xf] %vm970, %v925
        %973 = vst.msk [vmem:[#allocation3 + $0x8] sm:$0xf] %vm970, %v927
        %974 = vst.msk [vmem:[#allocation3 + $0xc] sm:$0xf] %vm970, %v929
        %975 = vst.msk [vmem:[#allocation3 + $0x10] sm:$0xf] %vm970, %v931
        %976 = vst.msk [vmem:[#allocation3 + $0x14] sm:$0xf] %vm970, %v933
        %977 = vst.msk [vmem:[#allocation3 + $0x18] sm:$0xf] %vm970, %v935
        %978 = vst.msk [vmem:[#allocation3 + $0x1c] sm:$0xf] %vm970, %v937
        %979 = vst.msk [vmem:[#allocation3 + $0x20] sm:$0xf] %vm970, %v939
        %980 = vst.msk [vmem:[#allocation3 + $0x24] sm:$0xf] %vm970, %v941
        %981 = vst.msk [vmem:[#allocation3 + $0x28] sm:$0xf] %vm970, %v943
        %982 = vst.msk [vmem:[#allocation3 + $0x2c] sm:$0xf] %vm970, %v945
        %983 = vst.msk [vmem:[#allocation3 + $0x30] sm:$0xf] %vm970, %v947
        %984 = vst.msk [vmem:[#allocation3 + $0x34] sm:$0xf] %vm970, %v949
        %985 = vst.msk [vmem:[#allocation3 + $0x38] sm:$0xf] %vm970, %v951
        %986 = vst.msk [vmem:[#allocation3 + $0x3c] sm:$0xf] %vm970, %v953
        %s987 = scalar_lea.vmem [#allocation2], 12
        %v988 = vld [vmem:[%s987] sm:$0xf]
        %v989 = vld [vmem:[%s987 + $0x4] sm:$0xf]
        %v990 = vld [vmem:[%s987 + $0xc] sm:$0xf]
        %v991 = vld [vmem:[%s987 + $0x10] sm:$0xf]
        %v992 = vld [vmem:[%s987 + $0x18] sm:$0xf]
        %v993 = vld [vmem:[%s987 + $0x1c] sm:$0xf]
        %v994 = vld [vmem:[%s987 + $0x24] sm:$0xf]
        %v995 = vld [vmem:[%s987 + $0x28] sm:$0xf]
        %v996 = vld [vmem:[%s987 + $0x30] sm:$0xf]
        %v997 = vld [vmem:[%s987 + $0x34] sm:$0xf]
        %v998 = vld [vmem:[%s987 + $0x3c] sm:$0xf]
        %v999 = vld [vmem:[%s987 + $0x40] sm:$0xf]
        %v1000 = vld [vmem:[%s987 + $0x48] sm:$0xf]
        %v1001 = vld [vmem:[%s987 + $0x4c] sm:$0xf]
        %v1002 = vld [vmem:[%s987 + $0x54] sm:$0xf]
        %v1003 = vld [vmem:[%s987 + $0x58] sm:$0xf]
        %1020 = vrot.lane.b32.xlu0 %v988, 12
        %v1021 = vpop.permute.xlu0 %1020
        %1022 = vrot.lane.b32.xlu0 %v989, 12
        %v1023 = vpop.permute.xlu0 %1022
        %1024 = vrot.lane.b32.xlu0 %v990, 12
        %v1025 = vpop.permute.xlu0 %1024
        %1026 = vrot.lane.b32.xlu0 %v991, 12
        %v1027 = vpop.permute.xlu0 %1026
        %1028 = vrot.lane.b32.xlu0 %v992, 12
        %v1029 = vpop.permute.xlu0 %1028
        %1030 = vrot.lane.b32.xlu0 %v993, 12
        %v1031 = vpop.permute.xlu0 %1030
        %1032 = vrot.lane.b32.xlu0 %v994, 12
        %v1033 = vpop.permute.xlu0 %1032
        %1034 = vrot.lane.b32.xlu0 %v995, 12
        %v1035 = vpop.permute.xlu0 %1034
        %1036 = vrot.lane.b32.xlu0 %v996, 12
        %v1037 = vpop.permute.xlu0 %1036
        %1038 = vrot.lane.b32.xlu0 %v997, 12
        %v1039 = vpop.permute.xlu0 %1038
        %1040 = vrot.lane.b32.xlu0 %v998, 12
        %v1041 = vpop.permute.xlu0 %1040
        %1042 = vrot.lane.b32.xlu0 %v999, 12
        %v1043 = vpop.permute.xlu0 %1042
        %1044 = vrot.lane.b32.xlu0 %v1000, 12
        %v1045 = vpop.permute.xlu0 %1044
        %1046 = vrot.lane.b32.xlu0 %v1001, 12
        %v1047 = vpop.permute.xlu0 %1046
        %1048 = vrot.lane.b32.xlu0 %v1002, 12
        %v1049 = vpop.permute.xlu0 %1048
        %1050 = vrot.lane.b32.xlu0 %v1003, 12
        %v1051 = vpop.permute.xlu0 %1050
        %vm1068 = vcmask 126048
        %1069 = vst.msk [vmem:[#allocation3] sm:$0xf] %vm1068, %v1021
        %1070 = vst.msk [vmem:[#allocation3 + $0x4] sm:$0xf] %vm1068, %v1023
        %1071 = vst.msk [vmem:[#allocation3 + $0x8] sm:$0xf] %vm1068, %v1025
        %1072 = vst.msk [vmem:[#allocation3 + $0xc] sm:$0xf] %vm1068, %v1027
        %1073 = vst.msk [vmem:[#allocation3 + $0x10] sm:$0xf] %vm1068, %v1029
        %1074 = vst.msk [vmem:[#allocation3 + $0x14] sm:$0xf] %vm1068, %v1031
        %1075 = vst.msk [vmem:[#allocation3 + $0x18] sm:$0xf] %vm1068, %v1033
        %1076 = vst.msk [vmem:[#allocation3 + $0x1c] sm:$0xf] %vm1068, %v1035
        %1077 = vst.msk [vmem:[#allocation3 + $0x20] sm:$0xf] %vm1068, %v1037
        %1078 = vst.msk [vmem:[#allocation3 + $0x24] sm:$0xf] %vm1068, %v1039
        %1079 = vst.msk [vmem:[#allocation3 + $0x28] sm:$0xf] %vm1068, %v1041
        %1080 = vst.msk [vmem:[#allocation3 + $0x2c] sm:$0xf] %vm1068, %v1043
        %1081 = vst.msk [vmem:[#allocation3 + $0x30] sm:$0xf] %vm1068, %v1045
        %1082 = vst.msk [vmem:[#allocation3 + $0x34] sm:$0xf] %vm1068, %v1047
        %1083 = vst.msk [vmem:[#allocation3 + $0x38] sm:$0xf] %vm1068, %v1049
        %1084 = vst.msk [vmem:[#allocation3 + $0x3c] sm:$0xf] %vm1068, %v1051
        %v1085 = vld [vmem:[%s987] sm:$0xf]
        %v1086 = vld [vmem:[%s987 + $0x4] sm:$0xf]
        %v1087 = vld [vmem:[%s987 + $0x8] sm:$0x1]
        %v1088 = vld [vmem:[%s987 + $0xc] sm:$0xf]
        %v1089 = vld [vmem:[%s987 + $0x10] sm:$0xf]
        %v1090 = vld [vmem:[%s987 + $0x14] sm:$0x1]
        %v1091 = vld [vmem:[%s987 + $0x18] sm:$0xf]
        %v1092 = vld [vmem:[%s987 + $0x1c] sm:$0xf]
        %v1093 = vld [vmem:[%s987 + $0x20] sm:$0x1]
        %v1094 = vld [vmem:[%s987 + $0x24] sm:$0xf]
        %v1095 = vld [vmem:[%s987 + $0x28] sm:$0xf]
        %v1096 = vld [vmem:[%s987 + $0x2c] sm:$0x1]
        %v1097 = vld [vmem:[%s987 + $0x30] sm:$0xf]
        %v1098 = vld [vmem:[%s987 + $0x34] sm:$0xf]
        %v1099 = vld [vmem:[%s987 + $0x38] sm:$0x1]
        %v1100 = vld [vmem:[%s987 + $0x3c] sm:$0xf]
        %v1101 = vld [vmem:[%s987 + $0x40] sm:$0xf]
        %v1102 = vld [vmem:[%s987 + $0x44] sm:$0x1]
        %v1103 = vld [vmem:[%s987 + $0x48] sm:$0xf]
        %v1104 = vld [vmem:[%s987 + $0x4c] sm:$0xf]
        %v1105 = vld [vmem:[%s987 + $0x50] sm:$0x1]
        %v1106 = vld [vmem:[%s987 + $0x54] sm:$0xf]
        %v1107 = vld [vmem:[%s987 + $0x58] sm:$0xf]
        %v1108 = vld [vmem:[%s987 + $0x5c] sm:$0x1]
        %v1110 = vshrl.u32 %v1085, 16
        %v1112 = vrot.slane %v1110, 4
        %v1113 = vshll.u32 %v1085, 16
        %v1115 = vrot.slane %v1113, 5
        %v1116 = vor.u32 %v1112, %v1115
        %v1117 = vrot.slane %v1116, 4
        %v1119 = vshll.u32 %v1086, 16
        %v1121 = vrot.slane %v1119, 5
        %v1122 = vsel %vm557, %v1117, %v1121
        %v1123 = vshrl.u32 %v1086, 16
        %v1125 = vrot.slane %v1123, 4
        %v1126 = vor.u32 %v1125, %v1121
        %v1127 = vrot.slane %v1126, 4
        %v1129 = vshll.u32 %v1087, 16
        %v1131 = vrot.slane %v1129, 5
        %v1132 = vsel %vm557, %v1127, %v1131
        %v1134 = vshrl.u32 %v1088, 16
        %v1136 = vrot.slane %v1134, 4
        %v1137 = vshll.u32 %v1088, 16
        %v1139 = vrot.slane %v1137, 5
        %v1140 = vor.u32 %v1136, %v1139
        %v1141 = vrot.slane %v1140, 4
        %v1143 = vshll.u32 %v1089, 16
        %v1145 = vrot.slane %v1143, 5
        %v1146 = vsel %vm557, %v1141, %v1145
        %v1147 = vshrl.u32 %v1089, 16
        %v1149 = vrot.slane %v1147, 4
        %v1150 = vor.u32 %v1149, %v1145
        %v1151 = vrot.slane %v1150, 4
        %v1153 = vshll.u32 %v1090, 16
        %v1155 = vrot.slane %v1153, 5
        %v1156 = vsel %vm557, %v1151, %v1155
        %v1158 = vshrl.u32 %v1091, 16
        %v1160 = vrot.slane %v1158, 4
        %v1161 = vshll.u32 %v1091, 16
        %v1163 = vrot.slane %v1161, 5
        %v1164 = vor.u32 %v1160, %v1163
        %v1165 = vrot.slane %v1164, 4
        %v1167 = vshll.u32 %v1092, 16
        %v1169 = vrot.slane %v1167, 5
        %v1170 = vsel %vm557, %v1165, %v1169
        %v1171 = vshrl.u32 %v1092, 16
        %v1173 = vrot.slane %v1171, 4
        %v1174 = vor.u32 %v1173, %v1169
        %v1175 = vrot.slane %v1174, 4
        %v1177 = vshll.u32 %v1093, 16
        %v1179 = vrot.slane %v1177, 5
        %v1180 = vsel %vm557, %v1175, %v1179
        %v1182 = vshrl.u32 %v1094, 16
        %v1184 = vrot.slane %v1182, 4
        %v1185 = vshll.u32 %v1094, 16
        %v1187 = vrot.slane %v1185, 5
        %v1188 = vor.u32 %v1184, %v1187
        %v1189 = vrot.slane %v1188, 4
        %v1191 = vshll.u32 %v1095, 16
        %v1193 = vrot.slane %v1191, 5
        %v1194 = vsel %vm557, %v1189, %v1193
        %v1195 = vshrl.u32 %v1095, 16
        %v1197 = vrot.slane %v1195, 4
        %v1198 = vor.u32 %v1197, %v1193
        %v1199 = vrot.slane %v1198, 4
        %v1201 = vshll.u32 %v1096, 16
        %v1203 = vrot.slane %v1201, 5
        %v1204 = vsel %vm557, %v1199, %v1203
        %v1206 = vshrl.u32 %v1097, 16
        %v1208 = vrot.slane %v1206, 4
        %v1209 = vshll.u32 %v1097, 16
        %v1211 = vrot.slane %v1209, 5
        %v1212 = vor.u32 %v1208, %v1211
        %v1213 = vrot.slane %v1212, 4
        %v1215 = vshll.u32 %v1098, 16
        %v1217 = vrot.slane %v1215, 5
        %v1218 = vsel %vm557, %v1213, %v1217
        %v1219 = vshrl.u32 %v1098, 16
        %v1221 = vrot.slane %v1219, 4
        %v1222 = vor.u32 %v1221, %v1217
        %v1223 = vrot.slane %v1222, 4
        %v1225 = vshll.u32 %v1099, 16
        %v1227 = vrot.slane %v1225, 5
        %v1228 = vsel %vm557, %v1223, %v1227
        %v1230 = vshrl.u32 %v1100, 16
        %v1232 = vrot.slane %v1230, 4
        %v1233 = vshll.u32 %v1100, 16
        %v1235 = vrot.slane %v1233, 5
        %v1236 = vor.u32 %v1232, %v1235
        %v1237 = vrot.slane %v1236, 4
        %v1239 = vshll.u32 %v1101, 16
        %v1241 = vrot.slane %v1239, 5
        %v1242 = vsel %vm557, %v1237, %v1241
        %v1243 = vshrl.u32 %v1101, 16
        %v1245 = vrot.slane %v1243, 4
        %v1246 = vor.u32 %v1245, %v1241
        %v1247 = vrot.slane %v1246, 4
        %v1249 = vshll.u32 %v1102, 16
        %v1251 = vrot.slane %v1249, 5
        %v1252 = vsel %vm557, %v1247, %v1251
        %v1254 = vshrl.u32 %v1103, 16
        %v1256 = vrot.slane %v1254, 4
        %v1257 = vshll.u32 %v1103, 16
        %v1259 = vrot.slane %v1257, 5
        %v1260 = vor.u32 %v1256, %v1259
        %v1261 = vrot.slane %v1260, 4
        %v1263 = vshll.u32 %v1104, 16
        %v1265 = vrot.slane %v1263, 5
        %v1266 = vsel %vm557, %v1261, %v1265
        %v1267 = vshrl.u32 %v1104, 16
        %v1269 = vrot.slane %v1267, 4
        %v1270 = vor.u32 %v1269, %v1265
        %v1271 = vrot.slane %v1270, 4
        %v1273 = vshll.u32 %v1105, 16
        %v1275 = vrot.slane %v1273, 5
        %v1276 = vsel %vm557, %v1271, %v1275
        %v1278 = vshrl.u32 %v1106, 16
        %v1280 = vrot.slane %v1278, 4
        %v1281 = vshll.u32 %v1106, 16
        %v1283 = vrot.slane %v1281, 5
        %v1284 = vor.u32 %v1280, %v1283
        %v1285 = vrot.slane %v1284, 4
        %v1287 = vshll.u32 %v1107, 16
        %v1289 = vrot.slane %v1287, 5
        %v1290 = vsel %vm557, %v1285, %v1289
        %v1291 = vshrl.u32 %v1107, 16
        %v1293 = vrot.slane %v1291, 4
        %v1294 = vor.u32 %v1293, %v1289
        %v1295 = vrot.slane %v1294, 4
        %v1297 = vshll.u32 %v1108, 16
        %v1299 = vrot.slane %v1297, 5
        %v1300 = vsel %vm557, %v1295, %v1299
        %1301 = vrot.lane.b32.xlu0 %v1122, 16
        %v1302 = vpop.permute.xlu0 %1301
        %1303 = vrot.lane.b32.xlu0 %v1132, 16
        %v1304 = vpop.permute.xlu0 %1303
        %1305 = vrot.lane.b32.xlu0 %v1146, 16
        %v1306 = vpop.permute.xlu0 %1305
        %1307 = vrot.lane.b32.xlu0 %v1156, 16
        %v1308 = vpop.permute.xlu0 %1307
        %1309 = vrot.lane.b32.xlu0 %v1170, 16
        %v1310 = vpop.permute.xlu0 %1309
        %1311 = vrot.lane.b32.xlu0 %v1180, 16
        %v1312 = vpop.permute.xlu0 %1311
        %1313 = vrot.lane.b32.xlu0 %v1194, 16
        %v1314 = vpop.permute.xlu0 %1313
        %1315 = vrot.lane.b32.xlu0 %v1204, 16
        %v1316 = vpop.permute.xlu0 %1315
        %1317 = vrot.lane.b32.xlu0 %v1218, 16
        %v1318 = vpop.permute.xlu0 %1317
        %1319 = vrot.lane.b32.xlu0 %v1228, 16
        %v1320 = vpop.permute.xlu0 %1319
        %1321 = vrot.lane.b32.xlu0 %v1242, 16
        %v1322 = vpop.permute.xlu0 %1321
        %1323 = vrot.lane.b32.xlu0 %v1252, 16
        %v1324 = vpop.permute.xlu0 %1323
        %1325 = vrot.lane.b32.xlu0 %v1266, 16
        %v1326 = vpop.permute.xlu0 %1325
        %1327 = vrot.lane.b32.xlu0 %v1276, 16
        %v1328 = vpop.permute.xlu0 %1327
        %1329 = vrot.lane.b32.xlu0 %v1290, 16
        %v1330 = vpop.permute.xlu0 %1329
        %1331 = vrot.lane.b32.xlu0 %v1300, 16
        %v1332 = vpop.permute.xlu0 %1331
        %vm1349 = vcmask 158848
        %1350 = vst.msk [vmem:[#allocation3] sm:$0xf] %vm1349, %v1302
        %1351 = vst.msk [vmem:[#allocation3 + $0x4] sm:$0xf] %vm1349, %v1304
        %1352 = vst.msk [vmem:[#allocation3 + $0x8] sm:$0xf] %vm1349, %v1306
        %1353 = vst.msk [vmem:[#allocation3 + $0xc] sm:$0xf] %vm1349, %v1308
        %1354 = vst.msk [vmem:[#allocation3 + $0x10] sm:$0xf] %vm1349, %v1310
        %1355 = vst.msk [vmem:[#allocation3 + $0x14] sm:$0xf] %vm1349, %v1312
        %1356 = vst.msk [vmem:[#allocation3 + $0x18] sm:$0xf] %vm1349, %v1314
        %1357 = vst.msk [vmem:[#allocation3 + $0x1c] sm:$0xf] %vm1349, %v1316
        %1358 = vst.msk [vmem:[#allocation3 + $0x20] sm:$0xf] %vm1349, %v1318
        %1359 = vst.msk [vmem:[#allocation3 + $0x24] sm:$0xf] %vm1349, %v1320
        %1360 = vst.msk [vmem:[#allocation3 + $0x28] sm:$0xf] %vm1349, %v1322
        %1361 = vst.msk [vmem:[#allocation3 + $0x2c] sm:$0xf] %vm1349, %v1324
        %1362 = vst.msk [vmem:[#allocation3 + $0x30] sm:$0xf] %vm1349, %v1326
        %1363 = vst.msk [vmem:[#allocation3 + $0x34] sm:$0xf] %vm1349, %v1328
        %1364 = vst.msk [vmem:[#allocation3 + $0x38] sm:$0xf] %vm1349, %v1330
        %1365 = vst.msk [vmem:[#allocation3 + $0x3c] sm:$0xf] %vm1349, %v1332
        %v1366 = vld [vmem:[%s987] sm:$0xe]
        %v1367 = vld [vmem:[%s987 + $0x4] sm:$0xf]
        %v1368 = vld [vmem:[%s987 + $0x8] sm:$0x1]
        %v1369 = vld [vmem:[%s987 + $0xc] sm:$0xe]
        %v1370 = vld [vmem:[%s987 + $0x10] sm:$0xf]
        %v1371 = vld [vmem:[%s987 + $0x14] sm:$0x1]
        %v1372 = vld [vmem:[%s987 + $0x18] sm:$0xe]
        %v1373 = vld [vmem:[%s987 + $0x1c] sm:$0xf]
        %v1374 = vld [vmem:[%s987 + $0x20] sm:$0x1]
        %v1375 = vld [vmem:[%s987 + $0x24] sm:$0xe]
        %v1376 = vld [vmem:[%s987 + $0x28] sm:$0xf]
        %v1377 = vld [vmem:[%s987 + $0x2c] sm:$0x1]
        %v1378 = vld [vmem:[%s987 + $0x30] sm:$0xe]
        %v1379 = vld [vmem:[%s987 + $0x34] sm:$0xf]
        %v1380 = vld [vmem:[%s987 + $0x38] sm:$0x1]
        %v1381 = vld [vmem:[%s987 + $0x3c] sm:$0xe]
        %v1382 = vld [vmem:[%s987 + $0x40] sm:$0xf]
        %v1383 = vld [vmem:[%s987 + $0x44] sm:$0x1]
        %v1384 = vld [vmem:[%s987 + $0x48] sm:$0xe]
        %v1385 = vld [vmem:[%s987 + $0x4c] sm:$0xf]
        %v1386 = vld [vmem:[%s987 + $0x50] sm:$0x1]
        %v1387 = vld [vmem:[%s987 + $0x54] sm:$0xe]
        %v1388 = vld [vmem:[%s987 + $0x58] sm:$0xf]
        %v1389 = vld [vmem:[%s987 + $0x5c] sm:$0x1]
        %v1414 = vrot.slane %v1366, 5
        %v1415 = vrot.slane %v1414, 4
        %v1416 = vrot.slane %v1367, 5
        %v1417 = vsel %vm865, %v1415, %v1416
        %v1418 = vrot.slane %v1416, 4
        %v1419 = vrot.slane %v1368, 5
        %v1420 = vsel %vm865, %v1418, %v1419
        %v1421 = vrot.slane %v1369, 5
        %v1422 = vrot.slane %v1421, 4
        %v1423 = vrot.slane %v1370, 5
        %v1424 = vsel %vm865, %v1422, %v1423
        %v1425 = vrot.slane %v1423, 4
        %v1426 = vrot.slane %v1371, 5
        %v1427 = vsel %vm865, %v1425, %v1426
        %v1428 = vrot.slane %v1372, 5
        %v1429 = vrot.slane %v1428, 4
        %v1430 = vrot.slane %v1373, 5
        %v1431 = vsel %vm865, %v1429, %v1430
        %v1432 = vrot.slane %v1430, 4
        %v1433 = vrot.slane %v1374, 5
        %v1434 = vsel %vm865, %v1432, %v1433
        %v1435 = vrot.slane %v1375, 5
        %v1436 = vrot.slane %v1435, 4
        %v1437 = vrot.slane %v1376, 5
        %v1438 = vsel %vm865, %v1436, %v1437
        %v1439 = vrot.slane %v1437, 4
        %v1440 = vrot.slane %v1377, 5
        %v1441 = vsel %vm865, %v1439, %v1440
        %v1442 = vrot.slane %v1378, 5
        %v1443 = vrot.slane %v1442, 4
        %v1444 = vrot.slane %v1379, 5
        %v1445 = vsel %vm865, %v1443, %v1444
        %v1446 = vrot.slane %v1444, 4
        %v1447 = vrot.slane %v1380, 5
        %v1448 = vsel %vm865, %v1446, %v1447
        %v1449 = vrot.slane %v1381, 5
        %v1450 = vrot.slane %v1449, 4
        %v1451 = vrot.slane %v1382, 5
        %v1452 = vsel %vm865, %v1450, %v1451
        %v1453 = vrot.slane %v1451, 4
        %v1454 = vrot.slane %v1383, 5
        %v1455 = vsel %vm865, %v1453, %v1454
        %v1456 = vrot.slane %v1384, 5
        %v1457 = vrot.slane %v1456, 4
        %v1458 = vrot.slane %v1385, 5
        %v1459 = vsel %vm865, %v1457, %v1458
        %v1460 = vrot.slane %v1458, 4
        %v1461 = vrot.slane %v1386, 5
        %v1462 = vsel %vm865, %v1460, %v1461
        %v1463 = vrot.slane %v1387, 5
        %v1464 = vrot.slane %v1463, 4
        %v1465 = vrot.slane %v1388, 5
        %v1466 = vsel %vm865, %v1464, %v1465
        %v1467 = vrot.slane %v1465, 4
        %v1468 = vrot.slane %v1389, 5
        %v1469 = vsel %vm865, %v1467, %v1468
        %1470 = vrot.lane.b32.xlu0 %v1417, 20
        %v1471 = vpop.permute.xlu0 %1470
        %1472 = vrot.lane.b32.xlu0 %v1420, 20
        %v1473 = vpop.permute.xlu0 %1472
        %1474 = vrot.lane.b32.xlu0 %v1424, 20
        %v1475 = vpop.permute.xlu0 %1474
        %1476 = vrot.lane.b32.xlu0 %v1427, 20
        %v1477 = vpop.permute.xlu0 %1476
        %1478 = vrot.lane.b32.xlu0 %v1431, 20
        %v1479 = vpop.permute.xlu0 %1478
        %1480 = vrot.lane.b32.xlu0 %v1434, 20
        %v1481 = vpop.permute.xlu0 %1480
        %1482 = vrot.lane.b32.xlu0 %v1438, 20
        %v1483 = vpop.permute.xlu0 %1482
        %1484 = vrot.lane.b32.xlu0 %v1441, 20
        %v1485 = vpop.permute.xlu0 %1484
        %1486 = vrot.lane.b32.xlu0 %v1445, 20
        %v1487 = vpop.permute.xlu0 %1486
        %1488 = vrot.lane.b32.xlu0 %v1448, 20
        %v1489 = vpop.permute.xlu0 %1488
        %1490 = vrot.lane.b32.xlu0 %v1452, 20
        %v1491 = vpop.permute.xlu0 %1490
        %1492 = vrot.lane.b32.xlu0 %v1455, 20
        %v1493 = vpop.permute.xlu0 %1492
        %1494 = vrot.lane.b32.xlu0 %v1459, 20
        %v1495 = vpop.permute.xlu0 %1494
        %1496 = vrot.lane.b32.xlu0 %v1462, 20
        %v1497 = vpop.permute.xlu0 %1496
        %1498 = vrot.lane.b32.xlu0 %v1466, 20
        %v1499 = vpop.permute.xlu0 %1498
        %1500 = vrot.lane.b32.xlu0 %v1469, 20
        %v1501 = vpop.permute.xlu0 %1500
        %vm1518 = vcmask 191648
        %1519 = vst.msk [vmem:[#allocation3] sm:$0xf] %vm1518, %v1471
        %1520 = vst.msk [vmem:[#allocation3 + $0x4] sm:$0xf] %vm1518, %v1473
        %1521 = vst.msk [vmem:[#allocation3 + $0x8] sm:$0xf] %vm1518, %v1475
        %1522 = vst.msk [vmem:[#allocation3 + $0xc] sm:$0xf] %vm1518, %v1477
        %1523 = vst.msk [vmem:[#allocation3 + $0x10] sm:$0xf] %vm1518, %v1479
        %1524 = vst.msk [vmem:[#allocation3 + $0x14] sm:$0xf] %vm1518, %v1481
        %1525 = vst.msk [vmem:[#allocation3 + $0x18] sm:$0xf] %vm1518, %v1483
        %1526 = vst.msk [vmem:[#allocation3 + $0x1c] sm:$0xf] %vm1518, %v1485
        %1527 = vst.msk [vmem:[#allocation3 + $0x20] sm:$0xf] %vm1518, %v1487
        %1528 = vst.msk [vmem:[#allocation3 + $0x24] sm:$0xf] %vm1518, %v1489
        %1529 = vst.msk [vmem:[#allocation3 + $0x28] sm:$0xf] %vm1518, %v1491
        %1530 = vst.msk [vmem:[#allocation3 + $0x2c] sm:$0xf] %vm1518, %v1493
        %1531 = vst.msk [vmem:[#allocation3 + $0x30] sm:$0xf] %vm1518, %v1495
        %1532 = vst.msk [vmem:[#allocation3 + $0x34] sm:$0xf] %vm1518, %v1497
        %1533 = vst.msk [vmem:[#allocation3 + $0x38] sm:$0xf] %vm1518, %v1499
        %1534 = vst.msk [vmem:[#allocation3 + $0x3c] sm:$0xf] %vm1518, %v1501
        %s1535 = scalar_lea.vmem [#allocation2], 24
        %v1536 = vld [vmem:[%s1535] sm:$0xf]
        %v1537 = vld [vmem:[%s1535 + $0x4] sm:$0xf]
        %v1538 = vld [vmem:[%s1535 + $0xc] sm:$0xf]
        %v1539 = vld [vmem:[%s1535 + $0x10] sm:$0xf]
        %v1540 = vld [vmem:[%s1535 + $0x18] sm:$0xf]
        %v1541 = vld [vmem:[%s1535 + $0x1c] sm:$0xf]
        %v1542 = vld [vmem:[%s1535 + $0x24] sm:$0xf]
        %v1543 = vld [vmem:[%s1535 + $0x28] sm:$0xf]
        %v1544 = vld [vmem:[%s1535 + $0x30] sm:$0xf]
        %v1545 = vld [vmem:[%s1535 + $0x34] sm:$0xf]
        %v1546 = vld [vmem:[%s1535 + $0x3c] sm:$0xf]
        %v1547 = vld [vmem:[%s1535 + $0x40] sm:$0xf]
        %v1548 = vld [vmem:[%s1535 + $0x48] sm:$0xf]
        %v1549 = vld [vmem:[%s1535 + $0x4c] sm:$0xf]
        %v1550 = vld [vmem:[%s1535 + $0x54] sm:$0xf]
        %v1551 = vld [vmem:[%s1535 + $0x58] sm:$0xf]
        %1568 = vrot.lane.b32.xlu0 %v1536, 24
        %v1569 = vpop.permute.xlu0 %1568
        %1570 = vrot.lane.b32.xlu0 %v1537, 24
        %v1571 = vpop.permute.xlu0 %1570
        %1572 = vrot.lane.b32.xlu0 %v1538, 24
        %v1573 = vpop.permute.xlu0 %1572
        %1574 = vrot.lane.b32.xlu0 %v1539, 24
        %v1575 = vpop.permute.xlu0 %1574
        %1576 = vrot.lane.b32.xlu0 %v1540, 24
        %v1577 = vpop.permute.xlu0 %1576
        %1578 = vrot.lane.b32.xlu0 %v1541, 24
        %v1579 = vpop.permute.xlu0 %1578
        %1580 = vrot.lane.b32.xlu0 %v1542, 24
        %v1581 = vpop.permute.xlu0 %1580
        %1582 = vrot.lane.b32.xlu0 %v1543, 24
        %v1583 = vpop.permute.xlu0 %1582
        %1584 = vrot.lane.b32.xlu0 %v1544, 24
        %v1585 = vpop.permute.xlu0 %1584
        %1586 = vrot.lane.b32.xlu0 %v1545, 24
        %v1587 = vpop.permute.xlu0 %1586
        %1588 = vrot.lane.b32.xlu0 %v1546, 24
        %v1589 = vpop.permute.xlu0 %1588
        %1590 = vrot.lane.b32.xlu0 %v1547, 24
        %v1591 = vpop.permute.xlu0 %1590
        %1592 = vrot.lane.b32.xlu0 %v1548, 24
        %v1593 = vpop.permute.xlu0 %1592
        %1594 = vrot.lane.b32.xlu0 %v1549, 24
        %v1595 = vpop.permute.xlu0 %1594
        %1596 = vrot.lane.b32.xlu0 %v1550, 24
        %v1597 = vpop.permute.xlu0 %1596
        %1598 = vrot.lane.b32.xlu0 %v1551, 24
        %v1599 = vpop.permute.xlu0 %1598
        %vm1616 = vcmask 224448
        %1617 = vst.msk [vmem:[#allocation3] sm:$0xf] %vm1616, %v1569
        %1618 = vst.msk [vmem:[#allocation3 + $0x4] sm:$0xf] %vm1616, %v1571
        %1619 = vst.msk [vmem:[#allocation3 + $0x8] sm:$0xf] %vm1616, %v1573
        %1620 = vst.msk [vmem:[#allocation3 + $0xc] sm:$0xf] %vm1616, %v1575
        %1621 = vst.msk [vmem:[#allocation3 + $0x10] sm:$0xf] %vm1616, %v1577
        %1622 = vst.msk [vmem:[#allocation3 + $0x14] sm:$0xf] %vm1616, %v1579
        %1623 = vst.msk [vmem:[#allocation3 + $0x18] sm:$0xf] %vm1616, %v1581
        %1624 = vst.msk [vmem:[#allocation3 + $0x1c] sm:$0xf] %vm1616, %v1583
        %1625 = vst.msk [vmem:[#allocation3 + $0x20] sm:$0xf] %vm1616, %v1585
        %1626 = vst.msk [vmem:[#allocation3 + $0x24] sm:$0xf] %vm1616, %v1587
        %1627 = vst.msk [vmem:[#allocation3 + $0x28] sm:$0xf] %vm1616, %v1589
        %1628 = vst.msk [vmem:[#allocation3 + $0x2c] sm:$0xf] %vm1616, %v1591
        %1629 = vst.msk [vmem:[#allocation3 + $0x30] sm:$0xf] %vm1616, %v1593
        %1630 = vst.msk [vmem:[#allocation3 + $0x34] sm:$0xf] %vm1616, %v1595
        %1631 = vst.msk [vmem:[#allocation3 + $0x38] sm:$0xf] %vm1616, %v1597
        %1632 = vst.msk [vmem:[#allocation3 + $0x3c] sm:$0xf] %vm1616, %v1599
        %v1633 = vld [vmem:[%s1535] sm:$0xf]
        %v1634 = vld [vmem:[%s1535 + $0x4] sm:$0xf]
        %v1635 = vld [vmem:[%s1535 + $0x8] sm:$0x1]
        %v1636 = vld [vmem:[%s1535 + $0xc] sm:$0xf]
        %v1637 = vld [vmem:[%s1535 + $0x10] sm:$0xf]
        %v1638 = vld [vmem:[%s1535 + $0x14] sm:$0x1]
        %v1639 = vld [vmem:[%s1535 + $0x18] sm:$0xf]
        %v1640 = vld [vmem:[%s1535 + $0x1c] sm:$0xf]
        %v1641 = vld [vmem:[%s1535 + $0x20] sm:$0x1]
        %v1642 = vld [vmem:[%s1535 + $0x24] sm:$0xf]
        %v1643 = vld [vmem:[%s1535 + $0x28] sm:$0xf]
        %v1644 = vld [vmem:[%s1535 + $0x2c] sm:$0x1]
        %v1645 = vld [vmem:[%s1535 + $0x30] sm:$0xf]
        %v1646 = vld [vmem:[%s1535 + $0x34] sm:$0xf]
        %v1647 = vld [vmem:[%s1535 + $0x38] sm:$0x1]
        %v1648 = vld [vmem:[%s1535 + $0x3c] sm:$0xf]
        %v1649 = vld [vmem:[%s1535 + $0x40] sm:$0xf]
        %v1650 = vld [vmem:[%s1535 + $0x44] sm:$0x1]
        %v1651 = vld [vmem:[%s1535 + $0x48] sm:$0xf]
        %v1652 = vld [vmem:[%s1535 + $0x4c] sm:$0xf]
        %v1653 = vld [vmem:[%s1535 + $0x50] sm:$0x1]
        %v1654 = vld [vmem:[%s1535 + $0x54] sm:$0xf]
        %v1655 = vld [vmem:[%s1535 + $0x58] sm:$0xf]
        %v1656 = vld [vmem:[%s1535 + $0x5c] sm:$0x1]
        %v1658 = vshrl.u32 %v1633, 16
        %v1660 = vrot.slane %v1658, 4
        %v1661 = vshll.u32 %v1633, 16
        %v1663 = vrot.slane %v1661, 5
        %v1664 = vor.u32 %v1660, %v1663
        %v1665 = vrot.slane %v1664, 4
        %v1667 = vshll.u32 %v1634, 16
        %v1669 = vrot.slane %v1667, 5
        %v1670 = vsel %vm557, %v1665, %v1669
        %v1671 = vshrl.u32 %v1634, 16
        %v1673 = vrot.slane %v1671, 4
        %v1674 = vor.u32 %v1673, %v1669
        %v1675 = vrot.slane %v1674, 4
        %v1677 = vshll.u32 %v1635, 16
        %v1679 = vrot.slane %v1677, 5
        %v1680 = vsel %vm557, %v1675, %v1679
        %v1682 = vshrl.u32 %v1636, 16
        %v1684 = vrot.slane %v1682, 4
        %v1685 = vshll.u32 %v1636, 16
        %v1687 = vrot.slane %v1685, 5
        %v1688 = vor.u32 %v1684, %v1687
        %v1689 = vrot.slane %v1688, 4
        %v1691 = vshll.u32 %v1637, 16
        %v1693 = vrot.slane %v1691, 5
        %v1694 = vsel %vm557, %v1689, %v1693
        %v1695 = vshrl.u32 %v1637, 16
        %v1697 = vrot.slane %v1695, 4
        %v1698 = vor.u32 %v1697, %v1693
        %v1699 = vrot.slane %v1698, 4
        %v1701 = vshll.u32 %v1638, 16
        %v1703 = vrot.slane %v1701, 5
        %v1704 = vsel %vm557, %v1699, %v1703
        %v1706 = vshrl.u32 %v1639, 16
        %v1708 = vrot.slane %v1706, 4
        %v1709 = vshll.u32 %v1639, 16
        %v1711 = vrot.slane %v1709, 5
        %v1712 = vor.u32 %v1708, %v1711
        %v1713 = vrot.slane %v1712, 4
        %v1715 = vshll.u32 %v1640, 16
        %v1717 = vrot.slane %v1715, 5
        %v1718 = vsel %vm557, %v1713, %v1717
        %v1719 = vshrl.u32 %v1640, 16
        %v1721 = vrot.slane %v1719, 4
        %v1722 = vor.u32 %v1721, %v1717
        %v1723 = vrot.slane %v1722, 4
        %v1725 = vshll.u32 %v1641, 16
        %v1727 = vrot.slane %v1725, 5
        %v1728 = vsel %vm557, %v1723, %v1727
        %v1730 = vshrl.u32 %v1642, 16
        %v1732 = vrot.slane %v1730, 4
        %v1733 = vshll.u32 %v1642, 16
        %v1735 = vrot.slane %v1733, 5
        %v1736 = vor.u32 %v1732, %v1735
        %v1737 = vrot.slane %v1736, 4
        %v1739 = vshll.u32 %v1643, 16
        %v1741 = vrot.slane %v1739, 5
        %v1742 = vsel %vm557, %v1737, %v1741
        %v1743 = vshrl.u32 %v1643, 16
        %v1745 = vrot.slane %v1743, 4
        %v1746 = vor.u32 %v1745, %v1741
        %v1747 = vrot.slane %v1746, 4
        %v1749 = vshll.u32 %v1644, 16
        %v1751 = vrot.slane %v1749, 5
        %v1752 = vsel %vm557, %v1747, %v1751
        %v1754 = vshrl.u32 %v1645, 16
        %v1756 = vrot.slane %v1754, 4
        %v1757 = vshll.u32 %v1645, 16
        %v1759 = vrot.slane %v1757, 5
        %v1760 = vor.u32 %v1756, %v1759
        %v1761 = vrot.slane %v1760, 4
        %v1763 = vshll.u32 %v1646, 16
        %v1765 = vrot.slane %v1763, 5
        %v1766 = vsel %vm557, %v1761, %v1765
        %v1767 = vshrl.u32 %v1646, 16
        %v1769 = vrot.slane %v1767, 4
        %v1770 = vor.u32 %v1769, %v1765
        %v1771 = vrot.slane %v1770, 4
        %v1773 = vshll.u32 %v1647, 16
        %v1775 = vrot.slane %v1773, 5
        %v1776 = vsel %vm557, %v1771, %v1775
        %v1778 = vshrl.u32 %v1648, 16
        %v1780 = vrot.slane %v1778, 4
        %v1781 = vshll.u32 %v1648, 16
        %v1783 = vrot.slane %v1781, 5
        %v1784 = vor.u32 %v1780, %v1783
        %v1785 = vrot.slane %v1784, 4
        %v1787 = vshll.u32 %v1649, 16
        %v1789 = vrot.slane %v1787, 5
        %v1790 = vsel %vm557, %v1785, %v1789
        %v1791 = vshrl.u32 %v1649, 16
        %v1793 = vrot.slane %v1791, 4
        %v1794 = vor.u32 %v1793, %v1789
        %v1795 = vrot.slane %v1794, 4
        %v1797 = vshll.u32 %v1650, 16
        %v1799 = vrot.slane %v1797, 5
        %v1800 = vsel %vm557, %v1795, %v1799
        %v1802 = vshrl.u32 %v1651, 16
        %v1804 = vrot.slane %v1802, 4
        %v1805 = vshll.u32 %v1651, 16
        %v1807 = vrot.slane %v1805, 5
        %v1808 = vor.u32 %v1804, %v1807
        %v1809 = vrot.slane %v1808, 4
        %v1811 = vshll.u32 %v1652, 16
        %v1813 = vrot.slane %v1811, 5
        %v1814 = vsel %vm557, %v1809, %v1813
        %v1815 = vshrl.u32 %v1652, 16
        %v1817 = vrot.slane %v1815, 4
        %v1818 = vor.u32 %v1817, %v1813
        %v1819 = vrot.slane %v1818, 4
        %v1821 = vshll.u32 %v1653, 16
        %v1823 = vrot.slane %v1821, 5
        %v1824 = vsel %vm557, %v1819, %v1823
        %v1826 = vshrl.u32 %v1654, 16
        %v1828 = vrot.slane %v1826, 4
        %v1829 = vshll.u32 %v1654, 16
        %v1831 = vrot.slane %v1829, 5
        %v1832 = vor.u32 %v1828, %v1831
        %v1833 = vrot.slane %v1832, 4
        %v1835 = vshll.u32 %v1655, 16
        %v1837 = vrot.slane %v1835, 5
        %v1838 = vsel %vm557, %v1833, %v1837
        %v1839 = vshrl.u32 %v1655, 16
        %v1841 = vrot.slane %v1839, 4
        %v1842 = vor.u32 %v1841, %v1837
        %v1843 = vrot.slane %v1842, 4
        %v1845 = vshll.u32 %v1656, 16
        %v1847 = vrot.slane %v1845, 5
        %v1848 = vsel %vm557, %v1843, %v1847
        %1849 = vrot.lane.b32.xlu0 %v1670, 28
        %v1850 = vpop.permute.xlu0 %1849
        %1851 = vrot.lane.b32.xlu0 %v1680, 28
        %v1852 = vpop.permute.xlu0 %1851
        %1853 = vrot.lane.b32.xlu0 %v1694, 28
        %v1854 = vpop.permute.xlu0 %1853
        %1855 = vrot.lane.b32.xlu0 %v1704, 28
        %v1856 = vpop.permute.xlu0 %1855
        %1857 = vrot.lane.b32.xlu0 %v1718, 28
        %v1858 = vpop.permute.xlu0 %1857
        %1859 = vrot.lane.b32.xlu0 %v1728, 28
        %v1860 = vpop.permute.xlu0 %1859
        %1861 = vrot.lane.b32.xlu0 %v1742, 28
        %v1862 = vpop.permute.xlu0 %1861
        %1863 = vrot.lane.b32.xlu0 %v1752, 28
        %v1864 = vpop.permute.xlu0 %1863
        %1865 = vrot.lane.b32.xlu0 %v1766, 28
        %v1866 = vpop.permute.xlu0 %1865
        %1867 = vrot.lane.b32.xlu0 %v1776, 28
        %v1868 = vpop.permute.xlu0 %1867
        %1869 = vrot.lane.b32.xlu0 %v1790, 28
        %v1870 = vpop.permute.xlu0 %1869
        %1871 = vrot.lane.b32.xlu0 %v1800, 28
        %v1872 = vpop.permute.xlu0 %1871
        %1873 = vrot.lane.b32.xlu0 %v1814, 28
        %v1874 = vpop.permute.xlu0 %1873
        %1875 = vrot.lane.b32.xlu0 %v1824, 28
        %v1876 = vpop.permute.xlu0 %1875
        %1877 = vrot.lane.b32.xlu0 %v1838, 28
        %v1878 = vpop.permute.xlu0 %1877
        %1879 = vrot.lane.b32.xlu0 %v1848, 28
        %v1880 = vpop.permute.xlu0 %1879
        %vm1897 = vcmask 257248
        %1898 = vst.msk [vmem:[#allocation3] sm:$0xf] %vm1897, %v1850
        %1899 = vst.msk [vmem:[#allocation3 + $0x4] sm:$0xf] %vm1897, %v1852
        %1900 = vst.msk [vmem:[#allocation3 + $0x8] sm:$0xf] %vm1897, %v1854
        %1901 = vst.msk [vmem:[#allocation3 + $0xc] sm:$0xf] %vm1897, %v1856
        %1902 = vst.msk [vmem:[#allocation3 + $0x10] sm:$0xf] %vm1897, %v1858
        %1903 = vst.msk [vmem:[#allocation3 + $0x14] sm:$0xf] %vm1897, %v1860
        %1904 = vst.msk [vmem:[#allocation3 + $0x18] sm:$0xf] %vm1897, %v1862
        %1905 = vst.msk [vmem:[#allocation3 + $0x1c] sm:$0xf] %vm1897, %v1864
        %1906 = vst.msk [vmem:[#allocation3 + $0x20] sm:$0xf] %vm1897, %v1866
        %1907 = vst.msk [vmem:[#allocation3 + $0x24] sm:$0xf] %vm1897, %v1868
        %1908 = vst.msk [vmem:[#allocation3 + $0x28] sm:$0xf] %vm1897, %v1870
        %1909 = vst.msk [vmem:[#allocation3 + $0x2c] sm:$0xf] %vm1897, %v1872
        %1910 = vst.msk [vmem:[#allocation3 + $0x30] sm:$0xf] %vm1897, %v1874
        %1911 = vst.msk [vmem:[#allocation3 + $0x34] sm:$0xf] %vm1897, %v1876
        %1912 = vst.msk [vmem:[#allocation3 + $0x38] sm:$0xf] %vm1897, %v1878
        %1913 = vst.msk [vmem:[#allocation3 + $0x3c] sm:$0xf] %vm1897, %v1880
        %v1914 = vld [vmem:[%s1535] sm:$0xe]
        %v1915 = vld [vmem:[%s1535 + $0x4] sm:$0xf]
        %v1916 = vld [vmem:[%s1535 + $0x8] sm:$0x1]
        %v1917 = vld [vmem:[%s1535 + $0xc] sm:$0xe]
        %v1918 = vld [vmem:[%s1535 + $0x10] sm:$0xf]
        %v1919 = vld [vmem:[%s1535 + $0x14] sm:$0x1]
        %v1920 = vld [vmem:[%s1535 + $0x18] sm:$0xe]
        %v1921 = vld [vmem:[%s1535 + $0x1c] sm:$0xf]
        %v1922 = vld [vmem:[%s1535 + $0x20] sm:$0x1]
        %v1923 = vld [vmem:[%s1535 + $0x24] sm:$0xe]
        %v1924 = vld [vmem:[%s1535 + $0x28] sm:$0xf]
        %v1925 = vld [vmem:[%s1535 + $0x2c] sm:$0x1]
        %v1926 = vld [vmem:[%s1535 + $0x30] sm:$0xe]
        %v1927 = vld [vmem:[%s1535 + $0x34] sm:$0xf]
        %v1928 = vld [vmem:[%s1535 + $0x38] sm:$0x1]
        %v1929 = vld [vmem:[%s1535 + $0x3c] sm:$0xe]
        %v1930 = vld [vmem:[%s1535 + $0x40] sm:$0xf]
        %v1931 = vld [vmem:[%s1535 + $0x44] sm:$0x1]
        %v1932 = vld [vmem:[%s1535 + $0x48] sm:$0xe]
        %v1933 = vld [vmem:[%s1535 + $0x4c] sm:$0xf]
        %v1934 = vld [vmem:[%s1535 + $0x50] sm:$0x1]
        %v1935 = vld [vmem:[%s1535 + $0x54] sm:$0xe]
        %v1936 = vld [vmem:[%s1535 + $0x58] sm:$0xf]
        %v1937 = vld [vmem:[%s1535 + $0x5c] sm:$0x1]
        %v1962 = vrot.slane %v1914, 5
        %v1963 = vrot.slane %v1962, 4
        %v1964 = vrot.slane %v1915, 5
        %v1965 = vsel %vm865, %v1963, %v1964
        %v1966 = vrot.slane %v1964, 4
        %v1967 = vrot.slane %v1916, 5
        %v1968 = vsel %vm865, %v1966, %v1967
        %v1969 = vrot.slane %v1917, 5
        %v1970 = vrot.slane %v1969, 4
        %v1971 = vrot.slane %v1918, 5
        %v1972 = vsel %vm865, %v1970, %v1971
        %v1973 = vrot.slane %v1971, 4
        %v1974 = vrot.slane %v1919, 5
        %v1975 = vsel %vm865, %v1973, %v1974
        %v1976 = vrot.slane %v1920, 5
        %v1977 = vrot.slane %v1976, 4
        %v1978 = vrot.slane %v1921, 5
        %v1979 = vsel %vm865, %v1977, %v1978
        %v1980 = vrot.slane %v1978, 4
        %v1981 = vrot.slane %v1922, 5
        %v1982 = vsel %vm865, %v1980, %v1981
        %v1983 = vrot.slane %v1923, 5
        %v1984 = vrot.slane %v1983, 4
        %v1985 = vrot.slane %v1924, 5
        %v1986 = vsel %vm865, %v1984, %v1985
        %v1987 = vrot.slane %v1985, 4
        %v1988 = vrot.slane %v1925, 5
        %v1989 = vsel %vm865, %v1987, %v1988
        %v1990 = vrot.slane %v1926, 5
        %v1991 = vrot.slane %v1990, 4
        %v1992 = vrot.slane %v1927, 5
        %v1993 = vsel %vm865, %v1991, %v1992
        %v1994 = vrot.slane %v1992, 4
        %v1995 = vrot.slane %v1928, 5
        %v1996 = vsel %vm865, %v1994, %v1995
        %v1997 = vrot.slane %v1929, 5
        %v1998 = vrot.slane %v1997, 4
        %v1999 = vrot.slane %v1930, 5
        %v2000 = vsel %vm865, %v1998, %v1999
        %v2001 = vrot.slane %v1999, 4
        %v2002 = vrot.slane %v1931, 5
        %v2003 = vsel %vm865, %v2001, %v2002
        %v2004 = vrot.slane %v1932, 5
        %v2005 = vrot.slane %v2004, 4
        %v2006 = vrot.slane %v1933, 5
        %v2007 = vsel %vm865, %v2005, %v2006
        %v2008 = vrot.slane %v2006, 4
        %v2009 = vrot.slane %v1934, 5
        %v2010 = vsel %vm865, %v2008, %v2009
        %v2011 = vrot.slane %v1935, 5
        %v2012 = vrot.slane %v2011, 4
        %v2013 = vrot.slane %v1936, 5
        %v2014 = vsel %vm865, %v2012, %v2013
        %v2015 = vrot.slane %v2013, 4
        %v2016 = vrot.slane %v1937, 5
        %v2017 = vsel %vm865, %v2015, %v2016
        %2018 = vrot.lane.b32.xlu0 %v1965, 32
        %v2019 = vpop.permute.xlu0 %2018
        %2020 = vrot.lane.b32.xlu0 %v1968, 32
        %v2021 = vpop.permute.xlu0 %2020
        %2022 = vrot.lane.b32.xlu0 %v1972, 32
        %v2023 = vpop.permute.xlu0 %2022
        %2024 = vrot.lane.b32.xlu0 %v1975, 32
        %v2025 = vpop.permute.xlu0 %2024
        %2026 = vrot.lane.b32.xlu0 %v1979, 32
        %v2027 = vpop.permute.xlu0 %2026
        %2028 = vrot.lane.b32.xlu0 %v1982, 32
        %v2029 = vpop.permute.xlu0 %2028
        %2030 = vrot.lane.b32.xlu0 %v1986, 32
        %v2031 = vpop.permute.xlu0 %2030
        %2032 = vrot.lane.b32.xlu0 %v1989, 32
        %v2033 = vpop.permute.xlu0 %2032
        %2034 = vrot.lane.b32.xlu0 %v1993, 32
        %v2035 = vpop.permute.xlu0 %2034
        %2036 = vrot.lane.b32.xlu0 %v1996, 32
        %v2037 = vpop.permute.xlu0 %2036
        %2038 = vrot.lane.b32.xlu0 %v2000, 32
        %v2039 = vpop.permute.xlu0 %2038
        %2040 = vrot.lane.b32.xlu0 %v2003, 32
        %v2041 = vpop.permute.xlu0 %2040
        %2042 = vrot.lane.b32.xlu0 %v2007, 32
        %v2043 = vpop.permute.xlu0 %2042
        %2044 = vrot.lane.b32.xlu0 %v2010, 32
        %v2045 = vpop.permute.xlu0 %2044
        %2046 = vrot.lane.b32.xlu0 %v2014, 32
        %v2047 = vpop.permute.xlu0 %2046
        %2048 = vrot.lane.b32.xlu0 %v2017, 32
        %v2049 = vpop.permute.xlu0 %2048
        %vm2066 = vcmask 290048
        %2067 = vst.msk [vmem:[#allocation3] sm:$0xf] %vm2066, %v2019
        %2068 = vst.msk [vmem:[#allocation3 + $0x4] sm:$0xf] %vm2066, %v2021
        %2069 = vst.msk [vmem:[#allocation3 + $0x8] sm:$0xf] %vm2066, %v2023
        %2070 = vst.msk [vmem:[#allocation3 + $0xc] sm:$0xf] %vm2066, %v2025
        %2071 = vst.msk [vmem:[#allocation3 + $0x10] sm:$0xf] %vm2066, %v2027
        %2072 = vst.msk [vmem:[#allocation3 + $0x14] sm:$0xf] %vm2066, %v2029
        %2073 = vst.msk [vmem:[#allocation3 + $0x18] sm:$0xf] %vm2066, %v2031
        %2074 = vst.msk [vmem:[#allocation3 + $0x1c] sm:$0xf] %vm2066, %v2033
        %2075 = vst.msk [vmem:[#allocation3 + $0x20] sm:$0xf] %vm2066, %v2035
        %2076 = vst.msk [vmem:[#allocation3 + $0x24] sm:$0xf] %vm2066, %v2037
        %2077 = vst.msk [vmem:[#allocation3 + $0x28] sm:$0xf] %vm2066, %v2039
        %2078 = vst.msk [vmem:[#allocation3 + $0x2c] sm:$0xf] %vm2066, %v2041
        %2079 = vst.msk [vmem:[#allocation3 + $0x30] sm:$0xf] %vm2066, %v2043
        %2080 = vst.msk [vmem:[#allocation3 + $0x34] sm:$0xf] %vm2066, %v2045
        %2081 = vst.msk [vmem:[#allocation3 + $0x38] sm:$0xf] %vm2066, %v2047
        %2082 = vst.msk [vmem:[#allocation3 + $0x3c] sm:$0xf] %vm2066, %v2049
        %v2083 = vld [vmem:[#allocation3] sm:$0xf]
        %v2084 = vld [vmem:[#allocation3 + $0x4] sm:$0xf]
        %v2085 = vld [vmem:[#allocation3 + $0x8] sm:$0xf]
        %v2086 = vld [vmem:[#allocation3 + $0xc] sm:$0xf]
        %v2087 = vld [vmem:[#allocation3 + $0x10] sm:$0xf]
        %v2088 = vld [vmem:[#allocation3 + $0x14] sm:$0xf]
        %v2089 = vld [vmem:[#allocation3 + $0x18] sm:$0xf]
        %v2090 = vld [vmem:[#allocation3 + $0x1c] sm:$0xf]
        %v2091 = vld [vmem:[#allocation3 + $0x20] sm:$0xf]
        %v2092 = vld [vmem:[#allocation3 + $0x24] sm:$0xf]
        %v2093 = vld [vmem:[#allocation3 + $0x28] sm:$0xf]
        %v2094 = vld [vmem:[#allocation3 + $0x2c] sm:$0xf]
        %v2095 = vld [vmem:[#allocation3 + $0x30] sm:$0xf]
        %v2096 = vld [vmem:[#allocation3 + $0x34] sm:$0xf]
        %v2097 = vld [vmem:[#allocation3 + $0x38] sm:$0xf]
        %v2098 = vld [vmem:[#allocation3 + $0x3c] sm:$0xf]
        %v2099 = vld [vmem:[#allocation4] sm:$0xff]
        %v2100 = vld [vmem:[#allocation4 + $0x8] sm:$0xff]
        %v2101 = vld [vmem:[#allocation4 + $0x10] sm:$0xff]
        %v2102 = vld [vmem:[#allocation4 + $0x18] sm:$0xff]
        %v2103 = vld [vmem:[#allocation4 + $0x20] sm:$0xff]
        %v2104 = vld [vmem:[#allocation4 + $0x28] sm:$0xff]
        %v2105 = vld [vmem:[#allocation4 + $0x30] sm:$0xff]
        %v2106 = vld [vmem:[#allocation4 + $0x38] sm:$0xff]
        %v2107 = vld [vmem:[#allocation4 + $0x40] sm:$0x33]
        %v2108 = vld [vmem:[#allocation4 + $0x48] sm:$0x33]
        %v2109 = vld [vmem:[#allocation6] sm:$0xf]
        %v2111 = vperm.slane %v2109, 0
        %v2112 = vperm.slane %v2109, 1
        %v2113 = vperm.slane %v2109, 2
        %v2114 = vperm.slane %v2109, 3
        %v2135 = vunpack.c.l.b16 %v2083
        %v2136 = vunpack.c.l.b16 %v2084
        %v2137 = vunpack.c.l.b16 %v2085
        %v2138 = vunpack.c.l.b16 %v2086
        %v2139 = vunpack.c.l.b16 %v2087
        %v2140 = vunpack.c.l.b16 %v2088
        %v2141 = vunpack.c.l.b16 %v2089
        %v2142 = vunpack.c.l.b16 %v2090
        %v2143 = vunpack.c.l.b16 %v2091
        %v2144 = vunpack.c.l.b16 %v2092
        %v2145 = vunpack.c.l.b16 %v2093
        %v2146 = vunpack.c.l.b16 %v2094
        %v2147 = vunpack.c.l.b16 %v2095
        %v2148 = vunpack.c.l.b16 %v2096
        %v2149 = vunpack.c.l.b16 %v2097
        %v2150 = vunpack.c.l.b16 %v2098
        %v2151 = vpack.c.b16 %v2136, %v2135
        %v2152 = vpack.c.b16 %v2138, %v2137
        %v2153 = vpack.c.b16 %v2140, %v2139
        %v2154 = vpack.c.b16 %v2142, %v2141
        %v2155 = vpack.c.b16 %v2144, %v2143
        %v2156 = vpack.c.b16 %v2146, %v2145
        %v2157 = vpack.c.b16 %v2148, %v2147
        %v2158 = vpack.c.b16 %v2150, %v2149
        %v2169 = vunpack.c.l.b16 %v2099
        %v2170 = vunpack.c.h.b16 %v2099
        %v2171 = vunpack.c.l.b16 %v2100
        %v2172 = vunpack.c.h.b16 %v2100
        %v2173 = vunpack.c.l.b16 %v2101
        %v2174 = vunpack.c.h.b16 %v2101
        %v2175 = vunpack.c.l.b16 %v2102
        %v2176 = vunpack.c.h.b16 %v2102
        %v2177 = vunpack.c.l.b16 %v2103
        %v2178 = vunpack.c.h.b16 %v2103
        %v2179 = vunpack.c.l.b16 %v2104
        %v2180 = vunpack.c.h.b16 %v2104
        %v2181 = vunpack.c.l.b16 %v2105
        %v2182 = vunpack.c.h.b16 %v2105
        %v2183 = vunpack.c.l.b16 %v2106
        %v2184 = vunpack.c.h.b16 %v2106
        %v2185 = vunpack.c.l.b16 %v2107
        %v2186 = vunpack.c.h.b16 %v2107
        %v2187 = vunpack.c.l.b16 %v2108
        %v2188 = vunpack.c.h.b16 %v2108
        %v2189 = vpack.c.b16 %v2173, %v2169
        %v2190 = vpack.c.b16 %v2174, %v2170
        %v2191 = vpack.c.b16 %v2175, %v2171
        %v2192 = vpack.c.b16 %v2176, %v2172
        %v2193 = vpack.c.b16 %v2181, %v2177
        %v2194 = vpack.c.b16 %v2182, %v2178
        %v2195 = vpack.c.b16 %v2183, %v2179
        %v2196 = vpack.c.b16 %v2184, %v2180
        %v2197 = vpack.c.b16 %v2185, %v2185
        %v2198 = vpack.c.b16 %v2186, %v2186
        %v2199 = vpack.c.b16 %v2187, %v2187
        %v2200 = vpack.c.b16 %v2188, %v2188
        %vm2209 = vcmask 293888
        %v2211 = vsel %vm2209, %v2151, 0
        %v2214 = vsel %vm2209, %v2152, 0
        %v2217 = vsel %vm2209, %v2153, 0
        %v2220 = vsel %vm2209, %v2154, 0
        %v2223 = vsel %vm2209, %v2155, 0
        %v2226 = vsel %vm2209, %v2156, 0
        %v2229 = vsel %vm2209, %v2157, 0
        %v2232 = vsel %vm2209, %v2158, 0
        %vm2234 = vcmask 1041408
        %v2236 = vsel %vm2234, %v2197, 0
        %v2239 = vsel %vm2234, %v2198, 0
        %v2242 = vsel %vm2234, %v2199, 0
        %v2245 = vsel %vm2234, %v2200, 0
        %2247 = vmatpush.bf16.msra.mxu0 0
        %2248 = vmatpush.bf16.msra.mxu0 0
        %2249 = vmatpush.bf16.msra.mxu0 0
        %2250 = vmatpush.bf16.msra.mxu0 0
        %2251 = vmatpush.bf16.msra.mxu0 0
        %2252 = vmatpush.bf16.msra.mxu0 %v2236
        %2253 = vmatpush.bf16.msra.mxu0 %v2193
        %2254 = vmatpush.bf16.msra.mxu0 %v2189
        %2255 = vmatmul.bf16.gmra.mxu0 %v2211
        %v2256 = vpop.f32.mrf.mxu0
        %v2257 = vadd.f32 %v2111, %v2256
        %v2258 = vpop.f32.mrf.mxu0
        %v2259 = vadd.f32 %v2111, %v2258
        %2260 = vmatmul.bf16.gmra.mxu0 %v2214
        %v2261 = vpop.f32.mrf.mxu0
        %v2262 = vadd.f32 %v2111, %v2261
        %v2263 = vpop.f32.mrf.mxu0
        %v2264 = vadd.f32 %v2111, %v2263
        %2265 = vmatmul.bf16.gmra.mxu0 %v2217
        %v2266 = vpop.f32.mrf.mxu0
        %v2267 = vadd.f32 %v2111, %v2266
        %v2268 = vpop.f32.mrf.mxu0
        %v2269 = vadd.f32 %v2111, %v2268
        %2270 = vmatmul.bf16.gmra.mxu0 %v2220
        %v2271 = vpop.f32.mrf.mxu0
        %v2272 = vadd.f32 %v2111, %v2271
        %v2273 = vpop.f32.mrf.mxu0
        %v2274 = vadd.f32 %v2111, %v2273
        %2275 = vmatmul.bf16.gmra.mxu0 %v2223
        %v2276 = vpop.f32.mrf.mxu0
        %v2277 = vadd.f32 %v2111, %v2276
        %v2278 = vpop.f32.mrf.mxu0
        %v2279 = vadd.f32 %v2111, %v2278
        %2280 = vmatmul.bf16.gmra.mxu0 %v2226
        %v2281 = vpop.f32.mrf.mxu0
        %v2282 = vadd.f32 %v2111, %v2281
        %v2283 = vpop.f32.mrf.mxu0
        %v2284 = vadd.f32 %v2111, %v2283
        %2285 = vmatmul.bf16.gmra.mxu0 %v2229
        %v2286 = vpop.f32.mrf.mxu0
        %v2287 = vadd.f32 %v2111, %v2286
        %v2288 = vpop.f32.mrf.mxu0
        %v2289 = vadd.f32 %v2111, %v2288
        %2290 = vmatmul.bf16.gmra.mxu0 %v2232
        %v2291 = vpop.f32.mrf.mxu0
        %v2292 = vadd.f32 %v2111, %v2291
        %v2293 = vpop.f32.mrf.mxu0
        %v2294 = vadd.f32 %v2111, %v2293
        %2295 = vdwg.mxu0
        %2296 = vmatpush.bf16.msra.mxu0 0
        %2297 = vmatpush.bf16.msra.mxu0 0
        %2298 = vmatpush.bf16.msra.mxu0 0
        %2299 = vmatpush.bf16.msra.mxu0 0
        %2300 = vmatpush.bf16.msra.mxu0 0
        %2301 = vmatpush.bf16.msra.mxu0 %v2239
        %2302 = vmatpush.bf16.msra.mxu0 %v2194
        %2303 = vmatpush.bf16.msra.mxu0 %v2190
        %2304 = vmatmul.bf16.gmra.mxu0 %v2211
        %v2305 = vpop.f32.mrf.mxu0
        %v2306 = vadd.f32 %v2112, %v2305
        %v2307 = vpop.f32.mrf.mxu0
        %v2308 = vadd.f32 %v2112, %v2307
        %2309 = vmatmul.bf16.gmra.mxu0 %v2214
        %v2310 = vpop.f32.mrf.mxu0
        %v2311 = vadd.f32 %v2112, %v2310
        %v2312 = vpop.f32.mrf.mxu0
        %v2313 = vadd.f32 %v2112, %v2312
        %2314 = vmatmul.bf16.gmra.mxu0 %v2217
        %v2315 = vpop.f32.mrf.mxu0
        %v2316 = vadd.f32 %v2112, %v2315
        %v2317 = vpop.f32.mrf.mxu0
        %v2318 = vadd.f32 %v2112, %v2317
        %2319 = vmatmul.bf16.gmra.mxu0 %v2220
        %v2320 = vpop.f32.mrf.mxu0
        %v2321 = vadd.f32 %v2112, %v2320
        %v2322 = vpop.f32.mrf.mxu0
        %v2323 = vadd.f32 %v2112, %v2322
        %2324 = vmatmul.bf16.gmra.mxu0 %v2223
        %v2325 = vpop.f32.mrf.mxu0
        %v2326 = vadd.f32 %v2112, %v2325
        %v2327 = vpop.f32.mrf.mxu0
        %v2328 = vadd.f32 %v2112, %v2327
        %2329 = vmatmul.bf16.gmra.mxu0 %v2226
        %v2330 = vpop.f32.mrf.mxu0
        %v2331 = vadd.f32 %v2112, %v2330
        %v2332 = vpop.f32.mrf.mxu0
        %v2333 = vadd.f32 %v2112, %v2332
        %2334 = vmatmul.bf16.gmra.mxu0 %v2229
        %v2335 = vpop.f32.mrf.mxu0
        %v2336 = vadd.f32 %v2112, %v2335
        %v2337 = vpop.f32.mrf.mxu0
        %v2338 = vadd.f32 %v2112, %v2337
        %2339 = vmatmul.bf16.gmra.mxu0 %v2232
        %v2340 = vpop.f32.mrf.mxu0
        %v2341 = vadd.f32 %v2112, %v2340
        %v2342 = vpop.f32.mrf.mxu0
        %v2343 = vadd.f32 %v2112, %v2342
        %2344 = vdwg.mxu0
        %2345 = vmatpush.bf16.msra.mxu0 0
        %2346 = vmatpush.bf16.msra.mxu0 0
        %2347 = vmatpush.bf16.msra.mxu0 0
        %2348 = vmatpush.bf16.msra.mxu0 0
        %2349 = vmatpush.bf16.msra.mxu0 0
        %2350 = vmatpush.bf16.msra.mxu0 %v2242
        %2351 = vmatpush.bf16.msra.mxu0 %v2195
        %2352 = vmatpush.bf16.msra.mxu0 %v2191
        %2353 = vmatmul.bf16.gmra.mxu0 %v2211
        %v2354 = vpop.f32.mrf.mxu0
        %v2355 = vadd.f32 %v2113, %v2354
        %v2356 = vpop.f32.mrf.mxu0
        %v2357 = vadd.f32 %v2113, %v2356
        %2358 = vmatmul.bf16.gmra.mxu0 %v2214
        %v2359 = vpop.f32.mrf.mxu0
        %v2360 = vadd.f32 %v2113, %v2359
        %v2361 = vpop.f32.mrf.mxu0
        %v2362 = vadd.f32 %v2113, %v2361
        %2363 = vmatmul.bf16.gmra.mxu0 %v2217
        %v2364 = vpop.f32.mrf.mxu0
        %v2365 = vadd.f32 %v2113, %v2364
        %v2366 = vpop.f32.mrf.mxu0
        %v2367 = vadd.f32 %v2113, %v2366
        %2368 = vmatmul.bf16.gmra.mxu0 %v2220
        %v2369 = vpop.f32.mrf.mxu0
        %v2370 = vadd.f32 %v2113, %v2369
        %v2371 = vpop.f32.mrf.mxu0
        %v2372 = vadd.f32 %v2113, %v2371
        %2373 = vmatmul.bf16.gmra.mxu0 %v2223
        %v2374 = vpop.f32.mrf.mxu0
        %v2375 = vadd.f32 %v2113, %v2374
        %v2376 = vpop.f32.mrf.mxu0
        %v2377 = vadd.f32 %v2113, %v2376
        %2378 = vmatmul.bf16.gmra.mxu0 %v2226
        %v2379 = vpop.f32.mrf.mxu0
        %v2380 = vadd.f32 %v2113, %v2379
        %v2381 = vpop.f32.mrf.mxu0
        %v2382 = vadd.f32 %v2113, %v2381
        %2383 = vmatmul.bf16.gmra.mxu0 %v2229
        %v2384 = vpop.f32.mrf.mxu0
        %v2385 = vadd.f32 %v2113, %v2384
        %v2386 = vpop.f32.mrf.mxu0
        %v2387 = vadd.f32 %v2113, %v2386
        %2388 = vmatmul.bf16.gmra.mxu0 %v2232
        %v2389 = vpop.f32.mrf.mxu0
        %v2390 = vadd.f32 %v2113, %v2389
        %v2391 = vpop.f32.mrf.mxu0
        %v2392 = vadd.f32 %v2113, %v2391
        %2393 = vdwg.mxu0
        %2394 = vmatpush.bf16.msra.mxu0 0
        %2395 = vmatpush.bf16.msra.mxu0 0
        %2396 = vmatpush.bf16.msra.mxu0 0
        %2397 = vmatpush.bf16.msra.mxu0 0
        %2398 = vmatpush.bf16.msra.mxu0 0
        %2399 = vmatpush.bf16.msra.mxu0 %v2245
        %2400 = vmatpush.bf16.msra.mxu0 %v2196
        %2401 = vmatpush.bf16.msra.mxu0 %v2192
        %2402 = vmatmul.bf16.gmra.mxu0 %v2211
        %v2403 = vpop.f32.mrf.mxu0
        %v2404 = vadd.f32 %v2114, %v2403
        %v2405 = vpop.f32.mrf.mxu0
        %v2406 = vadd.f32 %v2114, %v2405
        %2407 = vmatmul.bf16.gmra.mxu0 %v2214
        %v2408 = vpop.f32.mrf.mxu0
        %v2409 = vadd.f32 %v2114, %v2408
        %v2410 = vpop.f32.mrf.mxu0
        %v2411 = vadd.f32 %v2114, %v2410
        %2412 = vmatmul.bf16.gmra.mxu0 %v2217
        %v2413 = vpop.f32.mrf.mxu0
        %v2414 = vadd.f32 %v2114, %v2413
        %v2415 = vpop.f32.mrf.mxu0
        %v2416 = vadd.f32 %v2114, %v2415
        %2417 = vmatmul.bf16.gmra.mxu0 %v2220
        %v2418 = vpop.f32.mrf.mxu0
        %v2419 = vadd.f32 %v2114, %v2418
        %v2420 = vpop.f32.mrf.mxu0
        %v2421 = vadd.f32 %v2114, %v2420
        %2422 = vmatmul.bf16.gmra.mxu0 %v2223
        %v2423 = vpop.f32.mrf.mxu0
        %v2424 = vadd.f32 %v2114, %v2423
        %v2425 = vpop.f32.mrf.mxu0
        %v2426 = vadd.f32 %v2114, %v2425
        %2427 = vmatmul.bf16.gmra.mxu0 %v2226
        %v2428 = vpop.f32.mrf.mxu0
        %v2429 = vadd.f32 %v2114, %v2428
        %v2430 = vpop.f32.mrf.mxu0
        %v2431 = vadd.f32 %v2114, %v2430
        %2432 = vmatmul.bf16.gmra.mxu0 %v2229
        %v2433 = vpop.f32.mrf.mxu0
        %v2434 = vadd.f32 %v2114, %v2433
        %v2435 = vpop.f32.mrf.mxu0
        %v2436 = vadd.f32 %v2114, %v2435
        %2437 = vmatmul.bf16.gmra.mxu0 %v2232
        %v2438 = vpop.f32.mrf.mxu0
        %v2439 = vadd.f32 %v2114, %v2438
        %v2440 = vpop.f32.mrf.mxu0
        %v2441 = vadd.f32 %v2114, %v2440
        %2442 = vdwg.mxu0
        %v2443 = vmax.f32 %v2257, 0.0
        %v2444 = vmax.f32 %v2306, 0.0
        %v2445 = vmax.f32 %v2355, 0.0
        %v2446 = vmax.f32 %v2404, 0.0
        %v2447 = vmax.f32 %v2259, 0.0
        %v2448 = vmax.f32 %v2308, 0.0
        %v2449 = vmax.f32 %v2357, 0.0
        %v2450 = vmax.f32 %v2406, 0.0
        %v2451 = vmax.f32 %v2262, 0.0
        %v2452 = vmax.f32 %v2311, 0.0
        %v2453 = vmax.f32 %v2360, 0.0
        %v2454 = vmax.f32 %v2409, 0.0
        %v2455 = vmax.f32 %v2264, 0.0
        %v2456 = vmax.f32 %v2313, 0.0
        %v2457 = vmax.f32 %v2362, 0.0
        %v2458 = vmax.f32 %v2411, 0.0
        %v2459 = vmax.f32 %v2267, 0.0
        %v2460 = vmax.f32 %v2316, 0.0
        %v2461 = vmax.f32 %v2365, 0.0
        %v2462 = vmax.f32 %v2414, 0.0
        %v2463 = vmax.f32 %v2269, 0.0
        %v2464 = vmax.f32 %v2318, 0.0
        %v2465 = vmax.f32 %v2367, 0.0
        %v2466 = vmax.f32 %v2416, 0.0
        %v2467 = vmax.f32 %v2272, 0.0
        %v2468 = vmax.f32 %v2321, 0.0
        %v2469 = vmax.f32 %v2370, 0.0
        %v2470 = vmax.f32 %v2419, 0.0
        %v2471 = vmax.f32 %v2274, 0.0
        %v2472 = vmax.f32 %v2323, 0.0
        %v2473 = vmax.f32 %v2372, 0.0
        %v2474 = vmax.f32 %v2421, 0.0
        %v2475 = vmax.f32 %v2277, 0.0
        %v2476 = vmax.f32 %v2326, 0.0
        %v2477 = vmax.f32 %v2375, 0.0
        %v2478 = vmax.f32 %v2424, 0.0
        %v2479 = vmax.f32 %v2279, 0.0
        %v2480 = vmax.f32 %v2328, 0.0
        %v2481 = vmax.f32 %v2377, 0.0
        %v2482 = vmax.f32 %v2426, 0.0
        %v2483 = vmax.f32 %v2282, 0.0
        %v2484 = vmax.f32 %v2331, 0.0
        %v2485 = vmax.f32 %v2380, 0.0
        %v2486 = vmax.f32 %v2429, 0.0
        %v2487 = vmax.f32 %v2284, 0.0
        %v2488 = vmax.f32 %v2333, 0.0
        %v2489 = vmax.f32 %v2382, 0.0
        %v2490 = vmax.f32 %v2431, 0.0
        %v2491 = vmax.f32 %v2287, 0.0
        %v2492 = vmax.f32 %v2336, 0.0
        %v2493 = vmax.f32 %v2385, 0.0
        %v2494 = vmax.f32 %v2434, 0.0
        %v2495 = vmax.f32 %v2289, 0.0
        %v2496 = vmax.f32 %v2338, 0.0
        %v2497 = vmax.f32 %v2387, 0.0
        %v2498 = vmax.f32 %v2436, 0.0
        %v2499 = vmax.f32 %v2292, 0.0
        %v2500 = vmax.f32 %v2341, 0.0
        %v2501 = vmax.f32 %v2390, 0.0
        %v2502 = vmax.f32 %v2439, 0.0
        %v2503 = vmax.f32 %v2294, 0.0
        %v2504 = vmax.f32 %v2343, 0.0
        %v2505 = vmax.f32 %v2392, 0.0
        %v2506 = vmax.f32 %v2441, 0.0
        %v2507 = vpack.c.bf16 %v2447, %v2443
        %v2508 = vpack.c.bf16 %v2448, %v2444
        %v2509 = vpack.c.bf16 %v2449, %v2445
        %v2510 = vpack.c.bf16 %v2450, %v2446
        %v2511 = vpack.c.bf16 %v2455, %v2451
        %v2512 = vpack.c.bf16 %v2456, %v2452
        %v2513 = vpack.c.bf16 %v2457, %v2453
        %v2514 = vpack.c.bf16 %v2458, %v2454
        %v2515 = vpack.c.bf16 %v2463, %v2459
        %v2516 = vpack.c.bf16 %v2464, %v2460
        %v2517 = vpack.c.bf16 %v2465, %v2461
        %v2518 = vpack.c.bf16 %v2466, %v2462
        %v2519 = vpack.c.bf16 %v2471, %v2467
        %v2520 = vpack.c.bf16 %v2472, %v2468
        %v2521 = vpack.c.bf16 %v2473, %v2469
        %v2522 = vpack.c.bf16 %v2474, %v2470
        %v2523 = vpack.c.bf16 %v2479, %v2475
        %v2524 = vpack.c.bf16 %v2480, %v2476
        %v2525 = vpack.c.bf16 %v2481, %v2477
        %v2526 = vpack.c.bf16 %v2482, %v2478
        %v2527 = vpack.c.bf16 %v2487, %v2483
        %v2528 = vpack.c.bf16 %v2488, %v2484
        %v2529 = vpack.c.bf16 %v2489, %v2485
        %v2530 = vpack.c.bf16 %v2490, %v2486
        %v2531 = vpack.c.bf16 %v2495, %v2491
        %v2532 = vpack.c.bf16 %v2496, %v2492
        %v2533 = vpack.c.bf16 %v2497, %v2493
        %v2534 = vpack.c.bf16 %v2498, %v2494
        %v2535 = vpack.c.bf16 %v2503, %v2499
        %v2536 = vpack.c.bf16 %v2504, %v2500
        %v2537 = vpack.c.bf16 %v2505, %v2501
        %v2538 = vpack.c.bf16 %v2506, %v2502
        %v2539 = vld [vmem:[#allocation8] sm:$0xf]
        %v2540 = vld [vmem:[#allocation8 + $0x4] sm:$0xf]
        %v2541 = vld [vmem:[#allocation8 + $0x8] sm:$0xf]
        %v2542 = vld [vmem:[#allocation8 + $0xc] sm:$0xf]
        %v2543 = vld [vmem:[#allocation8 + $0x10] sm:$0xf]
        %v2544 = vld [vmem:[#allocation8 + $0x14] sm:$0xf]
        %v2545 = vld [vmem:[#allocation8 + $0x18] sm:$0xf]
        %v2546 = vld [vmem:[#allocation8 + $0x1c] sm:$0xf]
        %v2547 = vld [vmem:[#allocation8 + $0x20] sm:$0xf]
        %v2548 = vld [vmem:[#allocation8 + $0x24] sm:$0xf]
        %v2549 = vld [vmem:[#allocation8 + $0x28] sm:$0xf]
        %v2550 = vld [vmem:[#allocation8 + $0x2c] sm:$0xf]
        %v2551 = vld [vmem:[#allocation8 + $0x30] sm:$0xf]
        %v2552 = vld [vmem:[#allocation8 + $0x34] sm:$0xf]
        %v2553 = vld [vmem:[#allocation8 + $0x38] sm:$0xf]
        %v2554 = vld [vmem:[#allocation8 + $0x3c] sm:$0xf]
        %v2555 = vld [vmem:[#allocation8 + $0x40] sm:$0xf]
        %v2556 = vld [vmem:[#allocation8 + $0x44] sm:$0xf]
        %v2557 = vld [vmem:[#allocation8 + $0x48] sm:$0xf]
        %v2558 = vld [vmem:[#allocation8 + $0x4c] sm:$0xf]
        %v2559 = vld [vmem:[#allocation8 + $0x50] sm:$0xf]
        %v2560 = vld [vmem:[#allocation8 + $0x54] sm:$0xf]
        %v2561 = vld [vmem:[#allocation8 + $0x58] sm:$0xf]
        %v2562 = vld [vmem:[#allocation8 + $0x5c] sm:$0xf]
        %v2563 = vld [vmem:[#allocation8 + $0x60] sm:$0xf]
        %v2564 = vld [vmem:[#allocation8 + $0x64] sm:$0xf]
        %v2565 = vld [vmem:[#allocation8 + $0x68] sm:$0xf]
        %v2566 = vld [vmem:[#allocation8 + $0x6c] sm:$0xf]
        %v2567 = vld [vmem:[#allocation8 + $0x70] sm:$0xf]
        %v2568 = vld [vmem:[#allocation8 + $0x74] sm:$0xf]
        %v2569 = vld [vmem:[#allocation8 + $0x78] sm:$0xf]
        %v2570 = vld [vmem:[#allocation8 + $0x7c] sm:$0xf]
        %v2571 = vld [vmem:[#allocation8 + $0x80] sm:$0xf]
        %v2572 = vld [vmem:[#allocation8 + $0x84] sm:$0xf]
        %v2573 = vld [vmem:[#allocation8 + $0x88] sm:$0xf]
        %v2574 = vld [vmem:[#allocation8 + $0x8c] sm:$0xf]
        %v2575 = vld [vmem:[#allocation8 + $0x90] sm:$0xf]
        %v2576 = vld [vmem:[#allocation8 + $0x94] sm:$0xf]
        %v2577 = vld [vmem:[#allocation8 + $0x98] sm:$0xf]
        %v2578 = vld [vmem:[#allocation8 + $0x9c] sm:$0xf]
        %v2579 = vld [vmem:[#allocation8 + $0xa0] sm:$0xf]
        %v2580 = vld [vmem:[#allocation8 + $0xa4] sm:$0xf]
        %v2581 = vld [vmem:[#allocation8 + $0xa8] sm:$0xf]
        %v2582 = vld [vmem:[#allocation8 + $0xac] sm:$0xf]
        %v2583 = vld [vmem:[#allocation8 + $0xb0] sm:$0xf]
        %v2584 = vld [vmem:[#allocation8 + $0xb4] sm:$0xf]
        %v2585 = vld [vmem:[#allocation8 + $0xb8] sm:$0xf]
        %v2586 = vld [vmem:[#allocation8 + $0xbc] sm:$0xf]
        %v2587 = vld [vmem:[#allocation8 + $0xc0] sm:$0xf]
        %v2588 = vld [vmem:[#allocation8 + $0xc4] sm:$0xf]
        %v2589 = vld [vmem:[#allocation8 + $0xc8] sm:$0xf]
        %v2590 = vld [vmem:[#allocation8 + $0xcc] sm:$0xf]
        %v2591 = vld [vmem:[#allocation8 + $0xd0] sm:$0xf]
        %v2592 = vld [vmem:[#allocation8 + $0xd4] sm:$0xf]
        %v2593 = vld [vmem:[#allocation8 + $0xd8] sm:$0xf]
        %v2594 = vld [vmem:[#allocation8 + $0xdc] sm:$0xf]
        %v2595 = vld [vmem:[#allocation8 + $0xe0] sm:$0xf]
        %v2596 = vld [vmem:[#allocation8 + $0xe4] sm:$0xf]
        %v2597 = vld [vmem:[#allocation8 + $0xe8] sm:$0xf]
        %v2598 = vld [vmem:[#allocation8 + $0xec] sm:$0xf]
        %v2599 = vld [vmem:[#allocation8 + $0xf0] sm:$0xf]
        %v2600 = vld [vmem:[#allocation8 + $0xf4] sm:$0xf]
        %v2601 = vld [vmem:[#allocation8 + $0xf8] sm:$0xf]
        %v2602 = vld [vmem:[#allocation8 + $0xfc] sm:$0xf]
        %v2603 = vld [vmem:[#allocation9] sm:$0x1]
        %v2605 = vperm.slane %v2603, 0
        %v2671 = vunpack.c.l.b16 %v2539
        %v2672 = vunpack.c.l.b16 %v2540
        %v2673 = vunpack.c.l.b16 %v2541
        %v2674 = vunpack.c.l.b16 %v2542
        %v2675 = vunpack.c.l.b16 %v2543
        %v2676 = vunpack.c.l.b16 %v2544
        %v2677 = vunpack.c.l.b16 %v2545
        %v2678 = vunpack.c.l.b16 %v2546
        %v2679 = vunpack.c.l.b16 %v2547
        %v2680 = vunpack.c.l.b16 %v2548
        %v2681 = vunpack.c.l.b16 %v2549
        %v2682 = vunpack.c.l.b16 %v2550
        %v2683 = vunpack.c.l.b16 %v2551
        %v2684 = vunpack.c.l.b16 %v2552
        %v2685 = vunpack.c.l.b16 %v2553
        %v2686 = vunpack.c.l.b16 %v2554
        %v2687 = vunpack.c.l.b16 %v2555
        %v2688 = vunpack.c.l.b16 %v2556
        %v2689 = vunpack.c.l.b16 %v2557
        %v2690 = vunpack.c.l.b16 %v2558
        %v2691 = vunpack.c.l.b16 %v2559
        %v2692 = vunpack.c.l.b16 %v2560
        %v2693 = vunpack.c.l.b16 %v2561
        %v2694 = vunpack.c.l.b16 %v2562
        %v2695 = vunpack.c.l.b16 %v2563
        %v2696 = vunpack.c.l.b16 %v2564
        %v2697 = vunpack.c.l.b16 %v2565
        %v2698 = vunpack.c.l.b16 %v2566
        %v2699 = vunpack.c.l.b16 %v2567
        %v2700 = vunpack.c.l.b16 %v2568
        %v2701 = vunpack.c.l.b16 %v2569
        %v2702 = vunpack.c.l.b16 %v2570
        %v2703 = vunpack.c.l.b16 %v2571
        %v2704 = vunpack.c.l.b16 %v2572
        %v2705 = vunpack.c.l.b16 %v2573
        %v2706 = vunpack.c.l.b16 %v2574
        %v2707 = vunpack.c.l.b16 %v2575
        %v2708 = vunpack.c.l.b16 %v2576
        %v2709 = vunpack.c.l.b16 %v2577
        %v2710 = vunpack.c.l.b16 %v2578
        %v2711 = vunpack.c.l.b16 %v2579
        %v2712 = vunpack.c.l.b16 %v2580
        %v2713 = vunpack.c.l.b16 %v2581
        %v2714 = vunpack.c.l.b16 %v2582
        %v2715 = vunpack.c.l.b16 %v2583
        %v2716 = vunpack.c.l.b16 %v2584
        %v2717 = vunpack.c.l.b16 %v2585
        %v2718 = vunpack.c.l.b16 %v2586
        %v2719 = vunpack.c.l.b16 %v2587
        %v2720 = vunpack.c.l.b16 %v2588
        %v2721 = vunpack.c.l.b16 %v2589
        %v2722 = vunpack.c.l.b16 %v2590
        %v2723 = vunpack.c.l.b16 %v2591
        %v2724 = vunpack.c.l.b16 %v2592
        %v2725 = vunpack.c.l.b16 %v2593
        %v2726 = vunpack.c.l.b16 %v2594
        %v2727 = vunpack.c.l.b16 %v2595
        %v2728 = vunpack.c.l.b16 %v2596
        %v2729 = vunpack.c.l.b16 %v2597
        %v2730 = vunpack.c.l.b16 %v2598
        %v2731 = vunpack.c.l.b16 %v2599
        %v2732 = vunpack.c.l.b16 %v2600
        %v2733 = vunpack.c.l.b16 %v2601
        %v2734 = vunpack.c.l.b16 %v2602
        %v2735 = vpack.c.b16 %v2672, %v2671
        %v2736 = vpack.c.b16 %v2674, %v2673
        %v2737 = vpack.c.b16 %v2676, %v2675
        %v2738 = vpack.c.b16 %v2678, %v2677
        %v2739 = vpack.c.b16 %v2680, %v2679
        %v2740 = vpack.c.b16 %v2682, %v2681
        %v2741 = vpack.c.b16 %v2684, %v2683
        %v2742 = vpack.c.b16 %v2686, %v2685
        %v2743 = vpack.c.b16 %v2688, %v2687
        %v2744 = vpack.c.b16 %v2690, %v2689
        %v2745 = vpack.c.b16 %v2692, %v2691
        %v2746 = vpack.c.b16 %v2694, %v2693
        %v2747 = vpack.c.b16 %v2696, %v2695
        %v2748 = vpack.c.b16 %v2698, %v2697
        %v2749 = vpack.c.b16 %v2700, %v2699
        %v2750 = vpack.c.b16 %v2702, %v2701
        %v2751 = vpack.c.b16 %v2704, %v2703
        %v2752 = vpack.c.b16 %v2706, %v2705
        %v2753 = vpack.c.b16 %v2708, %v2707
        %v2754 = vpack.c.b16 %v2710, %v2709
        %v2755 = vpack.c.b16 %v2712, %v2711
        %v2756 = vpack.c.b16 %v2714, %v2713
        %v2757 = vpack.c.b16 %v2716, %v2715
        %v2758 = vpack.c.b16 %v2718, %v2717
        %v2759 = vpack.c.b16 %v2720, %v2719
        %v2760 = vpack.c.b16 %v2722, %v2721
        %v2761 = vpack.c.b16 %v2724, %v2723
        %v2762 = vpack.c.b16 %v2726, %v2725
        %v2763 = vpack.c.b16 %v2728, %v2727
        %v2764 = vpack.c.b16 %v2730, %v2729
        %v2765 = vpack.c.b16 %v2732, %v2731
        %v2766 = vpack.c.b16 %v2734, %v2733
        %2799 = vmatpush.bf16.msra.mxu0 %v2742
        %2800 = vmatpush.bf16.msra.mxu0 %v2741
        %2801 = vmatpush.bf16.msra.mxu0 %v2740
        %2802 = vmatpush.bf16.msra.mxu0 %v2739
        %2803 = vmatpush.bf16.msra.mxu0 %v2738
        %2804 = vmatpush.bf16.msra.mxu0 %v2737
        %2805 = vmatpush.bf16.msra.mxu0 %v2736
        %2806 = vmatpush.bf16.msra.mxu0 %v2735
        %2807 = vmatmul.bf16.gmra.mxu0 %v2507
        %v2808 = vpop.f32.mrf.mxu0
        %v2809 = vadd.f32 %v2605, %v2808
        %v2810 = vpop.f32.mrf.mxu0
        %v2811 = vadd.f32 %v2605, %v2810
        %2812 = vmatmul.bf16.gmra.mxu0 %v2511
        %v2813 = vpop.f32.mrf.mxu0
        %v2814 = vadd.f32 %v2605, %v2813
        %v2815 = vpop.f32.mrf.mxu0
        %v2816 = vadd.f32 %v2605, %v2815
        %2817 = vmatmul.bf16.gmra.mxu0 %v2515
        %v2818 = vpop.f32.mrf.mxu0
        %v2819 = vadd.f32 %v2605, %v2818
        %v2820 = vpop.f32.mrf.mxu0
        %v2821 = vadd.f32 %v2605, %v2820
        %2822 = vmatmul.bf16.gmra.mxu0 %v2519
        %v2823 = vpop.f32.mrf.mxu0
        %v2824 = vadd.f32 %v2605, %v2823
        %v2825 = vpop.f32.mrf.mxu0
        %v2826 = vadd.f32 %v2605, %v2825
        %2827 = vmatmul.bf16.gmra.mxu0 %v2523
        %v2828 = vpop.f32.mrf.mxu0
        %v2829 = vadd.f32 %v2605, %v2828
        %v2830 = vpop.f32.mrf.mxu0
        %v2831 = vadd.f32 %v2605, %v2830
        %2832 = vmatmul.bf16.gmra.mxu0 %v2527
        %v2833 = vpop.f32.mrf.mxu0
        %v2834 = vadd.f32 %v2605, %v2833
        %v2835 = vpop.f32.mrf.mxu0
        %v2836 = vadd.f32 %v2605, %v2835
        %2837 = vmatmul.bf16.gmra.mxu0 %v2531
        %v2838 = vpop.f32.mrf.mxu0
        %v2839 = vadd.f32 %v2605, %v2838
        %v2840 = vpop.f32.mrf.mxu0
        %v2841 = vadd.f32 %v2605, %v2840
        %2842 = vmatmul.bf16.gmra.mxu0 %v2535
        %v2843 = vpop.f32.mrf.mxu0
        %v2844 = vadd.f32 %v2605, %v2843
        %v2845 = vpop.f32.mrf.mxu0
        %v2846 = vadd.f32 %v2605, %v2845
        %2847 = vdwg.mxu0
        %2848 = vmatpush.bf16.msra.mxu0 %v2750
        %2849 = vmatpush.bf16.msra.mxu0 %v2749
        %2850 = vmatpush.bf16.msra.mxu0 %v2748
        %2851 = vmatpush.bf16.msra.mxu0 %v2747
        %2852 = vmatpush.bf16.msra.mxu0 %v2746
        %2853 = vmatpush.bf16.msra.mxu0 %v2745
        %2854 = vmatpush.bf16.msra.mxu0 %v2744
        %2855 = vmatpush.bf16.msra.mxu0 %v2743
        %2856 = vmatmul.bf16.gmra.mxu0 %v2508
        %v2857 = vpop.f32.mrf.mxu0
        %v2858 = vadd.f32 %v2809, %v2857
        %v2859 = vpop.f32.mrf.mxu0
        %v2860 = vadd.f32 %v2811, %v2859
        %2861 = vmatmul.bf16.gmra.mxu0 %v2512
        %v2862 = vpop.f32.mrf.mxu0
        %v2863 = vadd.f32 %v2814, %v2862
        %v2864 = vpop.f32.mrf.mxu0
        %v2865 = vadd.f32 %v2816, %v2864
        %2866 = vmatmul.bf16.gmra.mxu0 %v2516
        %v2867 = vpop.f32.mrf.mxu0
        %v2868 = vadd.f32 %v2819, %v2867
        %v2869 = vpop.f32.mrf.mxu0
        %v2870 = vadd.f32 %v2821, %v2869
        %2871 = vmatmul.bf16.gmra.mxu0 %v2520
        %v2872 = vpop.f32.mrf.mxu0
        %v2873 = vadd.f32 %v2824, %v2872
        %v2874 = vpop.f32.mrf.mxu0
        %v2875 = vadd.f32 %v2826, %v2874
        %2876 = vmatmul.bf16.gmra.mxu0 %v2524
        %v2877 = vpop.f32.mrf.mxu0
        %v2878 = vadd.f32 %v2829, %v2877
        %v2879 = vpop.f32.mrf.mxu0
        %v2880 = vadd.f32 %v2831, %v2879
        %2881 = vmatmul.bf16.gmra.mxu0 %v2528
        %v2882 = vpop.f32.mrf.mxu0
        %v2883 = vadd.f32 %v2834, %v2882
        %v2884 = vpop.f32.mrf.mxu0
        %v2885 = vadd.f32 %v2836, %v2884
        %2886 = vmatmul.bf16.gmra.mxu0 %v2532
        %v2887 = vpop.f32.mrf.mxu0
        %v2888 = vadd.f32 %v2839, %v2887
        %v2889 = vpop.f32.mrf.mxu0
        %v2890 = vadd.f32 %v2841, %v2889
        %2891 = vmatmul.bf16.gmra.mxu0 %v2536
        %v2892 = vpop.f32.mrf.mxu0
        %v2893 = vadd.f32 %v2844, %v2892
        %v2894 = vpop.f32.mrf.mxu0
        %v2895 = vadd.f32 %v2846, %v2894
        %2896 = vdwg.mxu0
        %2897 = vmatpush.bf16.msra.mxu0 %v2758
        %2898 = vmatpush.bf16.msra.mxu0 %v2757
        %2899 = vmatpush.bf16.msra.mxu0 %v2756
        %2900 = vmatpush.bf16.msra.mxu0 %v2755
        %2901 = vmatpush.bf16.msra.mxu0 %v2754
        %2902 = vmatpush.bf16.msra.mxu0 %v2753
        %2903 = vmatpush.bf16.msra.mxu0 %v2752
        %2904 = vmatpush.bf16.msra.mxu0 %v2751
        %2905 = vmatmul.bf16.gmra.mxu0 %v2509
        %v2906 = vpop.f32.mrf.mxu0
        %v2907 = vadd.f32 %v2858, %v2906
        %v2908 = vpop.f32.mrf.mxu0
        %v2909 = vadd.f32 %v2860, %v2908
        %2910 = vmatmul.bf16.gmra.mxu0 %v2513
        %v2911 = vpop.f32.mrf.mxu0
        %v2912 = vadd.f32 %v2863, %v2911
        %v2913 = vpop.f32.mrf.mxu0
        %v2914 = vadd.f32 %v2865, %v2913
        %2915 = vmatmul.bf16.gmra.mxu0 %v2517
        %v2916 = vpop.f32.mrf.mxu0
        %v2917 = vadd.f32 %v2868, %v2916
        %v2918 = vpop.f32.mrf.mxu0
        %v2919 = vadd.f32 %v2870, %v2918
        %2920 = vmatmul.bf16.gmra.mxu0 %v2521
        %v2921 = vpop.f32.mrf.mxu0
        %v2922 = vadd.f32 %v2873, %v2921
        %v2923 = vpop.f32.mrf.mxu0
        %v2924 = vadd.f32 %v2875, %v2923
        %2925 = vmatmul.bf16.gmra.mxu0 %v2525
        %v2926 = vpop.f32.mrf.mxu0
        %v2927 = vadd.f32 %v2878, %v2926
        %v2928 = vpop.f32.mrf.mxu0
        %v2929 = vadd.f32 %v2880, %v2928
        %2930 = vmatmul.bf16.gmra.mxu0 %v2529
        %v2931 = vpop.f32.mrf.mxu0
        %v2932 = vadd.f32 %v2883, %v2931
        %v2933 = vpop.f32.mrf.mxu0
        %v2934 = vadd.f32 %v2885, %v2933
        %2935 = vmatmul.bf16.gmra.mxu0 %v2533
        %v2936 = vpop.f32.mrf.mxu0
        %v2937 = vadd.f32 %v2888, %v2936
        %v2938 = vpop.f32.mrf.mxu0
        %v2939 = vadd.f32 %v2890, %v2938
        %2940 = vmatmul.bf16.gmra.mxu0 %v2537
        %v2941 = vpop.f32.mrf.mxu0
        %v2942 = vadd.f32 %v2893, %v2941
        %v2943 = vpop.f32.mrf.mxu0
        %v2944 = vadd.f32 %v2895, %v2943
        %2945 = vdwg.mxu0
        %2946 = vmatpush.bf16.msra.mxu0 %v2766
        %2947 = vmatpush.bf16.msra.mxu0 %v2765
        %2948 = vmatpush.bf16.msra.mxu0 %v2764
        %2949 = vmatpush.bf16.msra.mxu0 %v2763
        %2950 = vmatpush.bf16.msra.mxu0 %v2762
        %2951 = vmatpush.bf16.msra.mxu0 %v2761
        %2952 = vmatpush.bf16.msra.mxu0 %v2760
        %2953 = vmatpush.bf16.msra.mxu0 %v2759
        %2954 = vmatmul.bf16.gmra.mxu0 %v2510
        %v2955 = vpop.f32.mrf.mxu0
        %v2956 = vadd.f32 %v2907, %v2955
        %v2957 = vpop.f32.mrf.mxu0
        %v2958 = vadd.f32 %v2909, %v2957
        %2959 = vmatmul.bf16.gmra.mxu0 %v2514
        %v2960 = vpop.f32.mrf.mxu0
        %v2961 = vadd.f32 %v2912, %v2960
        %v2962 = vpop.f32.mrf.mxu0
        %v2963 = vadd.f32 %v2914, %v2962
        %2964 = vmatmul.bf16.gmra.mxu0 %v2518
        %v2965 = vpop.f32.mrf.mxu0
        %v2966 = vadd.f32 %v2917, %v2965
        %v2967 = vpop.f32.mrf.mxu0
        %v2968 = vadd.f32 %v2919, %v2967
        %2969 = vmatmul.bf16.gmra.mxu0 %v2522
        %v2970 = vpop.f32.mrf.mxu0
        %v2971 = vadd.f32 %v2922, %v2970
        %v2972 = vpop.f32.mrf.mxu0
        %v2973 = vadd.f32 %v2924, %v2972
        %2974 = vmatmul.bf16.gmra.mxu0 %v2526
        %v2975 = vpop.f32.mrf.mxu0
        %v2976 = vadd.f32 %v2927, %v2975
        %v2977 = vpop.f32.mrf.mxu0
        %v2978 = vadd.f32 %v2929, %v2977
        %2979 = vmatmul.bf16.gmra.mxu0 %v2530
        %v2980 = vpop.f32.mrf.mxu0
        %v2981 = vadd.f32 %v2932, %v2980
        %v2982 = vpop.f32.mrf.mxu0
        %v2983 = vadd.f32 %v2934, %v2982
        %2984 = vmatmul.bf16.gmra.mxu0 %v2534
        %v2985 = vpop.f32.mrf.mxu0
        %v2986 = vadd.f32 %v2937, %v2985
        %v2987 = vpop.f32.mrf.mxu0
        %v2988 = vadd.f32 %v2939, %v2987
        %2989 = vmatmul.bf16.gmra.mxu0 %v2538
        %v2990 = vpop.f32.mrf.mxu0
        %v2991 = vadd.f32 %v2942, %v2990
        %v2992 = vpop.f32.mrf.mxu0
        %v2993 = vadd.f32 %v2944, %v2992
        %2994 = vdwg.mxu0
        %3011 = vrot.lane.b32.xlu0 %v2956, 119
        %v3012 = vpop.permute.xlu0 %3011
        %3013 = vrot.lane.b32.xlu0 %v2958, 119
        %v3014 = vpop.permute.xlu0 %3013
        %3015 = vrot.lane.b32.xlu0 %v2961, 119
        %v3016 = vpop.permute.xlu0 %3015
        %3017 = vrot.lane.b32.xlu0 %v2963, 119
        %v3018 = vpop.permute.xlu0 %3017
        %3019 = vrot.lane.b32.xlu0 %v2966, 119
        %v3020 = vpop.permute.xlu0 %3019
        %3021 = vrot.lane.b32.xlu0 %v2968, 119
        %v3022 = vpop.permute.xlu0 %3021
        %3023 = vrot.lane.b32.xlu0 %v2971, 119
        %v3024 = vpop.permute.xlu0 %3023
        %3025 = vrot.lane.b32.xlu0 %v2973, 119
        %v3026 = vpop.permute.xlu0 %3025
        %3027 = vrot.lane.b32.xlu0 %v2976, 119
        %v3028 = vpop.permute.xlu0 %3027
        %3029 = vrot.lane.b32.xlu0 %v2978, 119
        %v3030 = vpop.permute.xlu0 %3029
        %3031 = vrot.lane.b32.xlu0 %v2981, 119
        %v3032 = vpop.permute.xlu0 %3031
        %3033 = vrot.lane.b32.xlu0 %v2983, 119
        %v3034 = vpop.permute.xlu0 %3033
        %3035 = vrot.lane.b32.xlu0 %v2986, 119
        %v3036 = vpop.permute.xlu0 %3035
        %3037 = vrot.lane.b32.xlu0 %v2988, 119
        %v3038 = vpop.permute.xlu0 %3037
        %3039 = vrot.lane.b32.xlu0 %v2991, 119
        %v3040 = vpop.permute.xlu0 %3039
        %3041 = vrot.lane.b32.xlu0 %v2993, 119
        %v3042 = vpop.permute.xlu0 %3041
        %v3059 = vmax.f32 %v2956, %v3012
        %v3060 = vmax.f32 %v2958, %v3014
        %v3061 = vmax.f32 %v2961, %v3016
        %v3062 = vmax.f32 %v2963, %v3018
        %v3063 = vmax.f32 %v2966, %v3020
        %v3064 = vmax.f32 %v2968, %v3022
        %v3065 = vmax.f32 %v2971, %v3024
        %v3066 = vmax.f32 %v2973, %v3026
        %v3067 = vmax.f32 %v2976, %v3028
        %v3068 = vmax.f32 %v2978, %v3030
        %v3069 = vmax.f32 %v2981, %v3032
        %v3070 = vmax.f32 %v2983, %v3034
        %v3071 = vmax.f32 %v2986, %v3036
        %v3072 = vmax.f32 %v2988, %v3038
        %v3073 = vmax.f32 %v2991, %v3040
        %v3074 = vmax.f32 %v2993, %v3042
        %v3075 = vsub.f32 %v2956, %v3059
        %v3076 = vsub.f32 %v2958, %v3060
        %v3077 = vsub.f32 %v2961, %v3061
        %v3078 = vsub.f32 %v2963, %v3062
        %v3079 = vsub.f32 %v2966, %v3063
        %v3080 = vsub.f32 %v2968, %v3064
        %v3081 = vsub.f32 %v2971, %v3065
        %v3082 = vsub.f32 %v2973, %v3066
        %v3083 = vsub.f32 %v2976, %v3067
        %v3084 = vsub.f32 %v2978, %v3068
        %v3085 = vsub.f32 %v2981, %v3069
        %v3086 = vsub.f32 %v2983, %v3070
        %v3087 = vsub.f32 %v2986, %v3071
        %v3088 = vsub.f32 %v2988, %v3072
        %v3089 = vsub.f32 %v2991, %v3073
        %v3090 = vsub.f32 %v2993, %v3074
        %v3091 = vmul.f32 %v3075, 1.442695
        %v3092 = vpow.pop %v3091
        %v3093 = vmul.f32 %v3076, 1.442695
        %v3094 = vpow.pop %v3093
        %v3095 = vmul.f32 %v3077, 1.442695
        %v3096 = vpow.pop %v3095
        %v3097 = vmul.f32 %v3078, 1.442695
        %v3098 = vpow.pop %v3097
        %v3099 = vmul.f32 %v3079, 1.442695
        %v3100 = vpow.pop %v3099
        %v3101 = vmul.f32 %v3080, 1.442695
        %v3102 = vpow.pop %v3101
        %v3103 = vmul.f32 %v3081, 1.442695
        %v3104 = vpow.pop %v3103
        %v3105 = vmul.f32 %v3082, 1.442695
        %v3106 = vpow.pop %v3105
        %v3107 = vmul.f32 %v3083, 1.442695
        %v3108 = vpow.pop %v3107
        %v3109 = vmul.f32 %v3084, 1.442695
        %v3110 = vpow.pop %v3109
        %v3111 = vmul.f32 %v3085, 1.442695
        %v3112 = vpow.pop %v3111
        %v3113 = vmul.f32 %v3086, 1.442695
        %v3114 = vpow.pop %v3113
        %v3115 = vmul.f32 %v3087, 1.442695
        %v3116 = vpow.pop %v3115
        %v3117 = vmul.f32 %v3088, 1.442695
        %v3118 = vpow.pop %v3117
        %v3119 = vmul.f32 %v3089, 1.442695
        %v3120 = vpow.pop %v3119
        %v3121 = vmul.f32 %v3090, 1.442695
        %v3122 = vpow.pop %v3121
        %3139 = vrot.lane.b32.xlu0 %v3059, 9
        %v3140 = vpop.permute.xlu0 %3139
        %3141 = vrot.lane.b32.xlu0 %v3060, 9
        %v3142 = vpop.permute.xlu0 %3141
        %3143 = vrot.lane.b32.xlu0 %v3061, 9
        %v3144 = vpop.permute.xlu0 %3143
        %3145 = vrot.lane.b32.xlu0 %v3062, 9
        %v3146 = vpop.permute.xlu0 %3145
        %3147 = vrot.lane.b32.xlu0 %v3063, 9
        %v3148 = vpop.permute.xlu0 %3147
        %3149 = vrot.lane.b32.xlu0 %v3064, 9
        %v3150 = vpop.permute.xlu0 %3149
        %3151 = vrot.lane.b32.xlu0 %v3065, 9
        %v3152 = vpop.permute.xlu0 %3151
        %3153 = vrot.lane.b32.xlu0 %v3066, 9
        %v3154 = vpop.permute.xlu0 %3153
        %3155 = vrot.lane.b32.xlu0 %v3067, 9
        %v3156 = vpop.permute.xlu0 %3155
        %3157 = vrot.lane.b32.xlu0 %v3068, 9
        %v3158 = vpop.permute.xlu0 %3157
        %3159 = vrot.lane.b32.xlu0 %v3069, 9
        %v3160 = vpop.permute.xlu0 %3159
        %3161 = vrot.lane.b32.xlu0 %v3070, 9
        %v3162 = vpop.permute.xlu0 %3161
        %3163 = vrot.lane.b32.xlu0 %v3071, 9
        %v3164 = vpop.permute.xlu0 %3163
        %3165 = vrot.lane.b32.xlu0 %v3072, 9
        %v3166 = vpop.permute.xlu0 %3165
        %3167 = vrot.lane.b32.xlu0 %v3073, 9
        %v3168 = vpop.permute.xlu0 %3167
        %3169 = vrot.lane.b32.xlu0 %v3074, 9
        %v3170 = vpop.permute.xlu0 %3169
        %v3187 = vsub.f32 %v2956, %v3140
        %v3188 = vsub.f32 %v2958, %v3142
        %v3189 = vsub.f32 %v2961, %v3144
        %v3190 = vsub.f32 %v2963, %v3146
        %v3191 = vsub.f32 %v2966, %v3148
        %v3192 = vsub.f32 %v2968, %v3150
        %v3193 = vsub.f32 %v2971, %v3152
        %v3194 = vsub.f32 %v2973, %v3154
        %v3195 = vsub.f32 %v2976, %v3156
        %v3196 = vsub.f32 %v2978, %v3158
        %v3197 = vsub.f32 %v2981, %v3160
        %v3198 = vsub.f32 %v2983, %v3162
        %v3199 = vsub.f32 %v2986, %v3164
        %v3200 = vsub.f32 %v2988, %v3166
        %v3201 = vsub.f32 %v2991, %v3168
        %v3202 = vsub.f32 %v2993, %v3170
        %v3203 = vmul.f32 %v3187, 1.442695
        %v3204 = vpow.pop %v3203
        %v3205 = vmul.f32 %v3188, 1.442695
        %v3206 = vpow.pop %v3205
        %v3207 = vmul.f32 %v3189, 1.442695
        %v3208 = vpow.pop %v3207
        %v3209 = vmul.f32 %v3190, 1.442695
        %v3210 = vpow.pop %v3209
        %v3211 = vmul.f32 %v3191, 1.442695
        %v3212 = vpow.pop %v3211
        %v3213 = vmul.f32 %v3192, 1.442695
        %v3214 = vpow.pop %v3213
        %v3215 = vmul.f32 %v3193, 1.442695
        %v3216 = vpow.pop %v3215
        %v3217 = vmul.f32 %v3194, 1.442695
        %v3218 = vpow.pop %v3217
        %v3219 = vmul.f32 %v3195, 1.442695
        %v3220 = vpow.pop %v3219
        %v3221 = vmul.f32 %v3196, 1.442695
        %v3222 = vpow.pop %v3221
        %v3223 = vmul.f32 %v3197, 1.442695
        %v3224 = vpow.pop %v3223
        %v3225 = vmul.f32 %v3198, 1.442695
        %v3226 = vpow.pop %v3225
        %v3227 = vmul.f32 %v3199, 1.442695
        %v3228 = vpow.pop %v3227
        %v3229 = vmul.f32 %v3200, 1.442695
        %v3230 = vpow.pop %v3229
        %v3231 = vmul.f32 %v3201, 1.442695
        %v3232 = vpow.pop %v3231
        %v3233 = vmul.f32 %v3202, 1.442695
        %v3234 = vpow.pop %v3233
        %3251 = vrot.lane.b32.xlu0 %v3204, 119
        %v3252 = vpop.permute.xlu0 %3251
        %3253 = vrot.lane.b32.xlu0 %v3206, 119
        %v3254 = vpop.permute.xlu0 %3253
        %3255 = vrot.lane.b32.xlu0 %v3208, 119
        %v3256 = vpop.permute.xlu0 %3255
        %3257 = vrot.lane.b32.xlu0 %v3210, 119
        %v3258 = vpop.permute.xlu0 %3257
        %3259 = vrot.lane.b32.xlu0 %v3212, 119
        %v3260 = vpop.permute.xlu0 %3259
        %3261 = vrot.lane.b32.xlu0 %v3214, 119
        %v3262 = vpop.permute.xlu0 %3261
        %3263 = vrot.lane.b32.xlu0 %v3216, 119
        %v3264 = vpop.permute.xlu0 %3263
        %3265 = vrot.lane.b32.xlu0 %v3218, 119
        %v3266 = vpop.permute.xlu0 %3265
        %3267 = vrot.lane.b32.xlu0 %v3220, 119
        %v3268 = vpop.permute.xlu0 %3267
        %3269 = vrot.lane.b32.xlu0 %v3222, 119
        %v3270 = vpop.permute.xlu0 %3269
        %3271 = vrot.lane.b32.xlu0 %v3224, 119
        %v3272 = vpop.permute.xlu0 %3271
        %3273 = vrot.lane.b32.xlu0 %v3226, 119
        %v3274 = vpop.permute.xlu0 %3273
        %3275 = vrot.lane.b32.xlu0 %v3228, 119
        %v3276 = vpop.permute.xlu0 %3275
        %3277 = vrot.lane.b32.xlu0 %v3230, 119
        %v3278 = vpop.permute.xlu0 %3277
        %3279 = vrot.lane.b32.xlu0 %v3232, 119
        %v3280 = vpop.permute.xlu0 %3279
        %3281 = vrot.lane.b32.xlu0 %v3234, 119
        %v3282 = vpop.permute.xlu0 %3281
        %v3299 = vadd.f32 %v3092, %v3252
        %v3300 = vadd.f32 %v3094, %v3254
        %v3301 = vadd.f32 %v3096, %v3256
        %v3302 = vadd.f32 %v3098, %v3258
        %v3303 = vadd.f32 %v3100, %v3260
        %v3304 = vadd.f32 %v3102, %v3262
        %v3305 = vadd.f32 %v3104, %v3264
        %v3306 = vadd.f32 %v3106, %v3266
        %v3307 = vadd.f32 %v3108, %v3268
        %v3308 = vadd.f32 %v3110, %v3270
        %v3309 = vadd.f32 %v3112, %v3272
        %v3310 = vadd.f32 %v3114, %v3274
        %v3311 = vadd.f32 %v3116, %v3276
        %v3312 = vadd.f32 %v3118, %v3278
        %v3313 = vadd.f32 %v3120, %v3280
        %v3314 = vadd.f32 %v3122, %v3282
        %v3315 = vrcp.pop %v3299
        %v3316 = vrcp.pop %v3300
        %v3317 = vrcp.pop %v3301
        %v3318 = vrcp.pop %v3302
        %v3319 = vrcp.pop %v3303
        %v3320 = vrcp.pop %v3304
        %v3321 = vrcp.pop %v3305
        %v3322 = vrcp.pop %v3306
        %v3323 = vrcp.pop %v3307
        %v3324 = vrcp.pop %v3308
        %v3325 = vrcp.pop %v3309
        %v3326 = vrcp.pop %v3310
        %v3327 = vrcp.pop %v3311
        %v3328 = vrcp.pop %v3312
        %v3329 = vrcp.pop %v3313
        %v3330 = vrcp.pop %v3314
        %v3331 = vmul.f32 %v3299, %v3315
        %v3332 = vmul.f32 %v3300, %v3316
        %v3333 = vmul.f32 %v3301, %v3317
        %v3334 = vmul.f32 %v3302, %v3318
        %v3335 = vmul.f32 %v3303, %v3319
        %v3336 = vmul.f32 %v3304, %v3320
        %v3337 = vmul.f32 %v3305, %v3321
        %v3338 = vmul.f32 %v3306, %v3322
        %v3339 = vmul.f32 %v3307, %v3323
        %v3340 = vmul.f32 %v3308, %v3324
        %v3341 = vmul.f32 %v3309, %v3325
        %v3342 = vmul.f32 %v3310, %v3326
        %v3343 = vmul.f32 %v3311, %v3327
        %v3344 = vmul.f32 %v3312, %v3328
        %v3345 = vmul.f32 %v3313, %v3329
        %v3346 = vmul.f32 %v3314, %v3330
        %v3347 = vsub.f32 2.0, %v3331
        %v3348 = vsub.f32 2.0, %v3332
        %v3349 = vsub.f32 2.0, %v3333
        %v3350 = vsub.f32 2.0, %v3334
        %v3351 = vsub.f32 2.0, %v3335
        %v3352 = vsub.f32 2.0, %v3336
        %v3353 = vsub.f32 2.0, %v3337
        %v3354 = vsub.f32 2.0, %v3338
        %v3355 = vsub.f32 2.0, %v3339
        %v3356 = vsub.f32 2.0, %v3340
        %v3357 = vsub.f32 2.0, %v3341
        %v3358 = vsub.f32 2.0, %v3342
        %v3359 = vsub.f32 2.0, %v3343
        %v3360 = vsub.f32 2.0, %v3344
        %v3361 = vsub.f32 2.0, %v3345
        %v3362 = vsub.f32 2.0, %v3346
        %v3363 = vmul.f32 %v3315, %v3347
        %v3364 = vmul.f32 %v3316, %v3348
        %v3365 = vmul.f32 %v3317, %v3349
        %v3366 = vmul.f32 %v3318, %v3350
        %v3367 = vmul.f32 %v3319, %v3351
        %v3368 = vmul.f32 %v3320, %v3352
        %v3369 = vmul.f32 %v3321, %v3353
        %v3370 = vmul.f32 %v3322, %v3354
        %v3371 = vmul.f32 %v3323, %v3355
        %v3372 = vmul.f32 %v3324, %v3356
        %v3373 = vmul.f32 %v3325, %v3357
        %v3374 = vmul.f32 %v3326, %v3358
        %v3375 = vmul.f32 %v3327, %v3359
        %v3376 = vmul.f32 %v3328, %v3360
        %v3377 = vmul.f32 %v3329, %v3361
        %v3378 = vmul.f32 %v3330, %v3362
        %3379 = vst [vmem:[%s433] sm:$0xff] %v2956
        %3380 = vst [vmem:[%s433 + $0x8] sm:$0xff] %v2958
        %3381 = vst [vmem:[%s433 + $0x10] sm:$0xff] %v2961
        %3382 = vst [vmem:[%s433 + $0x18] sm:$0xff] %v2963
        %3383 = vst [vmem:[%s433 + $0x20] sm:$0xff] %v2966
        %3384 = vst [vmem:[%s433 + $0x28] sm:$0xff] %v2968
        %3385 = vst [vmem:[%s433 + $0x30] sm:$0xff] %v2971
        %3386 = vst [vmem:[%s433 + $0x38] sm:$0xff] %v2973
        %3387 = vst [vmem:[%s433 + $0x40] sm:$0xff] %v2976
        %3388 = vst [vmem:[%s433 + $0x48] sm:$0xff] %v2978
        %3389 = vst [vmem:[%s433 + $0x50] sm:$0xff] %v2981
        %3390 = vst [vmem:[%s433 + $0x58] sm:$0xff] %v2983
        %3391 = vst [vmem:[%s433 + $0x60] sm:$0xff] %v2986
        %3392 = vst [vmem:[%s433 + $0x68] sm:$0xff] %v2988
        %3393 = vst [vmem:[%s433 + $0x70] sm:$0xff] %v2991
        %3394 = vst [vmem:[%s433 + $0x78] sm:$0xff] %v2993
        %v3395 = vmul.f32 %v3092, %v3363
        %v3396 = vmul.f32 %v3094, %v3364
        %v3397 = vmul.f32 %v3096, %v3365
        %v3398 = vmul.f32 %v3098, %v3366
        %v3399 = vmul.f32 %v3100, %v3367
        %v3400 = vmul.f32 %v3102, %v3368
        %v3401 = vmul.f32 %v3104, %v3369
        %v3402 = vmul.f32 %v3106, %v3370
        %v3403 = vmul.f32 %v3108, %v3371
        %v3404 = vmul.f32 %v3110, %v3372
        %v3405 = vmul.f32 %v3112, %v3373
        %v3406 = vmul.f32 %v3114, %v3374
        %v3407 = vmul.f32 %v3116, %v3375
        %v3408 = vmul.f32 %v3118, %v3376
        %v3409 = vmul.f32 %v3120, %v3377
        %v3410 = vmul.f32 %v3122, %v3378
        %3427 = vrot.lane.b32.xlu0 %v3395, 54
        %v3428 = vpop.permute.xlu0 %3427
        %3429 = vrot.lane.b32.xlu0 %v3396, 54
        %v3430 = vpop.permute.xlu0 %3429
        %3431 = vrot.lane.b32.xlu0 %v3397, 54
        %v3432 = vpop.permute.xlu0 %3431
        %3433 = vrot.lane.b32.xlu0 %v3398, 54
        %v3434 = vpop.permute.xlu0 %3433
        %3435 = vrot.lane.b32.xlu0 %v3399, 54
        %v3436 = vpop.permute.xlu0 %3435
        %3437 = vrot.lane.b32.xlu0 %v3400, 54
        %v3438 = vpop.permute.xlu0 %3437
        %3439 = vrot.lane.b32.xlu0 %v3401, 54
        %v3440 = vpop.permute.xlu0 %3439
        %3441 = vrot.lane.b32.xlu0 %v3402, 54
        %v3442 = vpop.permute.xlu0 %3441
        %3443 = vrot.lane.b32.xlu0 %v3403, 54
        %v3444 = vpop.permute.xlu0 %3443
        %3445 = vrot.lane.b32.xlu0 %v3404, 54
        %v3446 = vpop.permute.xlu0 %3445
        %3447 = vrot.lane.b32.xlu0 %v3405, 54
        %v3448 = vpop.permute.xlu0 %3447
        %3449 = vrot.lane.b32.xlu0 %v3406, 54
        %v3450 = vpop.permute.xlu0 %3449
        %3451 = vrot.lane.b32.xlu0 %v3407, 54
        %v3452 = vpop.permute.xlu0 %3451
        %3453 = vrot.lane.b32.xlu0 %v3408, 54
        %v3454 = vpop.permute.xlu0 %3453
        %3455 = vrot.lane.b32.xlu0 %v3409, 54
        %v3456 = vpop.permute.xlu0 %3455
        %3457 = vrot.lane.b32.xlu0 %v3410, 54
        %v3458 = vpop.permute.xlu0 %3457
        %vm3475 = vcmask 515504
        %3476 = vst.msk [vmem:[%s433] sm:$0xff] %vm3475, %v3428
        %3477 = vst.msk [vmem:[%s433 + $0x8] sm:$0xff] %vm3475, %v3430
        %3478 = vst.msk [vmem:[%s433 + $0x10] sm:$0xff] %vm3475, %v3432
        %3479 = vst.msk [vmem:[%s433 + $0x18] sm:$0xff] %vm3475, %v3434
        %3480 = vst.msk [vmem:[%s433 + $0x20] sm:$0xff] %vm3475, %v3436
        %3481 = vst.msk [vmem:[%s433 + $0x28] sm:$0xff] %vm3475, %v3438
        %3482 = vst.msk [vmem:[%s433 + $0x30] sm:$0xff] %vm3475, %v3440
        %3483 = vst.msk [vmem:[%s433 + $0x38] sm:$0xff] %vm3475, %v3442
        %3484 = vst.msk [vmem:[%s433 + $0x40] sm:$0xff] %vm3475, %v3444
        %3485 = vst.msk [vmem:[%s433 + $0x48] sm:$0xff] %vm3475, %v3446
        %3486 = vst.msk [vmem:[%s433 + $0x50] sm:$0xff] %vm3475, %v3448
        %3487 = vst.msk [vmem:[%s433 + $0x58] sm:$0xff] %vm3475, %v3450
        %3488 = vst.msk [vmem:[%s433 + $0x60] sm:$0xff] %vm3475, %v3452
        %3489 = vst.msk [vmem:[%s433 + $0x68] sm:$0xff] %vm3475, %v3454
        %3490 = vst.msk [vmem:[%s433 + $0x70] sm:$0xff] %vm3475, %v3456
        %3491 = vst.msk [vmem:[%s433 + $0x78] sm:$0xff] %vm3475, %v3458
        %3508 = vrot.lane.b32.xlu0 %v3363, 9
        %v3509 = vpop.permute.xlu0 %3508
        %3510 = vrot.lane.b32.xlu0 %v3364, 9
        %v3511 = vpop.permute.xlu0 %3510
        %3512 = vrot.lane.b32.xlu0 %v3365, 9
        %v3513 = vpop.permute.xlu0 %3512
        %3514 = vrot.lane.b32.xlu0 %v3366, 9
        %v3515 = vpop.permute.xlu0 %3514
        %3516 = vrot.lane.b32.xlu0 %v3367, 9
        %v3517 = vpop.permute.xlu0 %3516
        %3518 = vrot.lane.b32.xlu0 %v3368, 9
        %v3519 = vpop.permute.xlu0 %3518
        %3520 = vrot.lane.b32.xlu0 %v3369, 9
        %v3521 = vpop.permute.xlu0 %3520
        %3522 = vrot.lane.b32.xlu0 %v3370, 9
        %v3523 = vpop.permute.xlu0 %3522
        %3524 = vrot.lane.b32.xlu0 %v3371, 9
        %v3525 = vpop.permute.xlu0 %3524
        %3526 = vrot.lane.b32.xlu0 %v3372, 9
        %v3527 = vpop.permute.xlu0 %3526
        %3528 = vrot.lane.b32.xlu0 %v3373, 9
        %v3529 = vpop.permute.xlu0 %3528
        %3530 = vrot.lane.b32.xlu0 %v3374, 9
        %v3531 = vpop.permute.xlu0 %3530
        %3532 = vrot.lane.b32.xlu0 %v3375, 9
        %v3533 = vpop.permute.xlu0 %3532
        %3534 = vrot.lane.b32.xlu0 %v3376, 9
        %v3535 = vpop.permute.xlu0 %3534
        %3536 = vrot.lane.b32.xlu0 %v3377, 9
        %v3537 = vpop.permute.xlu0 %3536
        %3538 = vrot.lane.b32.xlu0 %v3378, 9
        %v3539 = vpop.permute.xlu0 %3538
        %v3556 = vmul.f32 %v3204, %v3509
        %v3557 = vmul.f32 %v3206, %v3511
        %v3558 = vmul.f32 %v3208, %v3513
        %v3559 = vmul.f32 %v3210, %v3515
        %v3560 = vmul.f32 %v3212, %v3517
        %v3561 = vmul.f32 %v3214, %v3519
        %v3562 = vmul.f32 %v3216, %v3521
        %v3563 = vmul.f32 %v3218, %v3523
        %v3564 = vmul.f32 %v3220, %v3525
        %v3565 = vmul.f32 %v3222, %v3527
        %v3566 = vmul.f32 %v3224, %v3529
        %v3567 = vmul.f32 %v3226, %v3531
        %v3568 = vmul.f32 %v3228, %v3533
        %v3569 = vmul.f32 %v3230, %v3535
        %v3570 = vmul.f32 %v3232, %v3537
        %v3571 = vmul.f32 %v3234, %v3539
        %3588 = vrot.lane.b32.xlu0 %v3556, 54
        %v3589 = vpop.permute.xlu0 %3588
        %3590 = vrot.lane.b32.xlu0 %v3557, 54
        %v3591 = vpop.permute.xlu0 %3590
        %3592 = vrot.lane.b32.xlu0 %v3558, 54
        %v3593 = vpop.permute.xlu0 %3592
        %3594 = vrot.lane.b32.xlu0 %v3559, 54
        %v3595 = vpop.permute.xlu0 %3594
        %3596 = vrot.lane.b32.xlu0 %v3560, 54
        %v3597 = vpop.permute.xlu0 %3596
        %3598 = vrot.lane.b32.xlu0 %v3561, 54
        %v3599 = vpop.permute.xlu0 %3598
        %3600 = vrot.lane.b32.xlu0 %v3562, 54
        %v3601 = vpop.permute.xlu0 %3600
        %3602 = vrot.lane.b32.xlu0 %v3563, 54
        %v3603 = vpop.permute.xlu0 %3602
        %3604 = vrot.lane.b32.xlu0 %v3564, 54
        %v3605 = vpop.permute.xlu0 %3604
        %3606 = vrot.lane.b32.xlu0 %v3565, 54
        %v3607 = vpop.permute.xlu0 %3606
        %3608 = vrot.lane.b32.xlu0 %v3566, 54
        %v3609 = vpop.permute.xlu0 %3608
        %3610 = vrot.lane.b32.xlu0 %v3567, 54
        %v3611 = vpop.permute.xlu0 %3610
        %3612 = vrot.lane.b32.xlu0 %v3568, 54
        %v3613 = vpop.permute.xlu0 %3612
        %3614 = vrot.lane.b32.xlu0 %v3569, 54
        %v3615 = vpop.permute.xlu0 %3614
        %3616 = vrot.lane.b32.xlu0 %v3570, 54
        %v3617 = vpop.permute.xlu0 %3616
        %3618 = vrot.lane.b32.xlu0 %v3571, 54
        %v3619 = vpop.permute.xlu0 %3618
        %vm3636 = vcmask 589304
        %3637 = vst.msk [vmem:[%s433] sm:$0xff] %vm3636, %v3589
        %3638 = vst.msk [vmem:[%s433 + $0x8] sm:$0xff] %vm3636, %v3591
        %3639 = vst.msk [vmem:[%s433 + $0x10] sm:$0xff] %vm3636, %v3593
        %3640 = vst.msk [vmem:[%s433 + $0x18] sm:$0xff] %vm3636, %v3595
        %3641 = vst.msk [vmem:[%s433 + $0x20] sm:$0xff] %vm3636, %v3597
        %3642 = vst.msk [vmem:[%s433 + $0x28] sm:$0xff] %vm3636, %v3599
        %3643 = vst.msk [vmem:[%s433 + $0x30] sm:$0xff] %vm3636, %v3601
        %3644 = vst.msk [vmem:[%s433 + $0x38] sm:$0xff] %vm3636, %v3603
        %3645 = vst.msk [vmem:[%s433 + $0x40] sm:$0xff] %vm3636, %v3605
        %3646 = vst.msk [vmem:[%s433 + $0x48] sm:$0xff] %vm3636, %v3607
        %3647 = vst.msk [vmem:[%s433 + $0x50] sm:$0xff] %vm3636, %v3609
        %3648 = vst.msk [vmem:[%s433 + $0x58] sm:$0xff] %vm3636, %v3611
        %3649 = vst.msk [vmem:[%s433 + $0x60] sm:$0xff] %vm3636, %v3613
        %3650 = vst.msk [vmem:[%s433 + $0x68] sm:$0xff] %vm3636, %v3615
        %3651 = vst.msk [vmem:[%s433 + $0x70] sm:$0xff] %vm3636, %v3617
        %3652 = vst.msk [vmem:[%s433 + $0x78] sm:$0xff] %vm3636, %v3619
        %s3653 = smul.u32 16, %s25
        %p3654 = scmp.lt.s32.totalorder %s24, 1
        %s3655 = scalar_select %p3654, %s24, 1
        %p3656 = scmp.lt.s32.totalorder %s3653, 31
        %s3657 = scalar_select %p3656, %s3653, 31
        %s3658 = smul.addr %s3655, 32
        %s3659 = sadd.s32 %s3657, %s3658
        %s3660 = smul.addr %s3659, 8
        %s3661 = scalar_lea.vmem %s6, %s3660
        // Predicated region
        $region61: #{rpn_forward.1} parent=43 // pred_check
          %p3662 = pneg %p196
        $region62: #{rpn_forward.1} parent=43 // pred_check_branch
          %3664 = sbr.rel (%p3662) target = $region64
        $region63: #{rpn_forward.1} parent=43 // pred_region
          %s3665 = smul.u32 16, %s25
        $region64: #{rpn_forward.1} parent=43 // pred_fallthru
          _
      $region44: #{rpn_forward.1} parent=5 // pred_fallthru
        _
      %p3666 = scmp.le.s32.totalorder 2, %s15
      // Predicated region
      $region65: #{rpn_forward.1} parent=5 // pred_check
        %p3667 = pneg %p3666
      $region66: #{rpn_forward.1} parent=5 // pred_check_branch
        %3669 = sbr.rel (%p3667) target = $region68
      $region67: #{rpn_forward.1} parent=5 // pred_region
        %s3670 = ssub.s32 %s15, 2
        // Predicated region
        $region69: #{rpn_forward.1} parent=67 // pred_check
          %p3671 = pneg %p202
        $region70: #{rpn_forward.1} parent=67 // pred_check_branch
          %3673 = sbr.rel (%p3671) target = $region72
        $region71: #{rpn_forward.1} parent=67 // pred_region
          %s3674 = smul.u32 16, %s27
          %p3675 = scmp.lt.s32.totalorder %s26, 1
          %s3676 = scalar_select %p3675, %s26, 1
          %p3677 = scmp.lt.s32.totalorder %s3674, 31
          %s3678 = scalar_select %p3677, %s3674, 31
          %s3679 = smul.addr %s3676, 32
          %s3680 = sadd.s32 %s3678, %s3679
          %s3681 = smul.addr %s3680, 8
          %s3682 = scalar_lea.vmem %s6, %s3681
        $region72: #{rpn_forward.1} parent=67 // pred_fallthru
          _
      $region68: #{rpn_forward.1} parent=5 // pred_fallthru
        _
    $region6: #{rpn_forward.1} parent=1 // loop_footer
      %s19 = sadd.s32 1, %s15
    $region7: #{rpn_forward.1} parent=1 // loop_footer_branch
      %14 = sbr.rel target = $region3
    $region8: #{rpn_forward.1} parent=1 // loop_exit
      _
    %3683 = vsyncpa [#allocation5], 1
    %s3684 = scalar_lea.sflag [#allocation5], 1
    %3685 = vsyncpa %s3684, 1
    %3686 = vsyncpa [#allocation7], 1
    %3687 = vsyncpa [#allocation10], 1

// kernel: custom-call
$region0: #{custom-call}
  #allocation0 [shape = 'u32[8,128]{1,0}', space=vmem, size = 0x1000, scoped, tag = 'scratch']
  #allocation1 [shape = 'u32[8,128]{1,0}', space=vmem, size = 0x1000, scoped, tag = 'scratch']
  #allocation2 [shape = 'u32[8,128]{1,0}', space=vmem, size = 0x1000, scoped, tag = 'scratch']
  #allocation3 [shape = 'u32[8,128]{1,0}', space=vmem, size = 0x1000, scoped, tag = 'scratch']
  #allocation4 [shape = 'u32[8,128]{1,0}', space=vmem, size = 0x1000, scoped, tag = 'scratch']
  #allocation5 [shape = 'u32[8,128]{1,0}', space=vmem, size = 0x1000, scoped, tag = 'scratch']
  #allocation6 [shape = 'u32[8,128]{1,0}', space=vmem, size = 0x1000, scoped, tag = 'scratch']
  %s0 = inlined_call_operand.vmem [shape: f32[2,2304], index: 0, kind: input, shape index: {}]
  %s1 = inlined_call_operand.hbm [shape: f32[2,32], index: 1, kind: output, shape index: {0}]
  %s2 = inlined_call_operand.vmem [shape: s32[2,32], index: 2, kind: output, shape index: {1}]
  %3 = xla_tuple %s1, %s2
  %4 = xla_tuple 2147483648, 2147483647
  $region1: #{custom-call} parent=0
    #allocation7 [shape = 'u8[4096]{0}', space=vmem, size = 0x1000, scoped, tag = 'operand span for operand 1']
    #allocation8 [shape = 'u8[1024]{0}', space=vmem, size = 0x400, scoped, tag = 'packed  for operand 1']
    #allocation9 [shape = 's32[1]{0}', space=sflag, size = 0x4, scoped, tag = 'scoped memory for custom-call']
    #allocation10 [shape = 'u8[4096]{0}', space=vmem, size = 0x1000, scoped, tag = 'operand span for operand 2']
    #allocation11 [shape = 'u8[1024]{0}', space=vmem, size = 0x400, scoped, tag = 'packed  for operand 2']
    #allocation12 [shape = 'f32[32,2]{1,0:T(8,128)}', space=vmem, size = 0x4000, scoped, tag = 'scoped memory for custom-call']
    #allocation13 [shape = 'f32[32,2]{1,0:T(8,128)}', space=vmem, size = 0x4000, scoped, tag = 'scoped memory for custom-call']
    #allocation14 [shape = 's32[32,2]{1,0:T(8,128)}', space=vmem, size = 0x4000, scoped, tag = 'scoped memory for custom-call']
    #allocation15 [shape = 's32[32,2]{1,0:T(8,128)}', space=vmem, size = 0x4000, scoped, tag = 'scoped memory for custom-call']
    %5 = vsyncpa [#allocation9], 0
    %6 = xla_tuple [#allocation7], [#allocation10]
    %7 = vst [vmem:[#allocation12] sm:$0xff] 2147483648
    %s8 = scalar_lea.vmem [#allocation12], 8
    %9 = vst [vmem:[%s8] sm:$0xff] 2147483648
    %s10 = scalar_lea.vmem [#allocation12], 16
    %11 = vst [vmem:[%s10] sm:$0xff] 2147483648
    %s12 = scalar_lea.vmem [#allocation12], 24
    %13 = vst [vmem:[%s12] sm:$0xff] 2147483648
    %14 = vst [vmem:[#allocation14] sm:$0xff] 2147483647
    %s15 = scalar_lea.vmem [#allocation14], 8
    %16 = vst [vmem:[%s15] sm:$0xff] 2147483647
    %s17 = scalar_lea.vmem [#allocation14], 16
    %18 = vst [vmem:[%s17] sm:$0xff] 2147483647
    %s19 = scalar_lea.vmem [#allocation14], 24
    %20 = vst [vmem:[%s19] sm:$0xff] 2147483647
    %21 = xla_tuple [#allocation12], [#allocation14]
    %22 = xla_tuple [#allocation13], [#allocation15]
    $region2: #{custom-call} parent=1
      #allocation16 [shape = 'u8[20480]{0}', space=vmem, size = 0x5000, scoped, tag = 'operand span for operand 0']
      #allocation17 [shape = 's32[5120]{0}', space=vmem, size = 0x5000, scoped, tag = 'scoped memory for custom-call']
      // Predicated region
      $region3: #{custom-call} parent=2 // pred_check
        _
      $region4: #{custom-call} parent=2 // pred_check_branch
        %24 = sbr.rel (0) target = $region6
      $region5: #{custom-call} parent=2 // pred_region
        // Predicated region
        $region7: #{custom-call} parent=5 // pred_check
          _
        $region8: #{custom-call} parent=5 // pred_check_branch
          %26 = sbr.rel (0) target = $region10
        $region9: #{custom-call} parent=5 // pred_region
          // Predicated region
          $region11: #{custom-call} parent=9 // pred_check
            _
          $region12: #{custom-call} parent=9 // pred_check_branch
            %28 = sbr.rel (0) target = $region14
          $region13: #{custom-call} parent=9 // pred_region
            %s29 = scalar_lea.vmem %s0, 32
            %s30 = scalar_lea.vmem [#allocation16], 32
            loop: start=0, step=1, limit=1
            $region15: #{custom-call} parent=13 // loop_pre_header
              _
            $region16: #{custom-call} parent=13 // loop_header
              %s32 = sphi 0, %s36
              %p33 = scmp.ge.s32.totalorder %s32, 1
              %s37 = sphi %s0, %s0
              %s38 = sphi [#allocation16], [#allocation16]
            $region17: #{custom-call} parent=13 // loop_header_branch
              %35 = sbr.rel (%p33) target = $region21
            $region18: #{custom-call} parent=13 // loop_body
              %v39 = vld [vmem:[%s37] sm:$0xff]
              %40 = vst [vmem:[%s38] sm:$0xff] %v39
              %v41 = vld [vmem:[%s37 + $0x8] sm:$0xff]
              %42 = vst [vmem:[%s38 + $0x8] sm:$0xff] %v41
              %v43 = vld [vmem:[%s37 + $0x10] sm:$0xff]
              %44 = vst [vmem:[%s38 + $0x10] sm:$0xff] %v43
              %v45 = vld [vmem:[%s37 + $0x18] sm:$0xff]
              %46 = vst [vmem:[%s38 + $0x18] sm:$0xff] %v45
            $region19: #{custom-call} parent=13 // loop_footer
              %s36 = sadd.s32 1, %s32
            $region20: #{custom-call} parent=13 // loop_footer_branch
              %31 = sbr.rel target = $region16
            $region21: #{custom-call} parent=13 // loop_exit
              _
            %s48 = ssub.s32 16, 1
            loop: start=0, step=1, limit=1
            $region22: #{custom-call} parent=13 // loop_pre_header
              _
            $region23: #{custom-call} parent=13 // loop_header
              %s50 = sphi 0, %s54
              %p51 = scmp.ge.s32.totalorder %s50, 1
              %s55 = sphi %s29, %s29
              %s56 = sphi %s30, %s30
            $region24: #{custom-call} parent=13 // loop_header_branch
              %53 = sbr.rel (%p51) target = $region28
            $region25: #{custom-call} parent=13 // loop_body
              %v57 = vld [vmem:[%s55] sm:%s48]
              %58 = vst [vmem:[%s56] sm:%s48] %v57
            $region26: #{custom-call} parent=13 // loop_footer
              %s54 = sadd.s32 1, %s50
            $region27: #{custom-call} parent=13 // loop_footer_branch
              %49 = sbr.rel target = $region23
            $region28: #{custom-call} parent=13 // loop_exit
              _
          $region14: #{custom-call} parent=9 // pred_fallthru
            _
        $region10: #{custom-call} parent=5 // pred_fallthru
          _
        %59 = vnop
      $region6: #{custom-call} parent=2 // pred_fallthru
        _
      // Predicated region
      $region29: #{custom-call} parent=2 // pred_check
        _
      $region30: #{custom-call} parent=2 // pred_check_branch
        %61 = sbr.rel (0) target = $region32
      $region31: #{custom-call} parent=2 // pred_region
        _
      $region32: #{custom-call} parent=2 // pred_fallthru
        _
      %v62 = vlaneseq
      %v63 = vand.u32 %v62, 127
      %v64 = vlaneseq
      %v65 = vshrl.u32 %v64, 7
      %v66 = vshrl.u32 %v65, 1
      %v67 = vand.u32 %v65, 1
      %v68 = vmul.u32 %v66, 128
      %v69 = vadd.s32 %v63, %v68
      %v71 = vld [vmem:[#allocation16] sm:$0xff]
      %vm72 = vcmp.lt.s32.totalorder %v71, 0
      %v73 = vsub.s32 2147483647, %v71
      %v74 = vsel %vm72, %v73, %v71
      %vm76 = vcmp.lt.s32.totalorder %v69, 2304
      %v77 = vsel %vm76, %v74, 2147483648
      %78 = vst [vmem:[#allocation16] sm:$0xff] %v77
      %s79 = scalar_lea.vmem [#allocation16], 8
      %v80 = vld [vmem:[%s79] sm:$0xff]
      %vm81 = vcmp.lt.s32.totalorder %v80, 0
      %v82 = vsub.s32 2147483647, %v80
      %v83 = vsel %vm81, %v82, %v80
      %v84 = vadd.s32 %v69, 512
      %vm85 = vcmp.lt.s32.totalorder %v84, 2304
      %v86 = vsel %vm85, %v83, 2147483648
      %87 = vst [vmem:[%s79] sm:$0xff] %v86
      %s88 = scalar_lea.vmem [#allocation16], 16
      %v89 = vld [vmem:[%s88] sm:$0xff]
      %vm90 = vcmp.lt.s32.totalorder %v89, 0
      %v91 = vsub.s32 2147483647, %v89
      %v92 = vsel %vm90, %v91, %v89
      %v93 = vadd.s32 %v69, 1024
      %vm94 = vcmp.lt.s32.totalorder %v93, 2304
      %v95 = vsel %vm94, %v92, 2147483648
      %96 = vst [vmem:[%s88] sm:$0xff] %v95
      %s97 = scalar_lea.vmem [#allocation16], 24
      %v98 = vld [vmem:[%s97] sm:$0xff]
      %vm99 = vcmp.lt.s32.totalorder %v98, 0
      %v100 = vsub.s32 2147483647, %v98
      %v101 = vsel %vm99, %v100, %v98
      %v102 = vadd.s32 %v69, 1536
      %vm103 = vcmp.lt.s32.totalorder %v102, 2304
      %v104 = vsel %vm103, %v101, 2147483648
      %105 = vst [vmem:[%s97] sm:$0xff] %v104
      %s106 = scalar_lea.vmem [#allocation16], 32
      %v107 = vld [vmem:[%s106] sm:$0xff]
      %vm108 = vcmp.lt.s32.totalorder %v107, 0
      %v109 = vsub.s32 2147483647, %v107
      %v110 = vsel %vm108, %v109, %v107
      %v111 = vadd.s32 %v69, 2048
      %vm112 = vcmp.lt.s32.totalorder %v111, 2304
      %v113 = vsel %vm112, %v110, 2147483648
      %114 = vst [vmem:[%s106] sm:$0xff] %v113
      %v115 = vlaneseq
      %v116 = vand.u32 %v115, 127
      %v117 = vlaneseq
      %v118 = vshrl.u32 %v117, 7
      %v119 = vshrl.u32 %v118, 1
      %v120 = vand.u32 %v118, 1
      %v121 = vmul.u32 %v119, 128
      %v122 = vadd.s32 %v116, %v121
      %125 = vst [vmem:[#allocation17] sm:$0xff] %v122
      %v126 = vadd.s32 %v122, 512
      %s127 = scalar_lea.vmem [#allocation17], 8
      %128 = vst [vmem:[%s127] sm:$0xff] %v126
      %v129 = vadd.s32 %v122, 1024
      %s130 = scalar_lea.vmem [#allocation17], 16
      %131 = vst [vmem:[%s130] sm:$0xff] %v129
      %v132 = vadd.s32 %v122, 1536
      %s133 = scalar_lea.vmem [#allocation17], 24
      %134 = vst [vmem:[%s133] sm:$0xff] %v132
      %v135 = vadd.s32 %v122, 2048
      %s136 = scalar_lea.vmem [#allocation17], 32
      %137 = vst [vmem:[%s136] sm:$0xff] %v135
      %138 = xla_tuple [#allocation16], [#allocation17]
      %139 = vst [vmem:[#allocation13] sm:$0xff] 2147483648
      %s140 = scalar_lea.vmem [#allocation13], 8
      %141 = vst [vmem:[%s140] sm:$0xff] 2147483648
      %s142 = scalar_lea.vmem [#allocation13], 16
      %143 = vst [vmem:[%s142] sm:$0xff] 2147483648
      %s144 = scalar_lea.vmem [#allocation13], 24
      %145 = vst [vmem:[%s144] sm:$0xff] 2147483648
      %146 = vst [vmem:[#allocation15] sm:$0xff] 2147483647
      %s147 = scalar_lea.vmem [#allocation15], 8
      %148 = vst [vmem:[%s147] sm:$0xff] 2147483647
      %s149 = scalar_lea.vmem [#allocation15], 16
      %150 = vst [vmem:[%s149] sm:$0xff] 2147483647
      %s151 = scalar_lea.vmem [#allocation15], 24
      %152 = vst [vmem:[%s151] sm:$0xff] 2147483647
      %153 = xla_tuple [#allocation13], [#allocation15]
      loop: start=0, step=1, limit=32
      $region33: #{custom-call} parent=2 // loop_pre_header
        _
      $region34: #{custom-call} parent=2 // loop_header
        %s155 = sphi 0, %s159
        %p156 = scmp.ge.s32.totalorder %s155, 32
      $region35: #{custom-call} parent=2 // loop_header_branch
        %158 = sbr.rel (%p156) target = $region39
      $region36: #{custom-call} parent=2 // loop_body
        %v160 = vld [vmem:[#allocation16] sm:$0xff]
        %v161 = vld [vmem:[#allocation17] sm:$0xff]
        %162 = xla_tuple %v160, %v161
        %s163 = scalar_lea.vmem [#allocation16], 8
        %v164 = vld [vmem:[%s163] sm:$0xff]
        %s165 = scalar_lea.vmem [#allocation17], 8
        %v166 = vld [vmem:[%s165] sm:$0xff]
        %167 = xla_tuple %v164, %v166
        %vm168 = vcmp.gt.s32.totalorder %v164, %v160
        %vm169 = vcmp.eq.s32.totalorder %v164, %v160
        %vm170 = vcmp.lt.s32.totalorder %v166, %v161
        %vm171 = vmand %vm169, %vm170
        %vm172 = vmor %vm168, %vm171
        %v173 = vsel %vm172, %v164, %v160
        %v174 = vsel %vm172, %v166, %v161
        %175 = xla_tuple %v173, %v174
        %s176 = scalar_lea.vmem [#allocation16], 16
        %v177 = vld [vmem:[%s176] sm:$0xff]
        %s178 = scalar_lea.vmem [#allocation17], 16
        %v179 = vld [vmem:[%s178] sm:$0xff]
        %180 = xla_tuple %v177, %v179
        %vm181 = vcmp.gt.s32.totalorder %v177, %v173
        %vm182 = vcmp.eq.s32.totalorder %v177, %v173
        %vm183 = vcmp.lt.s32.totalorder %v179, %v174
        %vm184 = vmand %vm182, %vm183
        %vm185 = vmor %vm181, %vm184
        %v186 = vsel %vm185, %v177, %v173
        %v187 = vsel %vm185, %v179, %v174
        %188 = xla_tuple %v186, %v187
        %s189 = scalar_lea.vmem [#allocation16], 24
        %v190 = vld [vmem:[%s189] sm:$0xff]
        %s191 = scalar_lea.vmem [#allocation17], 24
        %v192 = vld [vmem:[%s191] sm:$0xff]
        %193 = xla_tuple %v190, %v192
        %vm194 = vcmp.gt.s32.totalorder %v190, %v186
        %vm195 = vcmp.eq.s32.totalorder %v190, %v186
        %vm196 = vcmp.lt.s32.totalorder %v192, %v187
        %vm197 = vmand %vm195, %vm196
        %vm198 = vmor %vm194, %vm197
        %v199 = vsel %vm198, %v190, %v186
        %v200 = vsel %vm198, %v192, %v187
        %201 = xla_tuple %v199, %v200
        %s202 = scalar_lea.vmem [#allocation16], 32
        %v203 = vld [vmem:[%s202] sm:$0xff]
        %s204 = scalar_lea.vmem [#allocation17], 32
        %v205 = vld [vmem:[%s204] sm:$0xff]
        %206 = xla_tuple %v203, %v205
        %vm207 = vcmp.gt.s32.totalorder %v203, %v199
        %vm208 = vcmp.eq.s32.totalorder %v203, %v199
        %vm209 = vcmp.lt.s32.totalorder %v205, %v200
        %vm210 = vmand %vm208, %vm209
        %vm211 = vmor %vm207, %vm210
        %v212 = vsel %vm211, %v203, %v199
        %v213 = vsel %vm211, %v205, %v200
        %214 = xla_tuple %v212, %v213
        %v215 = vrot.slane %v212, 2
        %v216 = vrot.slane %v213, 2
        %217 = xla_tuple %v215, %v216
        %vm218 = vcmp.gt.s32.totalorder %v215, %v212
        %vm219 = vcmp.eq.s32.totalorder %v215, %v212
        %vm220 = vcmp.lt.s32.totalorder %v216, %v213
        %vm221 = vmand %vm219, %vm220
        %vm222 = vmor %vm218, %vm221
        %v223 = vsel %vm222, %v215, %v212
        %v224 = vsel %vm222, %v216, %v213
        %225 = xla_tuple %v223, %v224
        %v226 = vrot.slane %v223, 2
        %v227 = vrot.slane %v224, 2
        %228 = xla_tuple %v226, %v227
        %vm229 = vcmp.gt.s32.totalorder %v226, %v223
        %vm230 = vcmp.eq.s32.totalorder %v226, %v223
        %vm231 = vcmp.lt.s32.totalorder %v227, %v224
        %vm232 = vmand %vm230, %vm231
        %vm233 = vmor %vm229, %vm232
        %v234 = vsel %vm233, %v226, %v223
        %v235 = vsel %vm233, %v227, %v224
        %236 = xla_tuple %v234, %v235
        %v237 = vrot.slane %v234, 2
        %v238 = vrot.slane %v235, 2
        %239 = xla_tuple %v237, %v238
        %vm240 = vcmp.gt.s32.totalorder %v237, %v234
        %vm241 = vcmp.eq.s32.totalorder %v237, %v234
        %vm242 = vcmp.lt.s32.totalorder %v238, %v235
        %vm243 = vmand %vm241, %vm242
        %vm244 = vmor %vm240, %vm243
        %v245 = vsel %vm244, %v237, %v234
        %v246 = vsel %vm244, %v238, %v235
        %247 = xla_tuple %v245, %v246
        %248 = vxpose.xlu0.b32.start [1/16] %v245, 128
        %249 = vxpose.xlu0.b32.cont [2/16] %v245, 128
        %250 = vxpose.xlu0.b32.cont [3/16] %v245, 128
        %251 = vxpose.xlu0.b32.cont [4/16] %v245, 128
        %252 = vxpose.xlu0.b32.cont [5/16] %v245, 128
        %253 = vxpose.xlu0.b32.cont [6/16] %v245, 128
        %254 = vxpose.xlu0.b32.cont [7/16] %v245, 128
        %255 = vxpose.xlu0.b32.cont [8/16] %v245, 128
        %256 = vxpose.xlu0.b32.cont [9/16] %v245, 128
        %257 = vxpose.xlu0.b32.cont [10/16] %v245, 128
        %258 = vxpose.xlu0.b32.cont [11/16] %v245, 128
        %259 = vxpose.xlu0.b32.cont [12/16] %v245, 128
        %260 = vxpose.xlu0.b32.cont [13/16] %v245, 128
        %261 = vxpose.xlu0.b32.cont [14/16] %v245, 128
        %262 = vxpose.xlu0.b32.cont [15/16] %v245, 128
        %263 = vxpose.xlu0.b32.end [16/16] %v245, 128
        %v264 = vpop.trf.xlu0
        %v265 = vpop.trf.xlu0
        %v266 = vpop.trf.xlu0
        %v267 = vpop.trf.xlu0
        %v268 = vpop.trf.xlu0
        %v269 = vpop.trf.xlu0
        %v270 = vpop.trf.xlu0
        %v271 = vpop.trf.xlu0
        %v272 = vpop.trf.xlu0
        %v273 = vpop.trf.xlu0
        %v274 = vpop.trf.xlu0
        %v275 = vpop.trf.xlu0
        %v276 = vpop.trf.xlu0
        %v277 = vpop.trf.xlu0
        %v278 = vpop.trf.xlu0
        %v279 = vpop.trf.xlu0
        %280 = vxpose.xlu0.b32.start [1/16] %v246, 128
        %281 = vxpose.xlu0.b32.cont [2/16] %v246, 128
        %282 = vxpose.xlu0.b32.cont [3/16] %v246, 128
        %283 = vxpose.xlu0.b32.cont [4/16] %v246, 128
        %284 = vxpose.xlu0.b32.cont [5/16] %v246, 128
        %285 = vxpose.xlu0.b32.cont [6/16] %v246, 128
        %286 = vxpose.xlu0.b32.cont [7/16] %v246, 128
        %287 = vxpose.xlu0.b32.cont [8/16] %v246, 128
        %288 = vxpose.xlu0.b32.cont [9/16] %v246, 128
        %289 = vxpose.xlu0.b32.cont [10/16] %v246, 128
        %290 = vxpose.xlu0.b32.cont [11/16] %v246, 128
        %291 = vxpose.xlu0.b32.cont [12/16] %v246, 128
        %292 = vxpose.xlu0.b32.cont [13/16] %v246, 128
        %293 = vxpose.xlu0.b32.cont [14/16] %v246, 128
        %294 = vxpose.xlu0.b32.cont [15/16] %v246, 128
        %295 = vxpose.xlu0.b32.end [16/16] %v246, 128
        %v296 = vpop.trf.xlu0
        %v297 = vpop.trf.xlu0
        %v298 = vpop.trf.xlu0
        %v299 = vpop.trf.xlu0
        %v300 = vpop.trf.xlu0
        %v301 = vpop.trf.xlu0
        %v302 = vpop.trf.xlu0
        %v303 = vpop.trf.xlu0
        %v304 = vpop.trf.xlu0
        %v305 = vpop.trf.xlu0
        %v306 = vpop.trf.xlu0
        %v307 = vpop.trf.xlu0
        %v308 = vpop.trf.xlu0
        %v309 = vpop.trf.xlu0
        %v310 = vpop.trf.xlu0
        %v311 = vpop.trf.xlu0
        %312 = xla_tuple %v264, %v296
        %313 = xla_tuple %v265, %v297
        %vm314 = vcmp.gt.s32.totalorder %v265, %v264
        %vm315 = vcmp.eq.s32.totalorder %v265, %v264
        %vm316 = vcmp.lt.s32.totalorder %v297, %v296
        %vm317 = vmand %vm315, %vm316
        %vm318 = vmor %vm314, %vm317
        %v319 = vsel %vm318, %v265, %v264
        %v320 = vsel %vm318, %v297, %v296
        %321 = xla_tuple %v319, %v320
        %322 = xla_tuple %v266, %v298
        %vm323 = vcmp.gt.s32.totalorder %v266, %v319
        %vm324 = vcmp.eq.s32.totalorder %v266, %v319
        %vm325 = vcmp.lt.s32.totalorder %v298, %v320
        %vm326 = vmand %vm324, %vm325
        %vm327 = vmor %vm323, %vm326
        %v328 = vsel %vm327, %v266, %v319
        %v329 = vsel %vm327, %v298, %v320
        %330 = xla_tuple %v328, %v329
        %331 = xla_tuple %v267, %v299
        %vm332 = vcmp.gt.s32.totalorder %v267, %v328
        %vm333 = vcmp.eq.s32.totalorder %v267, %v328
        %vm334 = vcmp.lt.s32.totalorder %v299, %v329
        %vm335 = vmand %vm333, %vm334
        %vm336 = vmor %vm332, %vm335
        %v337 = vsel %vm336, %v267, %v328
        %v338 = vsel %vm336, %v299, %v329
        %339 = xla_tuple %v337, %v338
        %340 = xla_tuple %v268, %v300
        %vm341 = vcmp.gt.s32.totalorder %v268, %v337
        %vm342 = vcmp.eq.s32.totalorder %v268, %v337
        %vm343 = vcmp.lt.s32.totalorder %v300, %v338
        %vm344 = vmand %vm342, %vm343
        %vm345 = vmor %vm341, %vm344
        %v346 = vsel %vm345, %v268, %v337
        %v347 = vsel %vm345, %v300, %v338
        %348 = xla_tuple %v346, %v347
        %349 = xla_tuple %v269, %v301
        %vm350 = vcmp.gt.s32.totalorder %v269, %v346
        %vm351 = vcmp.eq.s32.totalorder %v269, %v346
        %vm352 = vcmp.lt.s32.totalorder %v301, %v347
        %vm353 = vmand %vm351, %vm352
        %vm354 = vmor %vm350, %vm353
        %v355 = vsel %vm354, %v269, %v346
        %v356 = vsel %vm354, %v301, %v347
        %357 = xla_tuple %v355, %v356
        %358 = xla_tuple %v270, %v302
        %vm359 = vcmp.gt.s32.totalorder %v270, %v355
        %vm360 = vcmp.eq.s32.totalorder %v270, %v355
        %vm361 = vcmp.lt.s32.totalorder %v302, %v356
        %vm362 = vmand %vm360, %vm361
        %vm363 = vmor %vm359, %vm362
        %v364 = vsel %vm363, %v270, %v355
        %v365 = vsel %vm363, %v302, %v356
        %366 = xla_tuple %v364, %v365
        %367 = xla_tuple %v271, %v303
        %vm368 = vcmp.gt.s32.totalorder %v271, %v364
        %vm369 = vcmp.eq.s32.totalorder %v271, %v364
        %vm370 = vcmp.lt.s32.totalorder %v303, %v365
        %vm371 = vmand %vm369, %vm370
        %vm372 = vmor %vm368, %vm371
        %v373 = vsel %vm372, %v271, %v364
        %v374 = vsel %vm372, %v303, %v365
        %375 = xla_tuple %v373, %v374
        %376 = xla_tuple %v272, %v304
        %vm377 = vcmp.gt.s32.totalorder %v272, %v373
        %vm378 = vcmp.eq.s32.totalorder %v272, %v373
        %vm379 = vcmp.lt.s32.totalorder %v304, %v374
        %vm380 = vmand %vm378, %vm379
        %vm381 = vmor %vm377, %vm380
        %v382 = vsel %vm381, %v272, %v373
        %v383 = vsel %vm381, %v304, %v374
        %384 = xla_tuple %v382, %v383
        %385 = xla_tuple %v273, %v305
        %vm386 = vcmp.gt.s32.totalorder %v273, %v382
        %vm387 = vcmp.eq.s32.totalorder %v273, %v382
        %vm388 = vcmp.lt.s32.totalorder %v305, %v383
        %vm389 = vmand %vm387, %vm388
        %vm390 = vmor %vm386, %vm389
        %v391 = vsel %vm390, %v273, %v382
        %v392 = vsel %vm390, %v305, %v383
        %393 = xla_tuple %v391, %v392
        %394 = xla_tuple %v274, %v306
        %vm395 = vcmp.gt.s32.totalorder %v274, %v391
        %vm396 = vcmp.eq.s32.totalorder %v274, %v391
        %vm397 = vcmp.lt.s32.totalorder %v306, %v392
        %vm398 = vmand %vm396, %vm397
        %vm399 = vmor %vm395, %vm398
        %v400 = vsel %vm399, %v274, %v391
        %v401 = vsel %vm399, %v306, %v392
        %402 = xla_tuple %v400, %v401
        %403 = xla_tuple %v275, %v307
        %vm404 = vcmp.gt.s32.totalorder %v275, %v400
        %vm405 = vcmp.eq.s32.totalorder %v275, %v400
        %vm406 = vcmp.lt.s32.totalorder %v307, %v401
        %vm407 = vmand %vm405, %vm406
        %vm408 = vmor %vm404, %vm407
        %v409 = vsel %vm408, %v275, %v400
        %v410 = vsel %vm408, %v307, %v401
        %411 = xla_tuple %v409, %v410
        %412 = xla_tuple %v276, %v308
        %vm413 = vcmp.gt.s32.totalorder %v276, %v409
        %vm414 = vcmp.eq.s32.totalorder %v276, %v409
        %vm415 = vcmp.lt.s32.totalorder %v308, %v410
        %vm416 = vmand %vm414, %vm415
        %vm417 = vmor %vm413, %vm416
        %v418 = vsel %vm417, %v276, %v409
        %v419 = vsel %vm417, %v308, %v410
        %420 = xla_tuple %v418, %v419
        %421 = xla_tuple %v277, %v309
        %vm422 = vcmp.gt.s32.totalorder %v277, %v418
        %vm423 = vcmp.eq.s32.totalorder %v277, %v418
        %vm424 = vcmp.lt.s32.totalorder %v309, %v419
        %vm425 = vmand %vm423, %vm424
        %vm426 = vmor %vm422, %vm425
        %v427 = vsel %vm426, %v277, %v418
        %v428 = vsel %vm426, %v309, %v419
        %429 = xla_tuple %v427, %v428
        %430 = xla_tuple %v278, %v310
        %vm431 = vcmp.gt.s32.totalorder %v278, %v427
        %vm432 = vcmp.eq.s32.totalorder %v278, %v427
        %vm433 = vcmp.lt.s32.totalorder %v310, %v428
        %vm434 = vmand %vm432, %vm433
        %vm435 = vmor %vm431, %vm434
        %v436 = vsel %vm435, %v278, %v427
        %v437 = vsel %vm435, %v310, %v428
        %438 = xla_tuple %v436, %v437
        %439 = xla_tuple %v279, %v311
        %vm440 = vcmp.gt.s32.totalorder %v279, %v436
        %vm441 = vcmp.eq.s32.totalorder %v279, %v436
        %vm442 = vcmp.lt.s32.totalorder %v311, %v437
        %vm443 = vmand %vm441, %vm442
        %vm444 = vmor %vm440, %vm443
        %v445 = vsel %vm444, %v279, %v436
        %v446 = vsel %vm444, %v311, %v437
        %447 = xla_tuple %v445, %v446
        %v448 = vrot.slane %v445, 1
        %v449 = vrot.slane %v446, 1
        %450 = xla_tuple %v448, %v449
        %vm451 = vcmp.gt.s32.totalorder %v448, %v445
        %vm452 = vcmp.eq.s32.totalorder %v448, %v445
        %vm453 = vcmp.lt.s32.totalorder %v449, %v446
        %vm454 = vmand %vm452, %vm453
        %vm455 = vmor %vm451, %vm454
        %v456 = vsel %vm455, %v448, %v445
        %v457 = vsel %vm455, %v449, %v446
        %458 = xla_tuple %v456, %v457
        %v459 = vrot.slane %v456, 1
        %v460 = vrot.slane %v457, 1
        %461 = xla_tuple %v459, %v460
        %vm462 = vcmp.gt.s32.totalorder %v459, %v456
        %vm463 = vcmp.eq.s32.totalorder %v459, %v456
        %vm464 = vcmp.lt.s32.totalorder %v460, %v457
        %vm465 = vmand %vm463, %vm464
        %vm466 = vmor %vm462, %vm465
        %v467 = vsel %vm466, %v459, %v456
        %v468 = vsel %vm466, %v460, %v457
        %469 = xla_tuple %v467, %v468
        %v470 = vrot.slane %v467, 1
        %v471 = vrot.slane %v468, 1
        %472 = xla_tuple %v470, %v471
        %vm473 = vcmp.gt.s32.totalorder %v470, %v467
        %vm474 = vcmp.eq.s32.totalorder %v470, %v467
        %vm475 = vcmp.lt.s32.totalorder %v471, %v468
        %vm476 = vmand %vm474, %vm475
        %vm477 = vmor %vm473, %vm476
        %v478 = vsel %vm477, %v470, %v467
        %v479 = vsel %vm477, %v471, %v468
        %480 = xla_tuple %v478, %v479
        %v481 = vrot.slane %v478, 1
        %v482 = vrot.slane %v479, 1
        %483 = xla_tuple %v481, %v482
        %vm484 = vcmp.gt.s32.totalorder %v481, %v478
        %vm485 = vcmp.eq.s32.totalorder %v481, %v478
        %vm486 = vcmp.lt.s32.totalorder %v482, %v479
        %vm487 = vmand %vm485, %vm486
        %vm488 = vmor %vm484, %vm487
        %v489 = vsel %vm488, %v481, %v478
        %v490 = vsel %vm488, %v482, %v479
        %491 = xla_tuple %v489, %v490
        %v492 = vrot.slane %v489, 1
        %v493 = vrot.slane %v490, 1
        %494 = xla_tuple %v492, %v493
        %vm495 = vcmp.gt.s32.totalorder %v492, %v489
        %vm496 = vcmp.eq.s32.totalorder %v492, %v489
        %vm497 = vcmp.lt.s32.totalorder %v493, %v490
        %vm498 = vmand %vm496, %vm497
        %vm499 = vmor %vm495, %vm498
        %v500 = vsel %vm499, %v492, %v489
        %v501 = vsel %vm499, %v493, %v490
        %502 = xla_tuple %v500, %v501
        %v503 = vrot.slane %v500, 1
        %v504 = vrot.slane %v501, 1
        %505 = xla_tuple %v503, %v504
        %vm506 = vcmp.gt.s32.totalorder %v503, %v500
        %vm507 = vcmp.eq.s32.totalorder %v503, %v500
        %vm508 = vcmp.lt.s32.totalorder %v504, %v501
        %vm509 = vmand %vm507, %vm508
        %vm510 = vmor %vm506, %vm509
        %v511 = vsel %vm510, %v503, %v500
        %v512 = vsel %vm510, %v504, %v501
        %513 = xla_tuple %v511, %v512
        %v514 = vrot.slane %v511, 1
        %v515 = vrot.slane %v512, 1
        %516 = xla_tuple %v514, %v515
        %vm517 = vcmp.gt.s32.totalorder %v514, %v511
        %vm518 = vcmp.eq.s32.totalorder %v514, %v511
        %vm519 = vcmp.lt.s32.totalorder %v515, %v512
        %vm520 = vmand %vm518, %vm519
        %vm521 = vmor %vm517, %vm520
        %v522 = vsel %vm521, %v514, %v511
        %v523 = vsel %vm521, %v515, %v512
        %524 = xla_tuple %v522, %v523
        %s525 = scalar_lea.vmem [#allocation13], %s155
        %526 = vst [vmem:[%s525] sm:$0x1] %v522
        %s527 = scalar_lea.vmem [#allocation15], %s155
        %528 = vst [vmem:[%s527] sm:$0x1] %v523
        %529 = xla_tuple %526, %528
        %530 = vxpose.xlu0.b32.start [1/16] %v523, 128
        %531 = vxpose.xlu0.b32.cont [2/16] 0.0, 128
        %532 = vxpose.xlu0.b32.cont [3/16] 0.0, 128
        %533 = vxpose.xlu0.b32.cont [4/16] 0.0, 128
        %534 = vxpose.xlu0.b32.cont [5/16] 0.0, 128
        %535 = vxpose.xlu0.b32.cont [6/16] 0.0, 128
        %536 = vxpose.xlu0.b32.cont [7/16] 0.0, 128
        %537 = vxpose.xlu0.b32.cont [8/16] 0.0, 128
        %538 = vxpose.xlu0.b32.cont [9/16] 0.0, 128
        %539 = vxpose.xlu0.b32.cont [10/16] 0.0, 128
        %540 = vxpose.xlu0.b32.cont [11/16] 0.0, 128
        %541 = vxpose.xlu0.b32.cont [12/16] 0.0, 128
        %542 = vxpose.xlu0.b32.cont [13/16] 0.0, 128
        %543 = vxpose.xlu0.b32.cont [14/16] 0.0, 128
        %544 = vxpose.xlu0.b32.cont [15/16] 0.0, 128
        %545 = vxpose.xlu0.b32.end [16/16] 0.0, 128
        %v546 = vpop.trf.xlu0
        %v547 = vpop.trf.xlu0
        %v548 = vpop.trf.xlu0
        %v549 = vpop.trf.xlu0
        %v550 = vpop.trf.xlu0
        %v551 = vpop.trf.xlu0
        %v552 = vpop.trf.xlu0
        %v553 = vpop.trf.xlu0
        %v554 = vpop.trf.xlu0
        %v555 = vpop.trf.xlu0
        %v556 = vpop.trf.xlu0
        %v557 = vpop.trf.xlu0
        %v558 = vpop.trf.xlu0
        %v559 = vpop.trf.xlu0
        %v560 = vpop.trf.xlu0
        %v561 = vpop.trf.xlu0
        %s562 = vtos %v546
        %s563 = sshrl.u32 %s562, 9
        %p564 = scmp.lt.s32.totalorder %s562, 0
        %s565 = ssub.s32 0, %s562
        %s566 = scalar_select %p564, %s565, %s562
        %s567 = sand.u32 %s566, 511
        %s568 = ssub.s32 0, %s567
        %s569 = scalar_select %p564, %s568, %s567
        %s570 = sshrl.u32 %s569, 7
        %s571 = smul.u32 %s570, 256
        %s572 = sand.u32 %s569, 127
        %s573 = sadd.s32 %s571, %s572
        %v574 = vlaneseq
        %v575 = vstv %s573
        %vm577 = vcmp.eq.s32.totalorder %v574, %v575
        %s578 = smul.addr %s563, 8
        %s579 = scalar_lea.vmem [#allocation16], %s578
        %580 = vst.msk [vmem:[%s579] sm:$0xff] %vm577, 2147483648
        %s581 = smul.addr %s563, 8
        %s582 = scalar_lea.vmem [#allocation17], %s581
        %583 = vst.msk [vmem:[%s582] sm:$0xff] %vm577, 2147483647
        %584 = xla_tuple %580, %583
        %v585 = vrot.slane %v546, 1
        %s586 = vtos %v585
        %s587 = sshrl.u32 %s586, 9
        %p588 = scmp.lt.s32.totalorder %s586, 0
        %s589 = ssub.s32 0, %s586
        %s590 = scalar_select %p588, %s589, %s586
        %s591 = sand.u32 %s590, 511
        %s592 = ssub.s32 0, %s591
        %s593 = scalar_select %p588, %s592, %s591
        %s594 = sshrl.u32 %s593, 7
        %s595 = smul.u32 %s594, 256
        %s596 = sand.u32 %s593, 127
        %s597 = sadd.s32 %s595, %s596
        %v598 = vlaneseq
        %v599 = vstv %s597
        %v600 = vadd.s32 %v599, 128
        %vm601 = vcmp.eq.s32.totalorder %v598, %v600
        %s602 = smul.addr %s587, 8
        %s603 = scalar_lea.vmem [#allocation16], %s602
        %604 = vst.msk [vmem:[%s603] sm:$0xff] %vm601, 2147483648
        %s605 = smul.addr %s587, 8
        %s606 = scalar_lea.vmem [#allocation17], %s605
        %607 = vst.msk [vmem:[%s606] sm:$0xff] %vm601, 2147483647
        %608 = xla_tuple %604, %607
        %v609 = vrot.slane %v585, 1
      $region37: #{custom-call} parent=2 // loop_footer
        %s159 = sadd.s32 1, %s155
      $region38: #{custom-call} parent=2 // loop_footer_branch
        %154 = sbr.rel target = $region34
      $region39: #{custom-call} parent=2 // loop_exit
        _
      %s610 = scalar_lea.vmem [#allocation13], 24
      %s611 = scalar_lea.vmem [#allocation13], 7
      %v612 = vld [vmem:[%s611] ss:$-1 sm:$0xff]
      %s613 = scalar_lea.vmem %s610, 7 [#allocation13]
      %v614 = vld [vmem:[%s613] ss:$-1 sm:$0xff]
      %615 = vst [vmem:[#allocation13] sm:$0xff] %v614
      %616 = vst [vmem:[%s610] sm:$0xff] %v612
      %s617 = scalar_lea.vmem [#allocation15], 24
      %s618 = scalar_lea.vmem [#allocation15], 7
      %v619 = vld [vmem:[%s618] ss:$-1 sm:$0xff]
      %s620 = scalar_lea.vmem %s617, 7 [#allocation15]
      %v621 = vld [vmem:[%s620] ss:$-1 sm:$0xff]
      %622 = vst [vmem:[#allocation15] sm:$0xff] %v621
      %623 = vst [vmem:[%s617] sm:$0xff] %v619
      %624 = xla_tuple %616, %623
      %s625 = scalar_lea.vmem [#allocation13], 8
      %s626 = scalar_lea.vmem [#allocation13], 16
      %s627 = scalar_lea.vmem %s625, 7 [#allocation13]
      %v628 = vld [vmem:[%s627] ss:$-1 sm:$0xff]
      %s629 = scalar_lea.vmem %s626, 7 [#allocation13]
      %v630 = vld [vmem:[%s629] ss:$-1 sm:$0xff]
      %631 = vst [vmem:[%s625] sm:$0xff] %v630
      %632 = vst [vmem:[%s626] sm:$0xff] %v628
      %s633 = scalar_lea.vmem [#allocation15], 8
      %s634 = scalar_lea.vmem [#allocation15], 16
      %s635 = scalar_lea.vmem %s633, 7 [#allocation15]
      %v636 = vld [vmem:[%s635] ss:$-1 sm:$0xff]
      %s637 = scalar_lea.vmem %s634, 7 [#allocation15]
      %v638 = vld [vmem:[%s637] ss:$-1 sm:$0xff]
      %639 = vst [vmem:[%s633] sm:$0xff] %v638
      %640 = vst [vmem:[%s634] sm:$0xff] %v636
      %641 = xla_tuple %632, %640
      %v642 = vld [vmem:[#allocation12] sm:$0xff]
      %v643 = vld [vmem:[#allocation14] sm:$0xff]
      %644 = xla_tuple %v642, %v643
      %v645 = vld [vmem:[#allocation13] sm:$0xff]
      %v646 = vld [vmem:[#allocation15] sm:$0xff]
      %647 = xla_tuple %v645, %v646
      %vm648 = vcmp.gt.s32.totalorder %v642, %v645
      %vm649 = vcmp.eq.s32.totalorder %v642, %v645
      %vm650 = vcmp.lt.s32.totalorder %v643, %v646
      %vm651 = vmand %vm649, %vm650
      %vm652 = vmor %vm648, %vm651
      %v653 = vsel %vm652, %v642, %v645
      %654 = vst [vmem:[#allocation12] sm:$0xff] %v653
      %v655 = vsel %vm652, %v645, %v642
      %656 = vst [vmem:[#allocation13] sm:$0xff] %v655
      %v657 = vsel %vm652, %v643, %v646
      %658 = vst [vmem:[#allocation14] sm:$0xff] %v657
      %v659 = vsel %vm652, %v646, %v643
      %660 = vst [vmem:[#allocation15] sm:$0xff] %v659
      %661 = xla_tuple %656, %660
      %s662 = scalar_lea.vmem [#allocation12], 8
      %v663 = vld [vmem:[%s662] sm:$0xff]
      %s664 = scalar_lea.vmem [#allocation14], 8
      %v665 = vld [vmem:[%s664] sm:$0xff]
      %666 = xla_tuple %v663, %v665
      %s667 = scalar_lea.vmem [#allocation13], 8
      %v668 = vld [vmem:[%s667] sm:$0xff]
      %s669 = scalar_lea.vmem [#allocation15], 8
      %v670 = vld [vmem:[%s669] sm:$0xff]
      %671 = xla_tuple %v668, %v670
      %vm672 = vcmp.gt.s32.totalorder %v663, %v668
      %vm673 = vcmp.eq.s32.totalorder %v663, %v668
      %vm674 = vcmp.lt.s32.totalorder %v665, %v670
      %vm675 = vmand %vm673, %vm674
      %vm676 = vmor %vm672, %vm675
      %s677 = scalar_lea.vmem [#allocation12], 8
      %v678 = vsel %vm676, %v663, %v668
      %679 = vst [vmem:[%s677] sm:$0xff] %v678
      %s680 = scalar_lea.vmem [#allocation13], 8
      %v681 = vsel %vm676, %v668, %v663
      %682 = vst [vmem:[%s680] sm:$0xff] %v681
      %s683 = scalar_lea.vmem [#allocation14], 8
      %v684 = vsel %vm676, %v665, %v670
      %685 = vst [vmem:[%s683] sm:$0xff] %v684
      %s686 = scalar_lea.vmem [#allocation15], 8
      %v687 = vsel %vm676, %v670, %v665
      %688 = vst [vmem:[%s686] sm:$0xff] %v687
      %689 = xla_tuple %682, %688
      %s690 = scalar_lea.vmem [#allocation12], 16
      %v691 = vld [vmem:[%s690] sm:$0xff]
      %s692 = scalar_lea.vmem [#allocation14], 16
      %v693 = vld [vmem:[%s692] sm:$0xff]
      %694 = xla_tuple %v691, %v693
      %s695 = scalar_lea.vmem [#allocation13], 16
      %v696 = vld [vmem:[%s695] sm:$0xff]
      %s697 = scalar_lea.vmem [#allocation15], 16
      %v698 = vld [vmem:[%s697] sm:$0xff]
      %699 = xla_tuple %v696, %v698
      %vm700 = vcmp.gt.s32.totalorder %v691, %v696
      %vm701 = vcmp.eq.s32.totalorder %v691, %v696
      %vm702 = vcmp.lt.s32.totalorder %v693, %v698
      %vm703 = vmand %vm701, %vm702
      %vm704 = vmor %vm700, %vm703
      %s705 = scalar_lea.vmem [#allocation12], 16
      %v706 = vsel %vm704, %v691, %v696
      %707 = vst [vmem:[%s705] sm:$0xff] %v706
      %s708 = scalar_lea.vmem [#allocation13], 16
      %v709 = vsel %vm704, %v696, %v691
      %710 = vst [vmem:[%s708] sm:$0xff] %v709
      %s711 = scalar_lea.vmem [#allocation14], 16
      %v712 = vsel %vm704, %v693, %v698
      %713 = vst [vmem:[%s711] sm:$0xff] %v712
      %s714 = scalar_lea.vmem [#allocation15], 16
      %v715 = vsel %vm704, %v698, %v693
      %716 = vst [vmem:[%s714] sm:$0xff] %v715
      %717 = xla_tuple %710, %716
      %s718 = scalar_lea.vmem [#allocation12], 24
      %v719 = vld [vmem:[%s718] sm:$0xff]
      %s720 = scalar_lea.vmem [#allocation14], 24
      %v721 = vld [vmem:[%s720] sm:$0xff]
      %722 = xla_tuple %v719, %v721
      %s723 = scalar_lea.vmem [#allocation13], 24
      %v724 = vld [vmem:[%s723] sm:$0xff]
      %s725 = scalar_lea.vmem [#allocation15], 24
      %v726 = vld [vmem:[%s725] sm:$0xff]
      %727 = xla_tuple %v724, %v726
      %vm728 = vcmp.gt.s32.totalorder %v719, %v724
      %vm729 = vcmp.eq.s32.totalorder %v719, %v724
      %vm730 = vcmp.lt.s32.totalorder %v721, %v726
      %vm731 = vmand %vm729, %vm730
      %vm732 = vmor %vm728, %vm731
      %s733 = scalar_lea.vmem [#allocation12], 24
      %v734 = vsel %vm732, %v719, %v724
      %735 = vst [vmem:[%s733] sm:$0xff] %v734
      %s736 = scalar_lea.vmem [#allocation13], 24
      %v737 = vsel %vm732, %v724, %v719
      %738 = vst [vmem:[%s736] sm:$0xff] %v737
      %s739 = scalar_lea.vmem [#allocation14], 24
      %v740 = vsel %vm732, %v721, %v726
      %741 = vst [vmem:[%s739] sm:$0xff] %v740
      %s742 = scalar_lea.vmem [#allocation15], 24
      %v743 = vsel %vm732, %v726, %v721
      %744 = vst [vmem:[%s742] sm:$0xff] %v743
      %745 = xla_tuple %738, %744
      %s746 = scalar_lea.vmem [#allocation12], 16
      %s747 = scalar_lea.vmem [#allocation14], 16
      %748 = xla_tuple %s746, %s747
      %v749 = vld [vmem:[#allocation12] sm:$0xff]
      %v750 = vld [vmem:[#allocation14] sm:$0xff]
      %751 = xla_tuple %v749, %v750
      %v752 = vld [vmem:[%s746] sm:$0xff]
      %v753 = vld [vmem:[%s747] sm:$0xff]
      %754 = xla_tuple %v752, %v753
      %vm755 = vcmp.gt.s32.totalorder %v749, %v752
      %vm756 = vcmp.eq.s32.totalorder %v749, %v752
      %vm757 = vcmp.lt.s32.totalorder %v750, %v753
      %vm758 = vmand %vm756, %vm757
      %vm759 = vmor %vm755, %vm758
      %v760 = vsel %vm759, %v749, %v752
      %761 = vst [vmem:[#allocation12] sm:$0xff] %v760
      %v762 = vsel %vm759, %v752, %v749
      %763 = vst [vmem:[%s746] sm:$0xff] %v762
      %v764 = vsel %vm759, %v750, %v753
      %765 = vst [vmem:[#allocation14] sm:$0xff] %v764
      %v766 = vsel %vm759, %v753, %v750
      %767 = vst [vmem:[%s747] sm:$0xff] %v766
      %768 = xla_tuple %763, %767
      %s769 = scalar_lea.vmem [#allocation12], 8
      %v770 = vld [vmem:[%s769] sm:$0xff]
      %s771 = scalar_lea.vmem [#allocation14], 8
      %v772 = vld [vmem:[%s771] sm:$0xff]
      %773 = xla_tuple %v770, %v772
      %s774 = scalar_lea.vmem %s746, 8 [#allocation12]
      %v775 = vld [vmem:[%s774] sm:$0xff]
      %s776 = scalar_lea.vmem %s747, 8 [#allocation14]
      %v777 = vld [vmem:[%s776] sm:$0xff]
      %778 = xla_tuple %v775, %v777
      %vm779 = vcmp.gt.s32.totalorder %v770, %v775
      %vm780 = vcmp.eq.s32.totalorder %v770, %v775
      %vm781 = vcmp.lt.s32.totalorder %v772, %v777
      %vm782 = vmand %vm780, %vm781
      %vm783 = vmor %vm779, %vm782
      %s784 = scalar_lea.vmem [#allocation12], 8
      %v785 = vsel %vm783, %v770, %v775
      %786 = vst [vmem:[%s784] sm:$0xff] %v785
      %s787 = scalar_lea.vmem %s746, 8 [#allocation12]
      %v788 = vsel %vm783, %v775, %v770
      %789 = vst [vmem:[%s787] sm:$0xff] %v788
      %s790 = scalar_lea.vmem [#allocation14], 8
      %v791 = vsel %vm783, %v772, %v777
      %792 = vst [vmem:[%s790] sm:$0xff] %v791
      %s793 = scalar_lea.vmem %s747, 8 [#allocation14]
      %v794 = vsel %vm783, %v777, %v772
      %795 = vst [vmem:[%s793] sm:$0xff] %v794
      %796 = xla_tuple %789, %795
      %s797 = scalar_lea.vmem [#allocation12], 8
      %s798 = scalar_lea.vmem [#allocation14], 8
      %799 = xla_tuple %s797, %s798
      %v800 = vld [vmem:[#allocation12] sm:$0xff]
      %v801 = vld [vmem:[#allocation14] sm:$0xff]
      %802 = xla_tuple %v800, %v801
      %v803 = vld [vmem:[%s797] sm:$0xff]
      %v804 = vld [vmem:[%s798] sm:$0xff]
      %805 = xla_tuple %v803, %v804
      %vm806 = vcmp.gt.s32.totalorder %v800, %v803
      %vm807 = vcmp.eq.s32.totalorder %v800, %v803
      %vm808 = vcmp.lt.s32.totalorder %v801, %v804
      %vm809 = vmand %vm807, %vm808
      %vm810 = vmor %vm806, %vm809
      %v811 = vsel %vm810, %v800, %v803
      %812 = vst [vmem:[#allocation12] sm:$0xff] %v811
      %v813 = vsel %vm810, %v803, %v800
      %814 = vst [vmem:[%s797] sm:$0xff] %v813
      %v815 = vsel %vm810, %v801, %v804
      %816 = vst [vmem:[#allocation14] sm:$0xff] %v815
      %v817 = vsel %vm810, %v804, %v801
      %818 = vst [vmem:[%s798] sm:$0xff] %v817
      %819 = xla_tuple %814, %818
      %820 = xla_tuple [#allocation12], [#allocation14]
      %v821 = vld [vmem:[#allocation12] sm:$0xff]
      %v822 = vld [vmem:[#allocation14] sm:$0xff]
      %823 = xla_tuple %v821, %v822
      %v825 = vunpack.c.l.s4 839939668
      %v826 = vunpack.c.0.s8 %v825
      %v827 = vperm.slane %v821, %v826
      %v829 = vunpack.c.l.s4 839939668
      %v830 = vunpack.c.0.s8 %v829
      %v831 = vperm.slane %v822, %v830
      %832 = xla_tuple %v827, %v831
      %vm833 = vcmp.gt.s32.totalorder %v821, %v827
      %vm834 = vcmp.eq.s32.totalorder %v821, %v827
      %vm835 = vcmp.lt.s32.totalorder %v822, %v831
      %vm836 = vmand %vm834, %vm835
      %vm837 = vmor %vm833, %vm836
      %v838 = vlaneseq
      %v839 = vshrl.u32 %v838, 7
      %v840 = vand.u32 %v839, 4
      %vm841 = vcmp.ne.s32.totalorder %v840, 0
      %vm842 = vmxor %vm837, %vm841
      %v843 = vsel %vm842, %v821, %v827
      %v844 = vsel %vm842, %v822, %v831
      %845 = xla_tuple %v843, %v844
      %v847 = vunpack.c.l.s4 1417023538
      %v848 = vunpack.c.0.s8 %v847
      %v849 = vperm.slane %v843, %v848
      %v851 = vunpack.c.l.s4 1417023538
      %v852 = vunpack.c.0.s8 %v851
      %v853 = vperm.slane %v844, %v852
      %854 = xla_tuple %v849, %v853
      %vm855 = vcmp.gt.s32.totalorder %v843, %v849
      %vm856 = vcmp.eq.s32.totalorder %v843, %v849
      %vm857 = vcmp.lt.s32.totalorder %v844, %v853
      %vm858 = vmand %vm856, %vm857
      %vm859 = vmor %vm855, %vm858
      %v860 = vlaneseq
      %v861 = vshrl.u32 %v860, 7
      %v862 = vand.u32 %v861, 2
      %vm863 = vcmp.ne.s32.totalorder %v862, 0
      %vm864 = vmxor %vm859, %vm863
      %v865 = vsel %vm864, %v843, %v849
      %v866 = vsel %vm864, %v844, %v853
      %867 = xla_tuple %v865, %v866
      %v869 = vunpack.c.l.s4 1732584193
      %v870 = vunpack.c.0.s8 %v869
      %v871 = vperm.slane %v865, %v870
      %v873 = vunpack.c.l.s4 1732584193
      %v874 = vunpack.c.0.s8 %v873
      %v875 = vperm.slane %v866, %v874
      %876 = xla_tuple %v871, %v875
      %vm877 = vcmp.gt.s32.totalorder %v865, %v871
      %vm878 = vcmp.eq.s32.totalorder %v865, %v871
      %vm879 = vcmp.lt.s32.totalorder %v866, %v875
      %vm880 = vmand %vm878, %vm879
      %vm881 = vmor %vm877, %vm880
      %v882 = vlaneseq
      %v883 = vshrl.u32 %v882, 7
      %v884 = vand.u32 %v883, 1
      %vm885 = vcmp.ne.s32.totalorder %v884, 0
      %vm886 = vmxor %vm881, %vm885
      %v887 = vsel %vm886, %v865, %v871
      %v888 = vsel %vm886, %v866, %v875
      %889 = xla_tuple %v887, %v888
      %890 = vst [vmem:[#allocation12] sm:$0xff] %v887
      %891 = vst [vmem:[#allocation14] sm:$0xff] %v888
      %892 = xla_tuple %890, %891
      %v893 = vld [vmem:[#allocation12] sm:$0xff]
      %v894 = vld [vmem:[#allocation14] sm:$0xff]
      %895 = xla_tuple %v893, %v894
      %v897 = vunpack.c.l.s4 839939668
      %v898 = vunpack.c.0.s8 %v897
      %v899 = vperm.slane %v893, %v898
      %v901 = vunpack.c.l.s4 839939668
      %v902 = vunpack.c.0.s8 %v901
      %v903 = vperm.slane %v894, %v902
      %904 = xla_tuple %v899, %v903
      %vm905 = vcmp.gt.s32.totalorder %v893, %v899
      %vm906 = vcmp.eq.s32.totalorder %v893, %v899
      %vm907 = vcmp.lt.s32.totalorder %v894, %v903
      %vm908 = vmand %vm906, %vm907
      %vm909 = vmor %vm905, %vm908
      %v910 = vlaneseq
      %v911 = vshrl.u32 %v910, 7
      %v912 = vand.u32 %v911, 4
      %vm913 = vcmp.ne.s32.totalorder %v912, 0
      %vm914 = vmxor %vm909, %vm913
      %v915 = vsel %vm914, %v893, %v899
      %v916 = vsel %vm914, %v894, %v903
      %917 = xla_tuple %v915, %v916
      %v919 = vunpack.c.l.s4 1417023538
      %v920 = vunpack.c.0.s8 %v919
      %v921 = vperm.slane %v915, %v920
      %v923 = vunpack.c.l.s4 1417023538
      %v924 = vunpack.c.0.s8 %v923
      %v925 = vperm.slane %v916, %v924
      %926 = xla_tuple %v921, %v925
      %vm927 = vcmp.gt.s32.totalorder %v915, %v921
      %vm928 = vcmp.eq.s32.totalorder %v915, %v921
      %vm929 = vcmp.lt.s32.totalorder %v916, %v925
      %vm930 = vmand %vm928, %vm929
      %vm931 = vmor %vm927, %vm930
      %v932 = vlaneseq
      %v933 = vshrl.u32 %v932, 7
      %v934 = vand.u32 %v933, 2
      %vm935 = vcmp.ne.s32.totalorder %v934, 0
      %vm936 = vmxor %vm931, %vm935
      %v937 = vsel %vm936, %v915, %v921
      %v938 = vsel %vm936, %v916, %v925
      %939 = xla_tuple %v937, %v938
      %v941 = vunpack.c.l.s4 1732584193
      %v942 = vunpack.c.0.s8 %v941
      %v943 = vperm.slane %v937, %v942
      %v945 = vunpack.c.l.s4 1732584193
      %v946 = vunpack.c.0.s8 %v945
      %v947 = vperm.slane %v938, %v946
      %948 = xla_tuple %v943, %v947
      %vm949 = vcmp.gt.s32.totalorder %v937, %v943
      %vm950 = vcmp.eq.s32.totalorder %v937, %v943
      %vm951 = vcmp.lt.s32.totalorder %v938, %v947
      %vm952 = vmand %vm950, %vm951
      %vm953 = vmor %vm949, %vm952
      %v954 = vlaneseq
      %v955 = vshrl.u32 %v954, 7
      %v956 = vand.u32 %v955, 1
      %vm957 = vcmp.ne.s32.totalorder %v956, 0
      %vm958 = vmxor %vm953, %vm957
      %v959 = vsel %vm958, %v937, %v943
      %v960 = vsel %vm958, %v938, %v947
      %961 = xla_tuple %v959, %v960
      %962 = vst [vmem:[#allocation12] sm:$0xff] %v959
      %963 = vst [vmem:[#allocation14] sm:$0xff] %v960
      %964 = xla_tuple %962, %963
      %965 = xla_tuple %s797, %s798
      %v966 = vld [vmem:[%s797] sm:$0xff]
      %v967 = vld [vmem:[%s798] sm:$0xff]
      %968 = xla_tuple %v966, %v967
      %v970 = vunpack.c.l.s4 839939668
      %v971 = vunpack.c.0.s8 %v970
      %v972 = vperm.slane %v966, %v971
      %v974 = vunpack.c.l.s4 839939668
      %v975 = vunpack.c.0.s8 %v974
      %v976 = vperm.slane %v967, %v975
      %977 = xla_tuple %v972, %v976
      %vm978 = vcmp.gt.s32.totalorder %v966, %v972
      %vm979 = vcmp.eq.s32.totalorder %v966, %v972
      %vm980 = vcmp.lt.s32.totalorder %v967, %v976
      %vm981 = vmand %vm979, %vm980
      %vm982 = vmor %vm978, %vm981
      %v983 = vlaneseq
      %v984 = vshrl.u32 %v983, 7
      %v985 = vand.u32 %v984, 4
      %vm986 = vcmp.ne.s32.totalorder %v985, 0
      %vm987 = vmxor %vm982, %vm986
      %v988 = vsel %vm987, %v966, %v972
      %v989 = vsel %vm987, %v967, %v976
      %990 = xla_tuple %v988, %v989
      %v992 = vunpack.c.l.s4 1417023538
      %v993 = vunpack.c.0.s8 %v992
      %v994 = vperm.slane %v988, %v993
      %v996 = vunpack.c.l.s4 1417023538
      %v997 = vunpack.c.0.s8 %v996
      %v998 = vperm.slane %v989, %v997
      %999 = xla_tuple %v994, %v998
      %vm1000 = vcmp.gt.s32.totalorder %v988, %v994
      %vm1001 = vcmp.eq.s32.totalorder %v988, %v994
      %vm1002 = vcmp.lt.s32.totalorder %v989, %v998
      %vm1003 = vmand %vm1001, %vm1002
      %vm1004 = vmor %vm1000, %vm1003
      %v1005 = vlaneseq
      %v1006 = vshrl.u32 %v1005, 7
      %v1007 = vand.u32 %v1006, 2
      %vm1008 = vcmp.ne.s32.totalorder %v1007, 0
      %vm1009 = vmxor %vm1004, %vm1008
      %v1010 = vsel %vm1009, %v988, %v994
      %v1011 = vsel %vm1009, %v989, %v998
      %1012 = xla_tuple %v1010, %v1011
      %v1014 = vunpack.c.l.s4 1732584193
      %v1015 = vunpack.c.0.s8 %v1014
      %v1016 = vperm.slane %v1010, %v1015
      %v1018 = vunpack.c.l.s4 1732584193
      %v1019 = vunpack.c.0.s8 %v1018
      %v1020 = vperm.slane %v1011, %v1019
      %1021 = xla_tuple %v1016, %v1020
      %vm1022 = vcmp.gt.s32.totalorder %v1010, %v1016
      %vm1023 = vcmp.eq.s32.totalorder %v1010, %v1016
      %vm1024 = vcmp.lt.s32.totalorder %v1011, %v1020
      %vm1025 = vmand %vm1023, %vm1024
      %vm1026 = vmor %vm1022, %vm1025
      %v1027 = vlaneseq
      %v1028 = vshrl.u32 %v1027, 7
      %v1029 = vand.u32 %v1028, 1
      %vm1030 = vcmp.ne.s32.totalorder %v1029, 0
      %vm1031 = vmxor %vm1026, %vm1030
      %v1032 = vsel %vm1031, %v1010, %v1016
      %v1033 = vsel %vm1031, %v1011, %v1020
      %1034 = xla_tuple %v1032, %v1033
      %1035 = vst [vmem:[%s797] sm:$0xff] %v1032
      %1036 = vst [vmem:[%s798] sm:$0xff] %v1033
      %1037 = xla_tuple %1035, %1036
      %v1038 = vld [vmem:[%s797] sm:$0xff]
      %v1039 = vld [vmem:[%s798] sm:$0xff]
      %1040 = xla_tuple %v1038, %v1039
      %v1042 = vunpack.c.l.s4 839939668
      %v1043 = vunpack.c.0.s8 %v1042
      %v1044 = vperm.slane %v1038, %v1043
      %v1046 = vunpack.c.l.s4 839939668
      %v1047 = vunpack.c.0.s8 %v1046
      %v1048 = vperm.slane %v1039, %v1047
      %1049 = xla_tuple %v1044, %v1048
      %vm1050 = vcmp.gt.s32.totalorder %v1038, %v1044
      %vm1051 = vcmp.eq.s32.totalorder %v1038, %v1044
      %vm1052 = vcmp.lt.s32.totalorder %v1039, %v1048
      %vm1053 = vmand %vm1051, %vm1052
      %vm1054 = vmor %vm1050, %vm1053
      %v1055 = vlaneseq
      %v1056 = vshrl.u32 %v1055, 7
      %v1057 = vand.u32 %v1056, 4
      %vm1058 = vcmp.ne.s32.totalorder %v1057, 0
      %vm1059 = vmxor %vm1054, %vm1058
      %v1060 = vsel %vm1059, %v1038, %v1044
      %v1061 = vsel %vm1059, %v1039, %v1048
      %1062 = xla_tuple %v1060, %v1061
      %v1064 = vunpack.c.l.s4 1417023538
      %v1065 = vunpack.c.0.s8 %v1064
      %v1066 = vperm.slane %v1060, %v1065
      %v1068 = vunpack.c.l.s4 1417023538
      %v1069 = vunpack.c.0.s8 %v1068
      %v1070 = vperm.slane %v1061, %v1069
      %1071 = xla_tuple %v1066, %v1070
      %vm1072 = vcmp.gt.s32.totalorder %v1060, %v1066
      %vm1073 = vcmp.eq.s32.totalorder %v1060, %v1066
      %vm1074 = vcmp.lt.s32.totalorder %v1061, %v1070
      %vm1075 = vmand %vm1073, %vm1074
      %vm1076 = vmor %vm1072, %vm1075
      %v1077 = vlaneseq
      %v1078 = vshrl.u32 %v1077, 7
      %v1079 = vand.u32 %v1078, 2
      %vm1080 = vcmp.ne.s32.totalorder %v1079, 0
      %vm1081 = vmxor %vm1076, %vm1080
      %v1082 = vsel %vm1081, %v1060, %v1066
      %v1083 = vsel %vm1081, %v1061, %v1070
      %1084 = xla_tuple %v1082, %v1083
      %v1086 = vunpack.c.l.s4 1732584193
      %v1087 = vunpack.c.0.s8 %v1086
      %v1088 = vperm.slane %v1082, %v1087
      %v1090 = vunpack.c.l.s4 1732584193
      %v1091 = vunpack.c.0.s8 %v1090
      %v1092 = vperm.slane %v1083, %v1091
      %1093 = xla_tuple %v1088, %v1092
      %vm1094 = vcmp.gt.s32.totalorder %v1082, %v1088
      %vm1095 = vcmp.eq.s32.totalorder %v1082, %v1088
      %vm1096 = vcmp.lt.s32.totalorder %v1083, %v1092
      %vm1097 = vmand %vm1095, %vm1096
      %vm1098 = vmor %vm1094, %vm1097
      %v1099 = vlaneseq
      %v1100 = vshrl.u32 %v1099, 7
      %v1101 = vand.u32 %v1100, 1
      %vm1102 = vcmp.ne.s32.totalorder %v1101, 0
      %vm1103 = vmxor %vm1098, %vm1102
      %v1104 = vsel %vm1103, %v1082, %v1088
      %v1105 = vsel %vm1103, %v1083, %v1092
      %1106 = xla_tuple %v1104, %v1105
      %1107 = vst [vmem:[%s797] sm:$0xff] %v1104
      %1108 = vst [vmem:[%s798] sm:$0xff] %v1105
      %1109 = xla_tuple %1107, %1108
      %s1110 = scalar_lea.vmem %s746, 8 [#allocation12]
      %s1111 = scalar_lea.vmem %s747, 8 [#allocation14]
      %1112 = xla_tuple %s1110, %s1111
      %v1113 = vld [vmem:[%s746] sm:$0xff]
      %v1114 = vld [vmem:[%s747] sm:$0xff]
      %1115 = xla_tuple %v1113, %v1114
      %v1116 = vld [vmem:[%s1110] sm:$0xff]
      %v1117 = vld [vmem:[%s1111] sm:$0xff]
      %1118 = xla_tuple %v1116, %v1117
      %vm1119 = vcmp.gt.s32.totalorder %v1113, %v1116
      %vm1120 = vcmp.eq.s32.totalorder %v1113, %v1116
      %vm1121 = vcmp.lt.s32.totalorder %v1114, %v1117
      %vm1122 = vmand %vm1120, %vm1121
      %vm1123 = vmor %vm1119, %vm1122
      %v1124 = vsel %vm1123, %v1113, %v1116
      %1125 = vst [vmem:[%s746] sm:$0xff] %v1124
      %v1126 = vsel %vm1123, %v1116, %v1113
      %1127 = vst [vmem:[%s1110] sm:$0xff] %v1126
      %v1128 = vsel %vm1123, %v1114, %v1117
      %1129 = vst [vmem:[%s747] sm:$0xff] %v1128
      %v1130 = vsel %vm1123, %v1117, %v1114
      %1131 = vst [vmem:[%s1111] sm:$0xff] %v1130
      %1132 = xla_tuple %1127, %1131
      %1133 = xla_tuple %s746, %s747
      %v1134 = vld [vmem:[%s746] sm:$0xff]
      %v1135 = vld [vmem:[%s747] sm:$0xff]
      %1136 = xla_tuple %v1134, %v1135
      %v1138 = vunpack.c.l.s4 839939668
      %v1139 = vunpack.c.0.s8 %v1138
      %v1140 = vperm.slane %v1134, %v1139
      %v1142 = vunpack.c.l.s4 839939668
      %v1143 = vunpack.c.0.s8 %v1142
      %v1144 = vperm.slane %v1135, %v1143
      %1145 = xla_tuple %v1140, %v1144
      %vm1146 = vcmp.gt.s32.totalorder %v1134, %v1140
      %vm1147 = vcmp.eq.s32.totalorder %v1134, %v1140
      %vm1148 = vcmp.lt.s32.totalorder %v1135, %v1144
      %vm1149 = vmand %vm1147, %vm1148
      %vm1150 = vmor %vm1146, %vm1149
      %v1151 = vlaneseq
      %v1152 = vshrl.u32 %v1151, 7
      %v1153 = vand.u32 %v1152, 4
      %vm1154 = vcmp.ne.s32.totalorder %v1153, 0
      %vm1155 = vmxor %vm1150, %vm1154
      %v1156 = vsel %vm1155, %v1134, %v1140
      %v1157 = vsel %vm1155, %v1135, %v1144
      %1158 = xla_tuple %v1156, %v1157
      %v1160 = vunpack.c.l.s4 1417023538
      %v1161 = vunpack.c.0.s8 %v1160
      %v1162 = vperm.slane %v1156, %v1161
      %v1164 = vunpack.c.l.s4 1417023538
      %v1165 = vunpack.c.0.s8 %v1164
      %v1166 = vperm.slane %v1157, %v1165
      %1167 = xla_tuple %v1162, %v1166
      %vm1168 = vcmp.gt.s32.totalorder %v1156, %v1162
      %vm1169 = vcmp.eq.s32.totalorder %v1156, %v1162
      %vm1170 = vcmp.lt.s32.totalorder %v1157, %v1166
      %vm1171 = vmand %vm1169, %vm1170
      %vm1172 = vmor %vm1168, %vm1171
      %v1173 = vlaneseq
      %v1174 = vshrl.u32 %v1173, 7
      %v1175 = vand.u32 %v1174, 2
      %vm1176 = vcmp.ne.s32.totalorder %v1175, 0
      %vm1177 = vmxor %vm1172, %vm1176
      %v1178 = vsel %vm1177, %v1156, %v1162
      %v1179 = vsel %vm1177, %v1157, %v1166
      %1180 = xla_tuple %v1178, %v1179
      %v1182 = vunpack.c.l.s4 1732584193
      %v1183 = vunpack.c.0.s8 %v1182
      %v1184 = vperm.slane %v1178, %v1183
      %v1186 = vunpack.c.l.s4 1732584193
      %v1187 = vunpack.c.0.s8 %v1186
      %v1188 = vperm.slane %v1179, %v1187
      %1189 = xla_tuple %v1184, %v1188
      %vm1190 = vcmp.gt.s32.totalorder %v1178, %v1184
      %vm1191 = vcmp.eq.s32.totalorder %v1178, %v1184
      %vm1192 = vcmp.lt.s32.totalorder %v1179, %v1188
      %vm1193 = vmand %vm1191, %vm1192
      %vm1194 = vmor %vm1190, %vm1193
      %v1195 = vlaneseq
      %v1196 = vshrl.u32 %v1195, 7
      %v1197 = vand.u32 %v1196, 1
      %vm1198 = vcmp.ne.s32.totalorder %v1197, 0
      %vm1199 = vmxor %vm1194, %vm1198
      %v1200 = vsel %vm1199, %v1178, %v1184
      %v1201 = vsel %vm1199, %v1179, %v1188
      %1202 = xla_tuple %v1200, %v1201
      %1203 = vst [vmem:[%s746] sm:$0xff] %v1200
      %1204 = vst [vmem:[%s747] sm:$0xff] %v1201
      %1205 = xla_tuple %1203, %1204
      %v1206 = vld [vmem:[%s746] sm:$0xff]
      %v1207 = vld [vmem:[%s747] sm:$0xff]
      %1208 = xla_tuple %v1206, %v1207
      %v1210 = vunpack.c.l.s4 839939668
      %v1211 = vunpack.c.0.s8 %v1210
      %v1212 = vperm.slane %v1206, %v1211
      %v1214 = vunpack.c.l.s4 839939668
      %v1215 = vunpack.c.0.s8 %v1214
      %v1216 = vperm.slane %v1207, %v1215
      %1217 = xla_tuple %v1212, %v1216
      %vm1218 = vcmp.gt.s32.totalorder %v1206, %v1212
      %vm1219 = vcmp.eq.s32.totalorder %v1206, %v1212
      %vm1220 = vcmp.lt.s32.totalorder %v1207, %v1216
      %vm1221 = vmand %vm1219, %vm1220
      %vm1222 = vmor %vm1218, %vm1221
      %v1223 = vlaneseq
      %v1224 = vshrl.u32 %v1223, 7
      %v1225 = vand.u32 %v1224, 4
      %vm1226 = vcmp.ne.s32.totalorder %v1225, 0
      %vm1227 = vmxor %vm1222, %vm1226
      %v1228 = vsel %vm1227, %v1206, %v1212
      %v1229 = vsel %vm1227, %v1207, %v1216
      %1230 = xla_tuple %v1228, %v1229
      %v1232 = vunpack.c.l.s4 1417023538
      %v1233 = vunpack.c.0.s8 %v1232
      %v1234 = vperm.slane %v1228, %v1233
      %v1236 = vunpack.c.l.s4 1417023538
      %v1237 = vunpack.c.0.s8 %v1236
      %v1238 = vperm.slane %v1229, %v1237
      %1239 = xla_tuple %v1234, %v1238
      %vm1240 = vcmp.gt.s32.totalorder %v1228, %v1234
      %vm1241 = vcmp.eq.s32.totalorder %v1228, %v1234
      %vm1242 = vcmp.lt.s32.totalorder %v1229, %v1238
      %vm1243 = vmand %vm1241, %vm1242
      %vm1244 = vmor %vm1240, %vm1243
      %v1245 = vlaneseq
      %v1246 = vshrl.u32 %v1245, 7
      %v1247 = vand.u32 %v1246, 2
      %vm1248 = vcmp.ne.s32.totalorder %v1247, 0
      %vm1249 = vmxor %vm1244, %vm1248
      %v1250 = vsel %vm1249, %v1228, %v1234
      %v1251 = vsel %vm1249, %v1229, %v1238
      %1252 = xla_tuple %v1250, %v1251
      %v1254 = vunpack.c.l.s4 1732584193
      %v1255 = vunpack.c.0.s8 %v1254
      %v1256 = vperm.slane %v1250, %v1255
      %v1258 = vunpack.c.l.s4 1732584193
      %v1259 = vunpack.c.0.s8 %v1258
      %v1260 = vperm.slane %v1251, %v1259
      %1261 = xla_tuple %v1256, %v1260
      %vm1262 = vcmp.gt.s32.totalorder %v1250, %v1256
      %vm1263 = vcmp.eq.s32.totalorder %v1250, %v1256
      %vm1264 = vcmp.lt.s32.totalorder %v1251, %v1260
      %vm1265 = vmand %vm1263, %vm1264
      %vm1266 = vmor %vm1262, %vm1265
      %v1267 = vlaneseq
      %v1268 = vshrl.u32 %v1267, 7
      %v1269 = vand.u32 %v1268, 1
      %vm1270 = vcmp.ne.s32.totalorder %v1269, 0
      %vm1271 = vmxor %vm1266, %vm1270
      %v1272 = vsel %vm1271, %v1250, %v1256
      %v1273 = vsel %vm1271, %v1251, %v1260
      %1274 = xla_tuple %v1272, %v1273
      %1275 = vst [vmem:[%s746] sm:$0xff] %v1272
      %1276 = vst [vmem:[%s747] sm:$0xff] %v1273
      %1277 = xla_tuple %1275, %1276
      %1278 = xla_tuple %s1110, %s1111
      %v1279 = vld [vmem:[%s1110] sm:$0xff]
      %v1280 = vld [vmem:[%s1111] sm:$0xff]
      %1281 = xla_tuple %v1279, %v1280
      %v1283 = vunpack.c.l.s4 839939668
      %v1284 = vunpack.c.0.s8 %v1283
      %v1285 = vperm.slane %v1279, %v1284
      %v1287 = vunpack.c.l.s4 839939668
      %v1288 = vunpack.c.0.s8 %v1287
      %v1289 = vperm.slane %v1280, %v1288
      %1290 = xla_tuple %v1285, %v1289
      %vm1291 = vcmp.gt.s32.totalorder %v1279, %v1285
      %vm1292 = vcmp.eq.s32.totalorder %v1279, %v1285
      %vm1293 = vcmp.lt.s32.totalorder %v1280, %v1289
      %vm1294 = vmand %vm1292, %vm1293
      %vm1295 = vmor %vm1291, %vm1294
      %v1296 = vlaneseq
      %v1297 = vshrl.u32 %v1296, 7
      %v1298 = vand.u32 %v1297, 4
      %vm1299 = vcmp.ne.s32.totalorder %v1298, 0
      %vm1300 = vmxor %vm1295, %vm1299
      %v1301 = vsel %vm1300, %v1279, %v1285
      %v1302 = vsel %vm1300, %v1280, %v1289
      %1303 = xla_tuple %v1301, %v1302
      %v1305 = vunpack.c.l.s4 1417023538
      %v1306 = vunpack.c.0.s8 %v1305
      %v1307 = vperm.slane %v1301, %v1306
      %v1309 = vunpack.c.l.s4 1417023538
      %v1310 = vunpack.c.0.s8 %v1309
      %v1311 = vperm.slane %v1302, %v1310
      %1312 = xla_tuple %v1307, %v1311
      %vm1313 = vcmp.gt.s32.totalorder %v1301, %v1307
      %vm1314 = vcmp.eq.s32.totalorder %v1301, %v1307
      %vm1315 = vcmp.lt.s32.totalorder %v1302, %v1311
      %vm1316 = vmand %vm1314, %vm1315
      %vm1317 = vmor %vm1313, %vm1316
      %v1318 = vlaneseq
      %v1319 = vshrl.u32 %v1318, 7
      %v1320 = vand.u32 %v1319, 2
      %vm1321 = vcmp.ne.s32.totalorder %v1320, 0
      %vm1322 = vmxor %vm1317, %vm1321
      %v1323 = vsel %vm1322, %v1301, %v1307
      %v1324 = vsel %vm1322, %v1302, %v1311
      %1325 = xla_tuple %v1323, %v1324
      %v1327 = vunpack.c.l.s4 1732584193
      %v1328 = vunpack.c.0.s8 %v1327
      %v1329 = vperm.slane %v1323, %v1328
      %v1331 = vunpack.c.l.s4 1732584193
      %v1332 = vunpack.c.0.s8 %v1331
      %v1333 = vperm.slane %v1324, %v1332
      %1334 = xla_tuple %v1329, %v1333
      %vm1335 = vcmp.gt.s32.totalorder %v1323, %v1329
      %vm1336 = vcmp.eq.s32.totalorder %v1323, %v1329
      %vm1337 = vcmp.lt.s32.totalorder %v1324, %v1333
      %vm1338 = vmand %vm1336, %vm1337
      %vm1339 = vmor %vm1335, %vm1338
      %v1340 = vlaneseq
      %v1341 = vshrl.u32 %v1340, 7
      %v1342 = vand.u32 %v1341, 1
      %vm1343 = vcmp.ne.s32.totalorder %v1342, 0
      %vm1344 = vmxor %vm1339, %vm1343
      %v1345 = vsel %vm1344, %v1323, %v1329
      %v1346 = vsel %vm1344, %v1324, %v1333
      %1347 = xla_tuple %v1345, %v1346
      %1348 = vst [vmem:[%s1110] sm:$0xff] %v1345
      %1349 = vst [vmem:[%s1111] sm:$0xff] %v1346
      %1350 = xla_tuple %1348, %1349
      %v1351 = vld [vmem:[%s1110] sm:$0xff]
      %v1352 = vld [vmem:[%s1111] sm:$0xff]
      %1353 = xla_tuple %v1351, %v1352
      %v1355 = vunpack.c.l.s4 839939668
      %v1356 = vunpack.c.0.s8 %v1355
      %v1357 = vperm.slane %v1351, %v1356
      %v1359 = vunpack.c.l.s4 839939668
      %v1360 = vunpack.c.0.s8 %v1359
      %v1361 = vperm.slane %v1352, %v1360
      %1362 = xla_tuple %v1357, %v1361
      %vm1363 = vcmp.gt.s32.totalorder %v1351, %v1357
      %vm1364 = vcmp.eq.s32.totalorder %v1351, %v1357
      %vm1365 = vcmp.lt.s32.totalorder %v1352, %v1361
      %vm1366 = vmand %vm1364, %vm1365
      %vm1367 = vmor %vm1363, %vm1366
      %v1368 = vlaneseq
      %v1369 = vshrl.u32 %v1368, 7
      %v1370 = vand.u32 %v1369, 4
      %vm1371 = vcmp.ne.s32.totalorder %v1370, 0
      %vm1372 = vmxor %vm1367, %vm1371
      %v1373 = vsel %vm1372, %v1351, %v1357
      %v1374 = vsel %vm1372, %v1352, %v1361
      %1375 = xla_tuple %v1373, %v1374
      %v1377 = vunpack.c.l.s4 1417023538
      %v1378 = vunpack.c.0.s8 %v1377
      %v1379 = vperm.slane %v1373, %v1378
      %v1381 = vunpack.c.l.s4 1417023538
      %v1382 = vunpack.c.0.s8 %v1381
      %v1383 = vperm.slane %v1374, %v1382
      %1384 = xla_tuple %v1379, %v1383
      %vm1385 = vcmp.gt.s32.totalorder %v1373, %v1379
      %vm1386 = vcmp.eq.s32.totalorder %v1373, %v1379
      %vm1387 = vcmp.lt.s32.totalorder %v1374, %v1383
      %vm1388 = vmand %vm1386, %vm1387
      %vm1389 = vmor %vm1385, %vm1388
      %v1390 = vlaneseq
      %v1391 = vshrl.u32 %v1390, 7
      %v1392 = vand.u32 %v1391, 2
      %vm1393 = vcmp.ne.s32.totalorder %v1392, 0
      %vm1394 = vmxor %vm1389, %vm1393
      %v1395 = vsel %vm1394, %v1373, %v1379
      %v1396 = vsel %vm1394, %v1374, %v1383
      %1397 = xla_tuple %v1395, %v1396
      %v1399 = vunpack.c.l.s4 1732584193
      %v1400 = vunpack.c.0.s8 %v1399
      %v1401 = vperm.slane %v1395, %v1400
      %v1403 = vunpack.c.l.s4 1732584193
      %v1404 = vunpack.c.0.s8 %v1403
      %v1405 = vperm.slane %v1396, %v1404
      %1406 = xla_tuple %v1401, %v1405
      %vm1407 = vcmp.gt.s32.totalorder %v1395, %v1401
      %vm1408 = vcmp.eq.s32.totalorder %v1395, %v1401
      %vm1409 = vcmp.lt.s32.totalorder %v1396, %v1405
      %vm1410 = vmand %vm1408, %vm1409
      %vm1411 = vmor %vm1407, %vm1410
      %v1412 = vlaneseq
      %v1413 = vshrl.u32 %v1412, 7
      %v1414 = vand.u32 %v1413, 1
      %vm1415 = vcmp.ne.s32.totalorder %v1414, 0
      %vm1416 = vmxor %vm1411, %vm1415
      %v1417 = vsel %vm1416, %v1395, %v1401
      %v1418 = vsel %vm1416, %v1396, %v1405
      %1419 = xla_tuple %v1417, %v1418
      %1420 = vst [vmem:[%s1110] sm:$0xff] %v1417
      %1421 = vst [vmem:[%s1111] sm:$0xff] %v1418
      %1422 = xla_tuple %1420, %1421
      %s1423 = scalar_lea.vmem [#allocation13], 16
      %s1424 = scalar_lea.vmem [#allocation15], 16
      %1425 = xla_tuple %s1423, %s1424
      %v1426 = vld [vmem:[#allocation13] sm:$0xff]
      %v1427 = vld [vmem:[#allocation15] sm:$0xff]
      %1428 = xla_tuple %v1426, %v1427
      %v1429 = vld [vmem:[%s1423] sm:$0xff]
      %v1430 = vld [vmem:[%s1424] sm:$0xff]
      %1431 = xla_tuple %v1429, %v1430
      %vm1432 = vcmp.gt.s32.totalorder %v1426, %v1429
      %vm1433 = vcmp.eq.s32.totalorder %v1426, %v1429
      %vm1434 = vcmp.lt.s32.totalorder %v1427, %v1430
      %vm1435 = vmand %vm1433, %vm1434
      %vm1436 = vmor %vm1432, %vm1435
      %v1437 = vsel %vm1436, %v1426, %v1429
      %1438 = vst [vmem:[#allocation13] sm:$0xff] %v1437
      %v1439 = vsel %vm1436, %v1429, %v1426
      %1440 = vst [vmem:[%s1423] sm:$0xff] %v1439
      %v1441 = vsel %vm1436, %v1427, %v1430
      %1442 = vst [vmem:[#allocation15] sm:$0xff] %v1441
      %v1443 = vsel %vm1436, %v1430, %v1427
      %1444 = vst [vmem:[%s1424] sm:$0xff] %v1443
      %1445 = xla_tuple %1440, %1444
      %s1446 = scalar_lea.vmem [#allocation13], 8
      %v1447 = vld [vmem:[%s1446] sm:$0xff]
      %s1448 = scalar_lea.vmem [#allocation15], 8
      %v1449 = vld [vmem:[%s1448] sm:$0xff]
      %1450 = xla_tuple %v1447, %v1449
      %s1451 = scalar_lea.vmem %s1423, 8 [#allocation13]
      %v1452 = vld [vmem:[%s1451] sm:$0xff]
      %s1453 = scalar_lea.vmem %s1424, 8 [#allocation15]
      %v1454 = vld [vmem:[%s1453] sm:$0xff]
      %1455 = xla_tuple %v1452, %v1454
      %vm1456 = vcmp.gt.s32.totalorder %v1447, %v1452
      %vm1457 = vcmp.eq.s32.totalorder %v1447, %v1452
      %vm1458 = vcmp.lt.s32.totalorder %v1449, %v1454
      %vm1459 = vmand %vm1457, %vm1458
      %vm1460 = vmor %vm1456, %vm1459
      %s1461 = scalar_lea.vmem [#allocation13], 8
      %v1462 = vsel %vm1460, %v1447, %v1452
      %1463 = vst [vmem:[%s1461] sm:$0xff] %v1462
      %s1464 = scalar_lea.vmem %s1423, 8 [#allocation13]
      %v1465 = vsel %vm1460, %v1452, %v1447
      %1466 = vst [vmem:[%s1464] sm:$0xff] %v1465
      %s1467 = scalar_lea.vmem [#allocation15], 8
      %v1468 = vsel %vm1460, %v1449, %v1454
      %1469 = vst [vmem:[%s1467] sm:$0xff] %v1468
      %s1470 = scalar_lea.vmem %s1424, 8 [#allocation15]
      %v1471 = vsel %vm1460, %v1454, %v1449
      %1472 = vst [vmem:[%s1470] sm:$0xff] %v1471
      %1473 = xla_tuple %1466, %1472
      %s1474 = scalar_lea.vmem [#allocation13], 8
      %s1475 = scalar_lea.vmem [#allocation15], 8
      %1476 = xla_tuple %s1474, %s1475
      %v1477 = vld [vmem:[#allocation13] sm:$0xff]
      %v1478 = vld [vmem:[#allocation15] sm:$0xff]
      %1479 = xla_tuple %v1477, %v1478
      %v1480 = vld [vmem:[%s1474] sm:$0xff]
      %v1481 = vld [vmem:[%s1475] sm:$0xff]
      %1482 = xla_tuple %v1480, %v1481
      %vm1483 = vcmp.gt.s32.totalorder %v1477, %v1480
      %vm1484 = vcmp.eq.s32.totalorder %v1477, %v1480
      %vm1485 = vcmp.lt.s32.totalorder %v1478, %v1481
      %vm1486 = vmand %vm1484, %vm1485
      %vm1487 = vmor %vm1483, %vm1486
      %v1488 = vsel %vm1487, %v1477, %v1480
      %1489 = vst [vmem:[#allocation13] sm:$0xff] %v1488
      %v1490 = vsel %vm1487, %v1480, %v1477
      %1491 = vst [vmem:[%s1474] sm:$0xff] %v1490
      %v1492 = vsel %vm1487, %v1478, %v1481
      %1493 = vst [vmem:[#allocation15] sm:$0xff] %v1492
      %v1494 = vsel %vm1487, %v1481, %v1478
      %1495 = vst [vmem:[%s1475] sm:$0xff] %v1494
      %1496 = xla_tuple %1491, %1495
      %1497 = xla_tuple [#allocation13], [#allocation15]
      %v1498 = vld [vmem:[#allocation13] sm:$0xff]
      %v1499 = vld [vmem:[#allocation15] sm:$0xff]
      %1500 = xla_tuple %v1498, %v1499
      %v1502 = vunpack.c.l.s4 839939668
      %v1503 = vunpack.c.0.s8 %v1502
      %v1504 = vperm.slane %v1498, %v1503
      %v1506 = vunpack.c.l.s4 839939668
      %v1507 = vunpack.c.0.s8 %v1506
      %v1508 = vperm.slane %v1499, %v1507
      %1509 = xla_tuple %v1504, %v1508
      %vm1510 = vcmp.gt.s32.totalorder %v1498, %v1504
      %vm1511 = vcmp.eq.s32.totalorder %v1498, %v1504
      %vm1512 = vcmp.lt.s32.totalorder %v1499, %v1508
      %vm1513 = vmand %vm1511, %vm1512
      %vm1514 = vmor %vm1510, %vm1513
      %v1515 = vlaneseq
      %v1516 = vshrl.u32 %v1515, 7
      %v1517 = vand.u32 %v1516, 4
      %vm1518 = vcmp.ne.s32.totalorder %v1517, 0
      %vm1519 = vmxor %vm1514, %vm1518
      %v1520 = vsel %vm1519, %v1498, %v1504
      %v1521 = vsel %vm1519, %v1499, %v1508
      %1522 = xla_tuple %v1520, %v1521
      %v1524 = vunpack.c.l.s4 1417023538
      %v1525 = vunpack.c.0.s8 %v1524
      %v1526 = vperm.slane %v1520, %v1525
      %v1528 = vunpack.c.l.s4 1417023538
      %v1529 = vunpack.c.0.s8 %v1528
      %v1530 = vperm.slane %v1521, %v1529
      %1531 = xla_tuple %v1526, %v1530
      %vm1532 = vcmp.gt.s32.totalorder %v1520, %v1526
      %vm1533 = vcmp.eq.s32.totalorder %v1520, %v1526
      %vm1534 = vcmp.lt.s32.totalorder %v1521, %v1530
      %vm1535 = vmand %vm1533, %vm1534
      %vm1536 = vmor %vm1532, %vm1535
      %v1537 = vlaneseq
      %v1538 = vshrl.u32 %v1537, 7
      %v1539 = vand.u32 %v1538, 2
      %vm1540 = vcmp.ne.s32.totalorder %v1539, 0
      %vm1541 = vmxor %vm1536, %vm1540
      %v1542 = vsel %vm1541, %v1520, %v1526
      %v1543 = vsel %vm1541, %v1521, %v1530
      %1544 = xla_tuple %v1542, %v1543
      %v1546 = vunpack.c.l.s4 1732584193
      %v1547 = vunpack.c.0.s8 %v1546
      %v1548 = vperm.slane %v1542, %v1547
      %v1550 = vunpack.c.l.s4 1732584193
      %v1551 = vunpack.c.0.s8 %v1550
      %v1552 = vperm.slane %v1543, %v1551
      %1553 = xla_tuple %v1548, %v1552
      %vm1554 = vcmp.gt.s32.totalorder %v1542, %v1548
      %vm1555 = vcmp.eq.s32.totalorder %v1542, %v1548
      %vm1556 = vcmp.lt.s32.totalorder %v1543, %v1552
      %vm1557 = vmand %vm1555, %vm1556
      %vm1558 = vmor %vm1554, %vm1557
      %v1559 = vlaneseq
      %v1560 = vshrl.u32 %v1559, 7
      %v1561 = vand.u32 %v1560, 1
      %vm1562 = vcmp.ne.s32.totalorder %v1561, 0
      %vm1563 = vmxor %vm1558, %vm1562
      %v1564 = vsel %vm1563, %v1542, %v1548
      %v1565 = vsel %vm1563, %v1543, %v1552
      %1566 = xla_tuple %v1564, %v1565
      %1567 = vst [vmem:[#allocation13] sm:$0xff] %v1564
      %1568 = vst [vmem:[#allocation15] sm:$0xff] %v1565
      %1569 = xla_tuple %1567, %1568
      %v1570 = vld [vmem:[#allocation13] sm:$0xff]
      %v1571 = vld [vmem:[#allocation15] sm:$0xff]
      %1572 = xla_tuple %v1570, %v1571
      %v1574 = vunpack.c.l.s4 839939668
      %v1575 = vunpack.c.0.s8 %v1574
      %v1576 = vperm.slane %v1570, %v1575
      %v1578 = vunpack.c.l.s4 839939668
      %v1579 = vunpack.c.0.s8 %v1578
      %v1580 = vperm.slane %v1571, %v1579
      %1581 = xla_tuple %v1576, %v1580
      %vm1582 = vcmp.gt.s32.totalorder %v1570, %v1576
      %vm1583 = vcmp.eq.s32.totalorder %v1570, %v1576
      %vm1584 = vcmp.lt.s32.totalorder %v1571, %v1580
      %vm1585 = vmand %vm1583, %vm1584
      %vm1586 = vmor %vm1582, %vm1585
      %v1587 = vlaneseq
      %v1588 = vshrl.u32 %v1587, 7
      %v1589 = vand.u32 %v1588, 4
      %vm1590 = vcmp.ne.s32.totalorder %v1589, 0
      %vm1591 = vmxor %vm1586, %vm1590
      %v1592 = vsel %vm1591, %v1570, %v1576
      %v1593 = vsel %vm1591, %v1571, %v1580
      %1594 = xla_tuple %v1592, %v1593
      %v1596 = vunpack.c.l.s4 1417023538
      %v1597 = vunpack.c.0.s8 %v1596
      %v1598 = vperm.slane %v1592, %v1597
      %v1600 = vunpack.c.l.s4 1417023538
      %v1601 = vunpack.c.0.s8 %v1600
      %v1602 = vperm.slane %v1593, %v1601
      %1603 = xla_tuple %v1598, %v1602
      %vm1604 = vcmp.gt.s32.totalorder %v1592, %v1598
      %vm1605 = vcmp.eq.s32.totalorder %v1592, %v1598
      %vm1606 = vcmp.lt.s32.totalorder %v1593, %v1602
      %vm1607 = vmand %vm1605, %vm1606
      %vm1608 = vmor %vm1604, %vm1607
      %v1609 = vlaneseq
      %v1610 = vshrl.u32 %v1609, 7
      %v1611 = vand.u32 %v1610, 2
      %vm1612 = vcmp.ne.s32.totalorder %v1611, 0
      %vm1613 = vmxor %vm1608, %vm1612
      %v1614 = vsel %vm1613, %v1592, %v1598
      %v1615 = vsel %vm1613, %v1593, %v1602
      %1616 = xla_tuple %v1614, %v1615
      %v1618 = vunpack.c.l.s4 1732584193
      %v1619 = vunpack.c.0.s8 %v1618
      %v1620 = vperm.slane %v1614, %v1619
      %v1622 = vunpack.c.l.s4 1732584193
      %v1623 = vunpack.c.0.s8 %v1622
      %v1624 = vperm.slane %v1615, %v1623
      %1625 = xla_tuple %v1620, %v1624
      %vm1626 = vcmp.gt.s32.totalorder %v1614, %v1620
      %vm1627 = vcmp.eq.s32.totalorder %v1614, %v1620
      %vm1628 = vcmp.lt.s32.totalorder %v1615, %v1624
      %vm1629 = vmand %vm1627, %vm1628
      %vm1630 = vmor %vm1626, %vm1629
      %v1631 = vlaneseq
      %v1632 = vshrl.u32 %v1631, 7
      %v1633 = vand.u32 %v1632, 1
      %vm1634 = vcmp.ne.s32.totalorder %v1633, 0
      %vm1635 = vmxor %vm1630, %vm1634
      %v1636 = vsel %vm1635, %v1614, %v1620
      %v1637 = vsel %vm1635, %v1615, %v1624
      %1638 = xla_tuple %v1636, %v1637
      %1639 = vst [vmem:[#allocation13] sm:$0xff] %v1636
      %1640 = vst [vmem:[#allocation15] sm:$0xff] %v1637
      %1641 = xla_tuple %1639, %1640
      %1642 = xla_tuple %s1474, %s1475
      %v1643 = vld [vmem:[%s1474] sm:$0xff]
      %v1644 = vld [vmem:[%s1475] sm:$0xff]
      %1645 = xla_tuple %v1643, %v1644
      %v1647 = vunpack.c.l.s4 839939668
      %v1648 = vunpack.c.0.s8 %v1647
      %v1649 = vperm.slane %v1643, %v1648
      %v1651 = vunpack.c.l.s4 839939668
      %v1652 = vunpack.c.0.s8 %v1651
      %v1653 = vperm.slane %v1644, %v1652
      %1654 = xla_tuple %v1649, %v1653
      %vm1655 = vcmp.gt.s32.totalorder %v1643, %v1649
      %vm1656 = vcmp.eq.s32.totalorder %v1643, %v1649
      %vm1657 = vcmp.lt.s32.totalorder %v1644, %v1653
      %vm1658 = vmand %vm1656, %vm1657
      %vm1659 = vmor %vm1655, %vm1658
      %v1660 = vlaneseq
      %v1661 = vshrl.u32 %v1660, 7
      %v1662 = vand.u32 %v1661, 4
      %vm1663 = vcmp.ne.s32.totalorder %v1662, 0
      %vm1664 = vmxor %vm1659, %vm1663
      %v1665 = vsel %vm1664, %v1643, %v1649
      %v1666 = vsel %vm1664, %v1644, %v1653
      %1667 = xla_tuple %v1665, %v1666
      %v1669 = vunpack.c.l.s4 1417023538
      %v1670 = vunpack.c.0.s8 %v1669
      %v1671 = vperm.slane %v1665, %v1670
      %v1673 = vunpack.c.l.s4 1417023538
      %v1674 = vunpack.c.0.s8 %v1673
      %v1675 = vperm.slane %v1666, %v1674
      %1676 = xla_tuple %v1671, %v1675
      %vm1677 = vcmp.gt.s32.totalorder %v1665, %v1671
      %vm1678 = vcmp.eq.s32.totalorder %v1665, %v1671
      %vm1679 = vcmp.lt.s32.totalorder %v1666, %v1675
      %vm1680 = vmand %vm1678, %vm1679
      %vm1681 = vmor %vm1677, %vm1680
      %v1682 = vlaneseq
      %v1683 = vshrl.u32 %v1682, 7
      %v1684 = vand.u32 %v1683, 2
      %vm1685 = vcmp.ne.s32.totalorder %v1684, 0
      %vm1686 = vmxor %vm1681, %vm1685
      %v1687 = vsel %vm1686, %v1665, %v1671
      %v1688 = vsel %vm1686, %v1666, %v1675
      %1689 = xla_tuple %v1687, %v1688
      %v1691 = vunpack.c.l.s4 1732584193
      %v1692 = vunpack.c.0.s8 %v1691
      %v1693 = vperm.slane %v1687, %v1692
      %v1695 = vunpack.c.l.s4 1732584193
      %v1696 = vunpack.c.0.s8 %v1695
      %v1697 = vperm.slane %v1688, %v1696
      %1698 = xla_tuple %v1693, %v1697
      %vm1699 = vcmp.gt.s32.totalorder %v1687, %v1693
      %vm1700 = vcmp.eq.s32.totalorder %v1687, %v1693
      %vm1701 = vcmp.lt.s32.totalorder %v1688, %v1697
      %vm1702 = vmand %vm1700, %vm1701
      %vm1703 = vmor %vm1699, %vm1702
      %v1704 = vlaneseq
      %v1705 = vshrl.u32 %v1704, 7
      %v1706 = vand.u32 %v1705, 1
      %vm1707 = vcmp.ne.s32.totalorder %v1706, 0
      %vm1708 = vmxor %vm1703, %vm1707
      %v1709 = vsel %vm1708, %v1687, %v1693
      %v1710 = vsel %vm1708, %v1688, %v1697
      %1711 = xla_tuple %v1709, %v1710
      %1712 = vst [vmem:[%s1474] sm:$0xff] %v1709
      %1713 = vst [vmem:[%s1475] sm:$0xff] %v1710
      %1714 = xla_tuple %1712, %1713
      %v1715 = vld [vmem:[%s1474] sm:$0xff]
      %v1716 = vld [vmem:[%s1475] sm:$0xff]
      %1717 = xla_tuple %v1715, %v1716
      %v1719 = vunpack.c.l.s4 839939668
      %v1720 = vunpack.c.0.s8 %v1719
      %v1721 = vperm.slane %v1715, %v1720
      %v1723 = vunpack.c.l.s4 839939668
      %v1724 = vunpack.c.0.s8 %v1723
      %v1725 = vperm.slane %v1716, %v1724
      %1726 = xla_tuple %v1721, %v1725
      %vm1727 = vcmp.gt.s32.totalorder %v1715, %v1721
      %vm1728 = vcmp.eq.s32.totalorder %v1715, %v1721
      %vm1729 = vcmp.lt.s32.totalorder %v1716, %v1725
      %vm1730 = vmand %vm1728, %vm1729
      %vm1731 = vmor %vm1727, %vm1730
      %v1732 = vlaneseq
      %v1733 = vshrl.u32 %v1732, 7
      %v1734 = vand.u32 %v1733, 4
      %vm1735 = vcmp.ne.s32.totalorder %v1734, 0
      %vm1736 = vmxor %vm1731, %vm1735
      %v1737 = vsel %vm1736, %v1715, %v1721
      %v1738 = vsel %vm1736, %v1716, %v1725
      %1739 = xla_tuple %v1737, %v1738
      %v1741 = vunpack.c.l.s4 1417023538
      %v1742 = vunpack.c.0.s8 %v1741
      %v1743 = vperm.slane %v1737, %v1742
      %v1745 = vunpack.c.l.s4 1417023538
      %v1746 = vunpack.c.0.s8 %v1745
      %v1747 = vperm.slane %v1738, %v1746
      %1748 = xla_tuple %v1743, %v1747
      %vm1749 = vcmp.gt.s32.totalorder %v1737, %v1743
      %vm1750 = vcmp.eq.s32.totalorder %v1737, %v1743
      %vm1751 = vcmp.lt.s32.totalorder %v1738, %v1747
      %vm1752 = vmand %vm1750, %vm1751
      %vm1753 = vmor %vm1749, %vm1752
      %v1754 = vlaneseq
      %v1755 = vshrl.u32 %v1754, 7
      %v1756 = vand.u32 %v1755, 2
      %vm1757 = vcmp.ne.s32.totalorder %v1756, 0
      %vm1758 = vmxor %vm1753, %vm1757
      %v1759 = vsel %vm1758, %v1737, %v1743
      %v1760 = vsel %vm1758, %v1738, %v1747
      %1761 = xla_tuple %v1759, %v1760
      %v1763 = vunpack.c.l.s4 1732584193
      %v1764 = vunpack.c.0.s8 %v1763
      %v1765 = vperm.slane %v1759, %v1764
      %v1767 = vunpack.c.l.s4 1732584193
      %v1768 = vunpack.c.0.s8 %v1767
      %v1769 = vperm.slane %v1760, %v1768
      %1770 = xla_tuple %v1765, %v1769
      %vm1771 = vcmp.gt.s32.totalorder %v1759, %v1765
      %vm1772 = vcmp.eq.s32.totalorder %v1759, %v1765
      %vm1773 = vcmp.lt.s32.totalorder %v1760, %v1769
      %vm1774 = vmand %vm1772, %vm1773
      %vm1775 = vmor %vm1771, %vm1774
      %v1776 = vlaneseq
      %v1777 = vshrl.u32 %v1776, 7
      %v1778 = vand.u32 %v1777, 1
      %vm1779 = vcmp.ne.s32.totalorder %v1778, 0
      %vm1780 = vmxor %vm1775, %vm1779
      %v1781 = vsel %vm1780, %v1759, %v1765
      %v1782 = vsel %vm1780, %v1760, %v1769
      %1783 = xla_tuple %v1781, %v1782
      %1784 = vst [vmem:[%s1474] sm:$0xff] %v1781
      %1785 = vst [vmem:[%s1475] sm:$0xff] %v1782
      %1786 = xla_tuple %1784, %1785
      %s1787 = scalar_lea.vmem %s1423, 8 [#allocation13]
      %s1788 = scalar_lea.vmem %s1424, 8 [#allocation15]
      %1789 = xla_tuple %s1787, %s1788
      %v1790 = vld [vmem:[%s1423] sm:$0xff]
      %v1791 = vld [vmem:[%s1424] sm:$0xff]
      %1792 = xla_tuple %v1790, %v1791
      %v1793 = vld [vmem:[%s1787] sm:$0xff]
      %v1794 = vld [vmem:[%s1788] sm:$0xff]
      %1795 = xla_tuple %v1793, %v1794
      %vm1796 = vcmp.gt.s32.totalorder %v1790, %v1793
      %vm1797 = vcmp.eq.s32.totalorder %v1790, %v1793
      %vm1798 = vcmp.lt.s32.totalorder %v1791, %v1794
      %vm1799 = vmand %vm1797, %vm1798
      %vm1800 = vmor %vm1796, %vm1799
      %v1801 = vsel %vm1800, %v1790, %v1793
      %1802 = vst [vmem:[%s1423] sm:$0xff] %v1801
      %v1803 = vsel %vm1800, %v1793, %v1790
      %1804 = vst [vmem:[%s1787] sm:$0xff] %v1803
      %v1805 = vsel %vm1800, %v1791, %v1794
      %1806 = vst [vmem:[%s1424] sm:$0xff] %v1805
      %v1807 = vsel %vm1800, %v1794, %v1791
      %1808 = vst [vmem:[%s1788] sm:$0xff] %v1807
      %1809 = xla_tuple %1804, %1808
      %1810 = xla_tuple %s1423, %s1424
      %v1811 = vld [vmem:[%s1423] sm:$0xff]
      %v1812 = vld [vmem:[%s1424] sm:$0xff]
      %1813 = xla_tuple %v1811, %v1812
      %v1815 = vunpack.c.l.s4 839939668
      %v1816 = vunpack.c.0.s8 %v1815
      %v1817 = vperm.slane %v1811, %v1816
      %v1819 = vunpack.c.l.s4 839939668
      %v1820 = vunpack.c.0.s8 %v1819
      %v1821 = vperm.slane %v1812, %v1820
      %1822 = xla_tuple %v1817, %v1821
      %vm1823 = vcmp.gt.s32.totalorder %v1811, %v1817
      %vm1824 = vcmp.eq.s32.totalorder %v1811, %v1817
      %vm1825 = vcmp.lt.s32.totalorder %v1812, %v1821
      %vm1826 = vmand %vm1824, %vm1825
      %vm1827 = vmor %vm1823, %vm1826
      %v1828 = vlaneseq
      %v1829 = vshrl.u32 %v1828, 7
      %v1830 = vand.u32 %v1829, 4
      %vm1831 = vcmp.ne.s32.totalorder %v1830, 0
      %vm1832 = vmxor %vm1827, %vm1831
      %v1833 = vsel %vm1832, %v1811, %v1817
      %v1834 = vsel %vm1832, %v1812, %v1821
      %1835 = xla_tuple %v1833, %v1834
      %v1837 = vunpack.c.l.s4 1417023538
      %v1838 = vunpack.c.0.s8 %v1837
      %v1839 = vperm.slane %v1833, %v1838
      %v1841 = vunpack.c.l.s4 1417023538
      %v1842 = vunpack.c.0.s8 %v1841
      %v1843 = vperm.slane %v1834, %v1842
      %1844 = xla_tuple %v1839, %v1843
      %vm1845 = vcmp.gt.s32.totalorder %v1833, %v1839
      %vm1846 = vcmp.eq.s32.totalorder %v1833, %v1839
      %vm1847 = vcmp.lt.s32.totalorder %v1834, %v1843
      %vm1848 = vmand %vm1846, %vm1847
      %vm1849 = vmor %vm1845, %vm1848
      %v1850 = vlaneseq
      %v1851 = vshrl.u32 %v1850, 7
      %v1852 = vand.u32 %v1851, 2
      %vm1853 = vcmp.ne.s32.totalorder %v1852, 0
      %vm1854 = vmxor %vm1849, %vm1853
      %v1855 = vsel %vm1854, %v1833, %v1839
      %v1856 = vsel %vm1854, %v1834, %v1843
      %1857 = xla_tuple %v1855, %v1856
      %v1859 = vunpack.c.l.s4 1732584193
      %v1860 = vunpack.c.0.s8 %v1859
      %v1861 = vperm.slane %v1855, %v1860
      %v1863 = vunpack.c.l.s4 1732584193
      %v1864 = vunpack.c.0.s8 %v1863
      %v1865 = vperm.slane %v1856, %v1864
      %1866 = xla_tuple %v1861, %v1865
      %vm1867 = vcmp.gt.s32.totalorder %v1855, %v1861
      %vm1868 = vcmp.eq.s32.totalorder %v1855, %v1861
      %vm1869 = vcmp.lt.s32.totalorder %v1856, %v1865
      %vm1870 = vmand %vm1868, %vm1869
      %vm1871 = vmor %vm1867, %vm1870
      %v1872 = vlaneseq
      %v1873 = vshrl.u32 %v1872, 7
      %v1874 = vand.u32 %v1873, 1
      %vm1875 = vcmp.ne.s32.totalorder %v1874, 0
      %vm1876 = vmxor %vm1871, %vm1875
      %v1877 = vsel %vm1876, %v1855, %v1861
      %v1878 = vsel %vm1876, %v1856, %v1865
      %1879 = xla_tuple %v1877, %v1878
      %1880 = vst [vmem:[%s1423] sm:$0xff] %v1877
      %1881 = vst [vmem:[%s1424] sm:$0xff] %v1878
      %1882 = xla_tuple %1880, %1881
      %v1883 = vld [vmem:[%s1423] sm:$0xff]
      %v1884 = vld [vmem:[%s1424] sm:$0xff]
      %1885 = xla_tuple %v1883, %v1884
      %v1887 = vunpack.c.l.s4 839939668
      %v1888 = vunpack.c.0.s8 %v1887
      %v1889 = vperm.slane %v1883, %v1888
      %v1891 = vunpack.c.l.s4 839939668
      %v1892 = vunpack.c.0.s8 %v1891
      %v1893 = vperm.slane %v1884, %v1892
      %1894 = xla_tuple %v1889, %v1893
      %vm1895 = vcmp.gt.s32.totalorder %v1883, %v1889
      %vm1896 = vcmp.eq.s32.totalorder %v1883, %v1889
      %vm1897 = vcmp.lt.s32.totalorder %v1884, %v1893
      %vm1898 = vmand %vm1896, %vm1897
      %vm1899 = vmor %vm1895, %vm1898
      %v1900 = vlaneseq
      %v1901 = vshrl.u32 %v1900, 7
      %v1902 = vand.u32 %v1901, 4
      %vm1903 = vcmp.ne.s32.totalorder %v1902, 0
      %vm1904 = vmxor %vm1899, %vm1903
      %v1905 = vsel %vm1904, %v1883, %v1889
      %v1906 = vsel %vm1904, %v1884, %v1893
      %1907 = xla_tuple %v1905, %v1906
      %v1909 = vunpack.c.l.s4 1417023538
      %v1910 = vunpack.c.0.s8 %v1909
      %v1911 = vperm.slane %v1905, %v1910
      %v1913 = vunpack.c.l.s4 1417023538
      %v1914 = vunpack.c.0.s8 %v1913
      %v1915 = vperm.slane %v1906, %v1914
      %1916 = xla_tuple %v1911, %v1915
      %vm1917 = vcmp.gt.s32.totalorder %v1905, %v1911
      %vm1918 = vcmp.eq.s32.totalorder %v1905, %v1911
      %vm1919 = vcmp.lt.s32.totalorder %v1906, %v1915
      %vm1920 = vmand %vm1918, %vm1919
      %vm1921 = vmor %vm1917, %vm1920
      %v1922 = vlaneseq
      %v1923 = vshrl.u32 %v1922, 7
      %v1924 = vand.u32 %v1923, 2
      %vm1925 = vcmp.ne.s32.totalorder %v1924, 0
      %vm1926 = vmxor %vm1921, %vm1925
      %v1927 = vsel %vm1926, %v1905, %v1911
      %v1928 = vsel %vm1926, %v1906, %v1915
      %1929 = xla_tuple %v1927, %v1928
      %v1931 = vunpack.c.l.s4 1732584193
      %v1932 = vunpack.c.0.s8 %v1931
      %v1933 = vperm.slane %v1927, %v1932
      %v1935 = vunpack.c.l.s4 1732584193
      %v1936 = vunpack.c.0.s8 %v1935
      %v1937 = vperm.slane %v1928, %v1936
      %1938 = xla_tuple %v1933, %v1937
      %vm1939 = vcmp.gt.s32.totalorder %v1927, %v1933
      %vm1940 = vcmp.eq.s32.totalorder %v1927, %v1933
      %vm1941 = vcmp.lt.s32.totalorder %v1928, %v1937
      %vm1942 = vmand %vm1940, %vm1941
      %vm1943 = vmor %vm1939, %vm1942
      %v1944 = vlaneseq
      %v1945 = vshrl.u32 %v1944, 7
      %v1946 = vand.u32 %v1945, 1
      %vm1947 = vcmp.ne.s32.totalorder %v1946, 0
      %vm1948 = vmxor %vm1943, %vm1947
      %v1949 = vsel %vm1948, %v1927, %v1933
      %v1950 = vsel %vm1948, %v1928, %v1937
      %1951 = xla_tuple %v1949, %v1950
      %1952 = vst [vmem:[%s1423] sm:$0xff] %v1949
      %1953 = vst [vmem:[%s1424] sm:$0xff] %v1950
      %1954 = xla_tuple %1952, %1953
      %1955 = xla_tuple %s1787, %s1788
      %v1956 = vld [vmem:[%s1787] sm:$0xff]
      %v1957 = vld [vmem:[%s1788] sm:$0xff]
      %1958 = xla_tuple %v1956, %v1957
      %v1960 = vunpack.c.l.s4 839939668
      %v1961 = vunpack.c.0.s8 %v1960
      %v1962 = vperm.slane %v1956, %v1961
      %v1964 = vunpack.c.l.s4 839939668
      %v1965 = vunpack.c.0.s8 %v1964
      %v1966 = vperm.slane %v1957, %v1965
      %1967 = xla_tuple %v1962, %v1966
      %vm1968 = vcmp.gt.s32.totalorder %v1956, %v1962
      %vm1969 = vcmp.eq.s32.totalorder %v1956, %v1962
      %vm1970 = vcmp.lt.s32.totalorder %v1957, %v1966
      %vm1971 = vmand %vm1969, %vm1970
      %vm1972 = vmor %vm1968, %vm1971
      %v1973 = vlaneseq
      %v1974 = vshrl.u32 %v1973, 7
      %v1975 = vand.u32 %v1974, 4
      %vm1976 = vcmp.ne.s32.totalorder %v1975, 0
      %vm1977 = vmxor %vm1972, %vm1976
      %v1978 = vsel %vm1977, %v1956, %v1962
      %v1979 = vsel %vm1977, %v1957, %v1966
      %1980 = xla_tuple %v1978, %v1979
      %v1982 = vunpack.c.l.s4 1417023538
      %v1983 = vunpack.c.0.s8 %v1982
      %v1984 = vperm.slane %v1978, %v1983
      %v1986 = vunpack.c.l.s4 1417023538
      %v1987 = vunpack.c.0.s8 %v1986
      %v1988 = vperm.slane %v1979, %v1987
      %1989 = xla_tuple %v1984, %v1988
      %vm1990 = vcmp.gt.s32.totalorder %v1978, %v1984
      %vm1991 = vcmp.eq.s32.totalorder %v1978, %v1984
      %vm1992 = vcmp.lt.s32.totalorder %v1979, %v1988
      %vm1993 = vmand %vm1991, %vm1992
      %vm1994 = vmor %vm1990, %vm1993
      %v1995 = vlaneseq
      %v1996 = vshrl.u32 %v1995, 7
      %v1997 = vand.u32 %v1996, 2
      %vm1998 = vcmp.ne.s32.totalorder %v1997, 0
      %vm1999 = vmxor %vm1994, %vm1998
      %v2000 = vsel %vm1999, %v1978, %v1984
      %v2001 = vsel %vm1999, %v1979, %v1988
      %2002 = xla_tuple %v2000, %v2001
      %v2004 = vunpack.c.l.s4 1732584193
      %v2005 = vunpack.c.0.s8 %v2004
      %v2006 = vperm.slane %v2000, %v2005
      %v2008 = vunpack.c.l.s4 1732584193
      %v2009 = vunpack.c.0.s8 %v2008
      %v2010 = vperm.slane %v2001, %v2009
      %2011 = xla_tuple %v2006, %v2010
      %vm2012 = vcmp.gt.s32.totalorder %v2000, %v2006
      %vm2013 = vcmp.eq.s32.totalorder %v2000, %v2006
      %vm2014 = vcmp.lt.s32.totalorder %v2001, %v2010
      %vm2015 = vmand %vm2013, %vm2014
      %vm2016 = vmor %vm2012, %vm2015
      %v2017 = vlaneseq
      %v2018 = vshrl.u32 %v2017, 7
      %v2019 = vand.u32 %v2018, 1
      %vm2020 = vcmp.ne.s32.totalorder %v2019, 0
      %vm2021 = vmxor %vm2016, %vm2020
      %v2022 = vsel %vm2021, %v2000, %v2006
      %v2023 = vsel %vm2021, %v2001, %v2010
      %2024 = xla_tuple %v2022, %v2023
      %2025 = vst [vmem:[%s1787] sm:$0xff] %v2022
      %2026 = vst [vmem:[%s1788] sm:$0xff] %v2023
      %2027 = xla_tuple %2025, %2026
      %v2028 = vld [vmem:[%s1787] sm:$0xff]
      %v2029 = vld [vmem:[%s1788] sm:$0xff]
      %2030 = xla_tuple %v2028, %v2029
      %v2032 = vunpack.c.l.s4 839939668
      %v2033 = vunpack.c.0.s8 %v2032
      %v2034 = vperm.slane %v2028, %v2033
      %v2036 = vunpack.c.l.s4 839939668
      %v2037 = vunpack.c.0.s8 %v2036
      %v2038 = vperm.slane %v2029, %v2037
      %2039 = xla_tuple %v2034, %v2038
      %vm2040 = vcmp.gt.s32.totalorder %v2028, %v2034
      %vm2041 = vcmp.eq.s32.totalorder %v2028, %v2034
      %vm2042 = vcmp.lt.s32.totalorder %v2029, %v2038
      %vm2043 = vmand %vm2041, %vm2042
      %vm2044 = vmor %vm2040, %vm2043
      %v2045 = vlaneseq
      %v2046 = vshrl.u32 %v2045, 7
      %v2047 = vand.u32 %v2046, 4
      %vm2048 = vcmp.ne.s32.totalorder %v2047, 0
      %vm2049 = vmxor %vm2044, %vm2048
      %v2050 = vsel %vm2049, %v2028, %v2034
      %v2051 = vsel %vm2049, %v2029, %v2038
      %2052 = xla_tuple %v2050, %v2051
      %v2054 = vunpack.c.l.s4 1417023538
      %v2055 = vunpack.c.0.s8 %v2054
      %v2056 = vperm.slane %v2050, %v2055
      %v2058 = vunpack.c.l.s4 1417023538
      %v2059 = vunpack.c.0.s8 %v2058
      %v2060 = vperm.slane %v2051, %v2059
      %2061 = xla_tuple %v2056, %v2060
      %vm2062 = vcmp.gt.s32.totalorder %v2050, %v2056
      %vm2063 = vcmp.eq.s32.totalorder %v2050, %v2056
      %vm2064 = vcmp.lt.s32.totalorder %v2051, %v2060
      %vm2065 = vmand %vm2063, %vm2064
      %vm2066 = vmor %vm2062, %vm2065
      %v2067 = vlaneseq
      %v2068 = vshrl.u32 %v2067, 7
      %v2069 = vand.u32 %v2068, 2
      %vm2070 = vcmp.ne.s32.totalorder %v2069, 0
      %vm2071 = vmxor %vm2066, %vm2070
      %v2072 = vsel %vm2071, %v2050, %v2056
      %v2073 = vsel %vm2071, %v2051, %v2060
      %2074 = xla_tuple %v2072, %v2073
      %v2076 = vunpack.c.l.s4 1732584193
      %v2077 = vunpack.c.0.s8 %v2076
      %v2078 = vperm.slane %v2072, %v2077
      %v2080 = vunpack.c.l.s4 1732584193
      %v2081 = vunpack.c.0.s8 %v2080
      %v2082 = vperm.slane %v2073, %v2081
      %2083 = xla_tuple %v2078, %v2082
      %vm2084 = vcmp.gt.s32.totalorder %v2072, %v2078
      %vm2085 = vcmp.eq.s32.totalorder %v2072, %v2078
      %vm2086 = vcmp.lt.s32.totalorder %v2073, %v2082
      %vm2087 = vmand %vm2085, %vm2086
      %vm2088 = vmor %vm2084, %vm2087
      %v2089 = vlaneseq
      %v2090 = vshrl.u32 %v2089, 7
      %v2091 = vand.u32 %v2090, 1
      %vm2092 = vcmp.ne.s32.totalorder %v2091, 0
      %vm2093 = vmxor %vm2088, %vm2092
      %v2094 = vsel %vm2093, %v2072, %v2078
      %v2095 = vsel %vm2093, %v2073, %v2082
      %2096 = xla_tuple %v2094, %v2095
      %2097 = vst [vmem:[%s1787] sm:$0xff] %v2094
      %2098 = vst [vmem:[%s1788] sm:$0xff] %v2095
      %2099 = xla_tuple %2097, %2098
    %v2100 = vld [vmem:[#allocation12] sm:$0xff]
    %vm2101 = vcmp.lt.s32.totalorder %v2100, 0
    %v2102 = vsub.s32 2147483647, %v2100
    %v2103 = vsel %vm2101, %v2102, %v2100
    %2104 = vst [vmem:[#allocation12] sm:$0xff] %v2103
    %s2105 = scalar_lea.vmem [#allocation12], 8
    %v2106 = vld [vmem:[%s2105] sm:$0xff]
    %vm2107 = vcmp.lt.s32.totalorder %v2106, 0
    %v2108 = vsub.s32 2147483647, %v2106
    %v2109 = vsel %vm2107, %v2108, %v2106
    %2110 = vst [vmem:[%s2105] sm:$0xff] %v2109
    %s2111 = scalar_lea.vmem [#allocation12], 16
    %v2112 = vld [vmem:[%s2111] sm:$0xff]
    %vm2113 = vcmp.lt.s32.totalorder %v2112, 0
    %v2114 = vsub.s32 2147483647, %v2112
    %v2115 = vsel %vm2113, %v2114, %v2112
    %2116 = vst [vmem:[%s2111] sm:$0xff] %v2115
    %s2117 = scalar_lea.vmem [#allocation12], 24
    %v2118 = vld [vmem:[%s2117] sm:$0xff]
    %vm2119 = vcmp.lt.s32.totalorder %v2118, 0
    %v2120 = vsub.s32 2147483647, %v2118
    %v2121 = vsel %vm2119, %v2120, %v2118
    %2122 = vst [vmem:[%s2117] sm:$0xff] %v2121
    %v2123 = vld [vmem:[#allocation12] sm:$0xff]
    %s2124 = scalar_lea.vmem [#allocation12], 8
    %v2125 = vld [vmem:[%s2124] sm:$0xff]
    %s2126 = scalar_lea.vmem [#allocation12], 16
    %v2127 = vld [vmem:[%s2126] sm:$0xff]
    %s2128 = scalar_lea.vmem [#allocation12], 24
    %v2129 = vld [vmem:[%s2128] sm:$0xff]
    %2130 = vxpose.xlu0.b32.start [1/4] (short) %v2123, 128
    %2131 = vxpose.xlu0.b32.cont [2/4] (short) %v2125, 128
    %2132 = vxpose.xlu0.b32.cont [3/4] (short) %v2127, 128
    %2133 = vxpose.xlu0.b32.end [4/4] (short) %v2129, 128
    %v2134 = vpop.trf.xlu0
    %v2135 = vpop.trf.xlu0
    %v2136 = vpop.trf.xlu0
    %v2137 = vpop.trf.xlu0
    %v2138 = vpop.trf.xlu0
    %v2139 = vpop.trf.xlu0
    %v2140 = vpop.trf.xlu0
    %v2141 = vpop.trf.xlu0
    %v2142 = vpop.trf.xlu0
    %v2143 = vpop.trf.xlu0
    %v2144 = vpop.trf.xlu0
    %v2145 = vpop.trf.xlu0
    %v2146 = vpop.trf.xlu0
    %v2147 = vpop.trf.xlu0
    %v2148 = vpop.trf.xlu0
    %v2149 = vpop.trf.xlu0
    %2150 = vst [vmem:[#allocation7] sm:$0xff] %v2134
    %v2151 = vld [vmem:[#allocation14] sm:$0xff]
    %s2152 = scalar_lea.vmem [#allocation14], 8
    %v2153 = vld [vmem:[%s2152] sm:$0xff]
    %s2154 = scalar_lea.vmem [#allocation14], 16
    %v2155 = vld [vmem:[%s2154] sm:$0xff]
    %s2156 = scalar_lea.vmem [#allocation14], 24
    %v2157 = vld [vmem:[%s2156] sm:$0xff]
    %2158 = vxpose.xlu0.b32.start [1/4] (short) %v2151, 128
    %2159 = vxpose.xlu0.b32.cont [2/4] (short) %v2153, 128
    %2160 = vxpose.xlu0.b32.cont [3/4] (short) %v2155, 128
    %2161 = vxpose.xlu0.b32.end [4/4] (short) %v2157, 128
    %v2162 = vpop.trf.xlu0
    %v2163 = vpop.trf.xlu0
    %v2164 = vpop.trf.xlu0
    %v2165 = vpop.trf.xlu0
    %v2166 = vpop.trf.xlu0
    %v2167 = vpop.trf.xlu0
    %v2168 = vpop.trf.xlu0
    %v2169 = vpop.trf.xlu0
    %v2170 = vpop.trf.xlu0
    %v2171 = vpop.trf.xlu0
    %v2172 = vpop.trf.xlu0
    %v2173 = vpop.trf.xlu0
    %v2174 = vpop.trf.xlu0
    %v2175 = vpop.trf.xlu0
    %v2176 = vpop.trf.xlu0
    %v2177 = vpop.trf.xlu0
    %2178 = vst [vmem:[#allocation10] sm:$0xff] %v2162
    %s2180 = ssub.s32 4, 1
    %v2181 = vld [vmem:[#allocation7] sm:%s2180]
    %s2183 = ssub.s32 4, 1
    %2184 = vst [vmem:[#allocation8] sm:%s2183] %v2181
    %s2186 = ssub.s32 4, 1
    %v2187 = vld [vmem:[#allocation10] sm:%s2186]
    %s2189 = ssub.s32 4, 1
    %2190 = vst [vmem:[#allocation11] sm:%s2189] %v2187
    %2192 = vsyncadd [#allocation9], 0
    %s2194 = sshll.u32 [#allocation8], 4
    %s2195 = int_to_ptr.vmem [resolvable:$true] %s2194
    %s2196 = sshll.u32 %s1, 4
    %s2197 = int_to_ptr.hbm [resolvable:$true] %s2196
    %2199 = dma.vmem_to_hbm [thread:$0]  %s2195, 32, %s2197, [#allocation9]
    // Predicated region
    $region40: #{custom-call} parent=1 // pred_check
      _
    $region41: #{custom-call} parent=1 // pred_check_branch
      %2201 = sbr.rel (0) target = $region43
    $region42: #{custom-call} parent=1 // pred_region
      // Predicated region
      $region44: #{custom-call} parent=42 // pred_check
        _
      $region45: #{custom-call} parent=42 // pred_check_branch
        %2203 = sbr.rel target = $region47
      $region46: #{custom-call} parent=42 // pred_region
        // Predicated region
        $region59: #{custom-call} parent=46 // pred_check
          _
        $region60: #{custom-call} parent=46 // pred_check_branch
          %2219 = sbr.rel (0) target = $region62
        $region61: #{custom-call} parent=46 // pred_region
          %s2221 = ssub.s32 4, 1
          loop: start=0, step=1, limit=1
          $region63: #{custom-call} parent=61 // loop_pre_header
            _
          $region64: #{custom-call} parent=61 // loop_header
            %s2223 = sphi 0, %s2227
            %p2224 = scmp.ge.s32.totalorder %s2223, 1
            %s2228 = sphi [#allocation11], [#allocation11]
            %s2229 = sphi %s2, %s2
          $region65: #{custom-call} parent=61 // loop_header_branch
            %2226 = sbr.rel (%p2224) target = $region69
          $region66: #{custom-call} parent=61 // loop_body
            %v2230 = vld [vmem:[%s2228] sm:%s2221]
            %2231 = vst [vmem:[%s2229] sm:%s2221] %v2230
          $region67: #{custom-call} parent=61 // loop_footer
            %s2227 = sadd.s32 1, %s2223
          $region68: #{custom-call} parent=61 // loop_footer_branch
            %2222 = sbr.rel target = $region64
          $region69: #{custom-call} parent=61 // loop_exit
            _
        $region62: #{custom-call} parent=46 // pred_fallthru
          _
      $region47: #{custom-call} parent=42 // pred_fallthru
        _
      // Predicated region
      $region48: #{custom-call} parent=42 // pred_check
        _
      $region49: #{custom-call} parent=42 // pred_check_branch
        %2205 = sbr.rel (0) target = $region51
      $region50: #{custom-call} parent=42 // pred_region
        %s2207 = ssub.s32 4, 1
        loop: start=0, step=1, limit=1
        $region52: #{custom-call} parent=50 // loop_pre_header
          _
        $region53: #{custom-call} parent=50 // loop_header
          %s2209 = sphi 0, %s2213
          %p2210 = scmp.ge.s32.totalorder %s2209, 1
          %s2214 = sphi [#allocation11], [#allocation11]
          %s2215 = sphi %s2, %s2
        $region54: #{custom-call} parent=50 // loop_header_branch
          %2212 = sbr.rel (%p2210) target = $region58
        $region55: #{custom-call} parent=50 // loop_body
          %v2216 = vld [vmem:[%s2214] sm:%s2207]
          %2217 = vst [vmem:[%s2215] sm:%s2207] %v2216
        $region56: #{custom-call} parent=50 // loop_footer
          %s2213 = sadd.s32 1, %s2209
        $region57: #{custom-call} parent=50 // loop_footer_branch
          %2208 = sbr.rel target = $region53
        $region58: #{custom-call} parent=50 // loop_exit
          _
      $region51: #{custom-call} parent=42 // pred_fallthru
        _
    $region43: #{custom-call} parent=1 // pred_fallthru
      _
    %2232 = vnop
    %2234 = dma.done [#allocation9], 32
    %2235 = vsyncpa [#allocation9], 1

</llo_original>
